<compile_context>
chip_gen: v5e
topology: v5e:2x2
jax: 0.10.0
libtpu: 0.0.40
codegen_flags: <defaults>
</compile_context>

<pallas_src>
import functools
import math

import jax
import jax.numpy as jnp
from jax import lax
from jax.experimental import pallas as pl
from jax.experimental.pallas import tpu as pltpu


LN_EPS = 1e-12   # BERT LayerNorm eps


def _round_up(v, m):
    return ((v + m - 1) // m) * m


# ----------------------------- in-kernel helpers -----------------------------

def _gelu(y):
    # tanh-approximation GELU; PyTorch nn.GELU default is exact erf (tiny systematic mismatch).
    return 0.5 * y * (1.0 + jnp.tanh(0.7978845608028654 * (y + 0.044715 * y * y * y)))


def _layernorm(y, g, b):
    mean = jnp.mean(y, axis=-1, keepdims=True)
    var = jnp.mean((y - mean) ** 2, axis=-1, keepdims=True)
    return (y - mean) * lax.rsqrt(var + LN_EPS) * g + b


def _full_spec(shape):
    # whole-array block, constant block index (grid has one axis)
    return pl.BlockSpec(shape, lambda i: (0,) * len(shape))


def _resident_spec(shape):
    # Constant-index weight/bias block: fetched once and kept resident. Buffered(1) disables
    # double buffering for it -> halves weight VMEM footprint (key on v7x's 64 MiB VMEM).
    return pl.BlockSpec(shape, lambda i: (0,) * len(shape), pipeline_mode=pl.Buffered(1))


# ----------------------------- fused encoder-layer kernel -----------------------------
# Per grid step (one batch element), bf16 MXU inputs / f32 accumulation:
#   x0   = [LayerNorm_emb(x)]            (layer 0 only; pre-LN fused in)
#   qkv  = x0 @ Wqkv_p + bqkv            (single fused (H, 3*nh*hd_p) matmul, head slabs 128-aligned)
#   per head h: ctx_h = softmax(q_h k_h^T / sqrt(hd) + mask) v_h
#   attn = concat_h(ctx_h) @ Wo_p        (one fat output-projection matmul, K = nh*hd_p)
#   x1   = LayerNorm1(x0 + attn + bo)
#   x2   = LayerNorm2(x1 + GELU(x1 @ W1 + b1) @ W2 + b2)

def _encoder_layer_kernel(*refs, nh, hd_p, scale, pre_ln):
    x_ref, mask_ref = refs[0], refs[1]
    refs = refs[2:]

    x = x_ref[0].astype(jnp.float32)          # (S, H)
    bias = mask_ref[0]                        # (1, S) additive mask, broadcasts over query rows

    if pre_ln:                                # fused embedding LayerNorm (layer 0)
        x = _layernorm(x, refs[0][...], refs[1][...])
        refs = refs[2:]

    (wqkv_ref, bqkv_ref, wo_ref, bo_ref, g1_ref, b1_ref,
     w1_ref, bb1_ref, w2_ref, bb2_ref, g2_ref, b2_ref, o_ref) = refs

    Hq = nh * hd_p
    x_b = x.astype(jnp.bfloat16)

    qkv = jnp.dot(x_b, wqkv_ref[...], preferred_element_type=jnp.float32) + bqkv_ref[...]

    ctxs = []
    for h in range(nh):                       # static unroll, all slices 128-lane aligned
        q = qkv[:, h * hd_p:(h + 1) * hd_p].astype(jnp.bfloat16)
        k = qkv[:, Hq + h * hd_p:Hq + (h + 1) * hd_p].astype(jnp.bfloat16)
        v = qkv[:, 2 * Hq + h * hd_p:2 * Hq + (h + 1) * hd_p].astype(jnp.bfloat16)
        # contract last axes directly (trans_b form) -> no explicit K transpose through the XLU
        s = lax.dot_general(q, k, (((1,), (1,)), ((), ())),
                            preferred_element_type=jnp.float32) * scale + bias   # (S, S) f32
        s = s - jnp.max(s, axis=-1, keepdims=True)
        p = jnp.exp(s)
        p = p * pl.reciprocal(jnp.sum(p, axis=-1, keepdims=True), approx=True)
        ctxs.append(jnp.dot(p.astype(jnp.bfloat16), v,
                            preferred_element_type=jnp.float32))                 # (S, hd_p)

    ctx = jnp.concatenate(ctxs, axis=-1).astype(jnp.bfloat16)                    # (S, nh*hd_p)
    attn = jnp.dot(ctx, wo_ref[...], preferred_element_type=jnp.float32)         # (S, H)

    x1 = _layernorm(x + attn + bo_ref[...], g1_ref[...], b1_ref[...])

    h1 = _gelu(jnp.dot(x1.astype(jnp.bfloat16), w1_ref[...],
                       preferred_element_type=jnp.float32) + bb1_ref[...])
    y2 = x1 + jnp.dot(h1.astype(jnp.bfloat16), w2_ref[...],
                      preferred_element_type=jnp.float32) + bb2_ref[...]
    x2 = _layernorm(y2, g2_ref[...], b2_ref[...])

    o_ref[0] = x2.astype(o_ref.dtype)


def encoder_layer(x, mask_bias, layer, *, pre_ln, nh, hd, hd_p):
    B, S, H = x.shape
    I = layer["w1"].shape[1]
    Hq = nh * hd_p
    kernel = functools.partial(_encoder_layer_kernel, nh=nh, hd_p=hd_p,
                               scale=1.0 / math.sqrt(hd), pre_ln=pre_ln is not None)

    in_specs = [pl.BlockSpec((1, S, H), lambda b: (b, 0, 0)),
                pl.BlockSpec((1, 1, S), lambda b: (b, 0, 0))]
    args = [x, mask_bias]
    if pre_ln is not None:
        in_specs += [_resident_spec((1, H)), _resident_spec((1, H))]
        args += [pre_ln[0], pre_ln[1]]
    in_specs += [_resident_spec((H, 3 * Hq)), _resident_spec((1, 3 * Hq)),
                 _resident_spec((Hq, H)), _resident_spec((1, H)),
                 _resident_spec((1, H)), _resident_spec((1, H)),
                 _resident_spec((H, I)), _resident_spec((1, I)),
                 _resident_spec((I, H)), _resident_spec((1, H)),
                 _resident_spec((1, H)), _resident_spec((1, H))]
    args += [layer["wqkv"], layer["bqkv"], layer["wo"], layer["bo"],
             layer["ln1_g"], layer["ln1_b"],
             layer["w1"], layer["b1"], layer["w2"], layer["b2"],
             layer["ln2_g"], layer["ln2_b"]]

    return pl.pallas_call(
        kernel,
        out_shape=jax.ShapeDtypeStruct((B, S, H), jnp.bfloat16),
        grid=(B,),
        in_specs=in_specs,
        out_specs=pl.BlockSpec((1, S, H), lambda b: (b, 0, 0)),
        compiler_params=pltpu.CompilerParams(dimension_semantics=("parallel",)),
    )(*args)


# ----------------------------- fused pooler + classifier kernel -----------------------------
# pooled = tanh(cls @ Wp + bp); logits = pooled @ Wfc_pad + bfc_pad (lane-dense, unmasked stores)

def _pool_cls_kernel(cls_ref, pw_ref, pb_ref, fw_ref, fb_ref, o_ref):
    pooled = jnp.tanh(jnp.dot(cls_ref[...], pw_ref[...],
                              preferred_element_type=jnp.float32) + pb_ref[...])
    # nn.Dropout(0.1): identity at inference (eval mode)
    # TODO(synk): training-mode dropout (random masking + 1/(1-p) scaling) not implemented.
    o_ref[...] = jnp.dot(pooled.astype(jnp.bfloat16), fw_ref[...],
                         preferred_element_type=jnp.float32) + fb_ref[...]


def pooler_classifier(cls, pool_w, pool_b, fc_w_p, fc_b_p, *, num_classes):
    B, H = cls.shape
    Bp = _round_up(B, 8)                      # sublane-dense rows
    npad = fc_w_p.shape[1]                    # lane-padded in init_params (no per-call padding op)
    cls_p = jnp.zeros((Bp, H), cls.dtype).at[:B, :].set(cls)
    out = pl.pallas_call(
        _pool_cls_kernel,
        out_shape=jax.ShapeDtypeStruct((Bp, npad), jnp.float32),
        grid=(1,),
        in_specs=[_full_spec((Bp, H)),
                  _full_spec((H, H)), _full_spec((1, H)),
                  _full_spec((H, npad)), _full_spec((1, npad))],
        out_specs=_full_spec((Bp, npad)),
    )(cls_p, pool_w, pool_b, fc_w_p, fc_b_p)
    return out[:B, :num_classes]


# ----------------------------- params -----------------------------

def init_params(key, cfg):
    H, I = cfg["hidden"], cfg["intermediate"]
    nh = cfg["heads"]
    hd = H // nh
    hd_p = _round_up(hd, 128)                 # 128-lane aligned per-head slabs
    Hq = nh * hd_p
    N = cfg["num_classes"]
    npad = _round_up(N, 128)
    std = 0.02
    keys = iter(jax.random.split(key, 5 + 6 * cfg["layers"]))

    def w(shape):
        return jax.random.normal(next(keys), shape, jnp.float32) * std

    params = {
        "word_emb": w((cfg["vocab"], H)),
        "pos_emb": w((cfg["max_pos"], H)),
        "type_emb": w((2, H)),
        "emb_ln_g": jnp.ones((1, H), jnp.float32),
        "emb_ln_b": jnp.zeros((1, H), jnp.float32),
        "layers": [],
        "pool_w": w((H, H)).astype(jnp.bfloat16),
        "pool_b": jnp.zeros((1, H), jnp.float32),
        # nn.Linear(hidden, num_classes), lane-padded to 128 here (once) for unmasked stores
        "fc_w_p": jnp.zeros((H, npad), jnp.float32).at[:, :N].set(w((H, N))).astype(jnp.bfloat16),
        "fc_b_p": jnp.zeros((1, npad), jnp.float32),
    }
    for _ in range(cfg["layers"]):
        wq, wk, wv = w((H, nh, hd)), w((H, nh, hd)), w((H, nh, hd))
        wo_full = w((H, H))                   # rows = concat of per-head (hd, H) slabs
        wqkv = jnp.zeros((H, 3 * Hq), jnp.float32)
        wo = jnp.zeros((Hq, H), jnp.float32)
        for h in range(nh):                   # zero-padded columns/rows beyond hd per head
            wqkv = wqkv.at[:, h * hd_p:h * hd_p + hd].set(wq[:, h])
            wqkv = wqkv.at[:, Hq + h * hd_p:Hq + h * hd_p + hd].set(wk[:, h])
            wqkv = wqkv.at[:, 2 * Hq + h * hd_p:2 * Hq + h * hd_p + hd].set(wv[:, h])
            wo = wo.at[h * hd_p:h * hd_p + hd, :].set(wo_full[h * hd:(h + 1) * hd, :])
        params["layers"].append({
            "wqkv": wqkv.astype(jnp.bfloat16), "bqkv": jnp.zeros((1, 3 * Hq), jnp.float32),
            "wo": wo.astype(jnp.bfloat16), "bo": jnp.zeros((1, H), jnp.float32),
            "ln1_g": jnp.ones((1, H), jnp.float32), "ln1_b": jnp.zeros((1, H), jnp.float32),
            "w1": w((H, I)).astype(jnp.bfloat16), "b1": jnp.zeros((1, I), jnp.float32),
            "w2": w((I, H)).astype(jnp.bfloat16), "b2": jnp.zeros((1, H), jnp.float32),
            "ln2_g": jnp.ones((1, H), jnp.float32), "ln2_b": jnp.zeros((1, H), jnp.float32),
        })
    return params


# ----------------------------- model (glue + kernels) -----------------------------

def bert_classifier_forward(params, input_ids, attention_mask, *, cfg):
    B, S = input_ids.shape
    H, nh = cfg["hidden"], cfg["heads"]
    hd = H // nh
    hd_p = _round_up(hd, 128)

    # --- embeddings (gather is plain-JAX glue; LayerNorm_emb is fused into the layer-0 kernel) ---
    pos_ids = jnp.arange(S)
    emb = (params["word_emb"][input_ids]
           + params["pos_emb"][pos_ids][None, :, :]
           + params["type_emb"][0][None, None, :])          # token_type_ids == 0
    x = emb.astype(jnp.bfloat16)                             # (B, S, H) bf16 activations

    mask_bias = ((1.0 - attention_mask.astype(jnp.float32)) * -1e9).reshape(B, 1, S)

    # --- transformer encoder: ONE fused pallas_call per layer, no transposes ---
    for li, layer in enumerate(params["layers"]):
        pre_ln = (params["emb_ln_g"], params["emb_ln_b"]) if li == 0 else None
        x = encoder_layer(x, mask_bias, layer, pre_ln=pre_ln, nh=nh, hd=hd, hd_p=hd_p)

    # --- pooler (tanh dense on CLS) + dropout(eval)=identity + classifier, one fused kernel ---
    cls = x[:, 0, :]                                         # (B, H) bf16
    logits = pooler_classifier(cls, params["pool_w"], params["pool_b"],
                               params["fc_w_p"], params["fc_b_p"],
                               num_classes=cfg["num_classes"])
    return logits


# ----------------------------- main -----------------------------

if __name__ == "__main__":
    # lane-dense mini-BERT config: hidden / intermediate are multiples of 128
    cfg = dict(hidden=128, heads=2, intermediate=512, layers=2,
               vocab=100, max_pos=16, num_classes=5)

    key = jax.random.PRNGKey(0)
    kp, ki = jax.random.split(key)
    params = init_params(kp, cfg)

    B, S = 2, 8
    input_ids = jax.random.randint(ki, (B, S), 0, cfg["vocab"], dtype=jnp.int32)
    attention_mask = jnp.ones((B, S), dtype=jnp.int32).at[1, 6:].set(0)  # pad last 2 of seq 1

    fwd = jax.jit(functools.partial(bert_classifier_forward, cfg=cfg))
    logits = fwd(params, input_ids, attention_mask)
    jax.block_until_ready(logits)

    assert logits.shape == (B, cfg["num_classes"])
    assert bool(jnp.all(jnp.isfinite(logits)))
    print("KERNEL_OK")
</pallas_src>

<mosaic_0001>
module attributes {stable_mosaic.version = 11 : i64} {
  func.func @_encoder_layer_kernel(%arg0: i32, %arg1: memref<1x8x128xbf16, #tpu.memory_space<vmem>>, %arg2: memref<1x1x8xf32, #tpu.memory_space<vmem>>, %arg3: memref<128x768xbf16, #tpu.memory_space<vmem>>, %arg4: memref<1x768xf32, #tpu.memory_space<vmem>>, %arg5: memref<256x128xbf16, #tpu.memory_space<vmem>>, %arg6: memref<1x128xf32, #tpu.memory_space<vmem>>, %arg7: memref<1x128xf32, #tpu.memory_space<vmem>>, %arg8: memref<1x128xf32, #tpu.memory_space<vmem>>, %arg9: memref<128x512xbf16, #tpu.memory_space<vmem>>, %arg10: memref<1x512xf32, #tpu.memory_space<vmem>>, %arg11: memref<512x128xbf16, #tpu.memory_space<vmem>>, %arg12: memref<1x128xf32, #tpu.memory_space<vmem>>, %arg13: memref<1x128xf32, #tpu.memory_space<vmem>>, %arg14: memref<1x128xf32, #tpu.memory_space<vmem>>, %arg15: memref<1x8x128xbf16, #tpu.memory_space<vmem>>) attributes {dimension_semantics = [#tpu.dimension_semantics<parallel>], iteration_bounds = array<i64: 2>, scalar_prefetch = 0 : i64, scratch_operands = 0 : i64, tpu.core_type = #tpu.core_type<tc>, window_params = [{transform_indices = @transform_0, window_bounds = array<i64: 1, 8, 128>}, {transform_indices = @transform_1, window_bounds = array<i64: 1, 1, 8>}, {pipeline_mode = #tpu.pipeline_mode<synchronous>, transform_indices = @transform_2, window_bounds = array<i64: 128, 768>}, {pipeline_mode = #tpu.pipeline_mode<synchronous>, transform_indices = @transform_3, window_bounds = array<i64: 1, 768>}, {pipeline_mode = #tpu.pipeline_mode<synchronous>, transform_indices = @transform_4, window_bounds = array<i64: 256, 128>}, {pipeline_mode = #tpu.pipeline_mode<synchronous>, transform_indices = @transform_5, window_bounds = array<i64: 1, 128>}, {pipeline_mode = #tpu.pipeline_mode<synchronous>, transform_indices = @transform_6, window_bounds = array<i64: 1, 128>}, {pipeline_mode = #tpu.pipeline_mode<synchronous>, transform_indices = @transform_7, window_bounds = array<i64: 1, 128>}, {pipeline_mode = #tpu.pipeline_mode<synchronous>, transform_indices = @transform_8, window_bounds = array<i64: 128, 512>}, {pipeline_mode = #tpu.pipeline_mode<synchronous>, transform_indices = @transform_9, window_bounds = array<i64: 1, 512>}, {pipeline_mode = #tpu.pipeline_mode<synchronous>, transform_indices = @transform_10, window_bounds = array<i64: 512, 128>}, {pipeline_mode = #tpu.pipeline_mode<synchronous>, transform_indices = @transform_11, window_bounds = array<i64: 1, 128>}, {pipeline_mode = #tpu.pipeline_mode<synchronous>, transform_indices = @transform_12, window_bounds = array<i64: 1, 128>}, {pipeline_mode = #tpu.pipeline_mode<synchronous>, transform_indices = @transform_13, window_bounds = array<i64: 1, 128>}, {transform_indices = @transform_14, window_bounds = array<i64: 1, 8, 128>}]} {
    %c0 = arith.constant 0 : index
    %c0_0 = arith.constant 0 : index
    %c0_1 = arith.constant 0 : index
    %0 = vector.load %arg1[%c0, %c0_0, %c0_1] : memref<1x8x128xbf16, #tpu.memory_space<vmem>>, vector<1x8x128xbf16>
    %1 = vector.shape_cast %0 : vector<1x8x128xbf16> to vector<8x128xbf16>
    %2 = arith.extf %1 : vector<8x128xbf16> to vector<8x128xf32>
    %c0_2 = arith.constant 0 : index
    %c0_3 = arith.constant 0 : index
    %c0_4 = arith.constant 0 : index
    %3 = vector.load %arg2[%c0_2, %c0_3, %c0_4] : memref<1x1x8xf32, #tpu.memory_space<vmem>>, vector<1x1x8xf32>
    %4 = vector.shape_cast %3 : vector<1x1x8xf32> to vector<1x8xf32>
    %5 = arith.truncf %2 : vector<8x128xf32> to vector<8x128xbf16>
    %c0_5 = arith.constant 0 : index
    %c0_6 = arith.constant 0 : index
    %6 = vector.load %arg3[%c0_5, %c0_6] : memref<128x768xbf16, #tpu.memory_space<vmem>>, vector<128x768xbf16>
    %cst = arith.constant dense<0.000000e+00> : vector<8x768xf32>
    %7 = tpu.matmul %5, %6, %cst {dimension_numbers = #tpu.dot_dimension_numbers<[1], [0], [0], [1], [0, 0, 1, 1], [], []>} : vector<8x128xbf16>, vector<128x768xbf16>, vector<8x768xf32> -> vector<8x768xf32>
    %c0_7 = arith.constant 0 : index
    %c0_8 = arith.constant 0 : index
    %8 = vector.load %arg4[%c0_7, %c0_8] : memref<1x768xf32, #tpu.memory_space<vmem>>, vector<1x768xf32>
    %9 = vector.broadcast %8 : vector<1x768xf32> to vector<8x768xf32>
    %10 = arith.addf %7, %9 : vector<8x768xf32>
    %11 = vector.extract_strided_slice %10 {offsets = [0, 0], sizes = [8, 128], strides = [1, 1]} : vector<8x768xf32> to vector<8x128xf32>
    %12 = arith.truncf %11 : vector<8x128xf32> to vector<8x128xbf16>
    %13 = vector.extract_strided_slice %10 {offsets = [0, 256], sizes = [8, 128], strides = [1, 1]} : vector<8x768xf32> to vector<8x128xf32>
    %14 = arith.truncf %13 : vector<8x128xf32> to vector<8x128xbf16>
    %15 = vector.extract_strided_slice %10 {offsets = [0, 512], sizes = [8, 128], strides = [1, 1]} : vector<8x768xf32> to vector<8x128xf32>
    %16 = arith.truncf %15 : vector<8x128xf32> to vector<8x128xbf16>
    %cst_9 = arith.constant dense<0.000000e+00> : vector<8x8xf32>
    %17 = tpu.matmul %12, %14, %cst_9 {dimension_numbers = #tpu.dot_dimension_numbers<[1], [1], [0], [0], [0, 0, 1, 0], [], []>} : vector<8x128xbf16>, vector<8x128xbf16>, vector<8x8xf32> -> vector<8x8xf32>
    %cst_10 = arith.constant 1.250000e-01 : f32
    %18 = vector.broadcast %cst_10 : f32 to vector<8x8xf32>
    %19 = arith.mulf %17, %18 : vector<8x8xf32>
    %20 = vector.broadcast %4 : vector<1x8xf32> to vector<8x8xf32>
    %21 = arith.addf %19, %20 : vector<8x8xf32>
    %cst_11 = arith.constant dense<0xFF800000> : vector<8xf32>
    %22 = vector.multi_reduction <maximumf>, %21, %cst_11 [1] : vector<8x8xf32> to vector<8xf32>
    %23 = vector.shape_cast %22 : vector<8xf32> to vector<8x1xf32>
    %24 = vector.broadcast %23 : vector<8x1xf32> to vector<8x8xf32>
    %25 = arith.subf %21, %24 : vector<8x8xf32>
    %26 = math.exp %25 : vector<8x8xf32>
    %cst_12 = arith.constant dense<0.000000e+00> : vector<8xf32>
    %27 = vector.multi_reduction <add>, %26, %cst_12 [1] : vector<8x8xf32> to vector<8xf32>
    %28 = vector.shape_cast %27 : vector<8xf32> to vector<8x1xf32>
    %29 = tpu.reciprocal %28 {approx = true} : vector<8x1xf32> -> vector<8x1xf32>
    %30 = vector.broadcast %29 : vector<8x1xf32> to vector<8x8xf32>
    %31 = arith.mulf %26, %30 : vector<8x8xf32>
    %32 = arith.truncf %31 : vector<8x8xf32> to vector<8x8xbf16>
    %cst_13 = arith.constant dense<0.000000e+00> : vector<8x128xf32>
    %33 = tpu.matmul %32, %16, %cst_13 {dimension_numbers = #tpu.dot_dimension_numbers<[1], [0], [0], [1], [0, 0, 1, 1], [], []>} : vector<8x8xbf16>, vector<8x128xbf16>, vector<8x128xf32> -> vector<8x128xf32>
    %34 = vector.extract_strided_slice %10 {offsets = [0, 128], sizes = [8, 128], strides = [1, 1]} : vector<8x768xf32> to vector<8x128xf32>
    %35 = arith.truncf %34 : vector<8x128xf32> to vector<8x128xbf16>
    %36 = vector.extract_strided_slice %10 {offsets = [0, 384], sizes = [8, 128], strides = [1, 1]} : vector<8x768xf32> to vector<8x128xf32>
    %37 = arith.truncf %36 : vector<8x128xf32> to vector<8x128xbf16>
    %38 = vector.extract_strided_slice %10 {offsets = [0, 640], sizes = [8, 128], strides = [1, 1]} : vector<8x768xf32> to vector<8x128xf32>
    %39 = arith.truncf %38 : vector<8x128xf32> to vector<8x128xbf16>
    %cst_14 = arith.constant dense<0.000000e+00> : vector<8x8xf32>
    %40 = tpu.matmul %35, %37, %cst_14 {dimension_numbers = #tpu.dot_dimension_numbers<[1], [1], [0], [0], [0, 0, 1, 0], [], []>} : vector<8x128xbf16>, vector<8x128xbf16>, vector<8x8xf32> -> vector<8x8xf32>
    %cst_15 = arith.constant 1.250000e-01 : f32
    %41 = vector.broadcast %cst_15 : f32 to vector<8x8xf32>
    %42 = arith.mulf %40, %41 : vector<8x8xf32>
    %43 = vector.broadcast %4 : vector<1x8xf32> to vector<8x8xf32>
    %44 = arith.addf %42, %43 : vector<8x8xf32>
    %cst_16 = arith.constant dense<0xFF800000> : vector<8xf32>
    %45 = vector.multi_reduction <maximumf>, %44, %cst_16 [1] : vector<8x8xf32> to vector<8xf32>
    %46 = vector.shape_cast %45 : vector<8xf32> to vector<8x1xf32>
    %47 = vector.broadcast %46 : vector<8x1xf32> to vector<8x8xf32>
    %48 = arith.subf %44, %47 : vector<8x8xf32>
    %49 = math.exp %48 : vector<8x8xf32>
    %cst_17 = arith.constant dense<0.000000e+00> : vector<8xf32>
    %50 = vector.multi_reduction <add>, %49, %cst_17 [1] : vector<8x8xf32> to vector<8xf32>
    %51 = vector.shape_cast %50 : vector<8xf32> to vector<8x1xf32>
    %52 = tpu.reciprocal %51 {approx = true} : vector<8x1xf32> -> vector<8x1xf32>
    %53 = vector.broadcast %52 : vector<8x1xf32> to vector<8x8xf32>
    %54 = arith.mulf %49, %53 : vector<8x8xf32>
    %55 = arith.truncf %54 : vector<8x8xf32> to vector<8x8xbf16>
    %cst_18 = arith.constant dense<0.000000e+00> : vector<8x128xf32>
    %56 = tpu.matmul %55, %39, %cst_18 {dimension_numbers = #tpu.dot_dimension_numbers<[1], [0], [0], [1], [0, 0, 1, 1], [], []>} : vector<8x8xbf16>, vector<8x128xbf16>, vector<8x128xf32> -> vector<8x128xf32>
    %57 = tpu.concatenate %33, %56 in 1 : vector<8x128xf32>, vector<8x128xf32> -> vector<8x256xf32>
    %58 = arith.truncf %57 : vector<8x256xf32> to vector<8x256xbf16>
    %c0_19 = arith.constant 0 : index
    %c0_20 = arith.constant 0 : index
    %59 = vector.load %arg5[%c0_19, %c0_20] : memref<256x128xbf16, #tpu.memory_space<vmem>>, vector<256x128xbf16>
    %cst_21 = arith.constant dense<0.000000e+00> : vector<8x128xf32>
    %60 = tpu.matmul %58, %59, %cst_21 {dimension_numbers = #tpu.dot_dimension_numbers<[1], [0], [0], [1], [0, 0, 1, 1], [], []>} : vector<8x256xbf16>, vector<256x128xbf16>, vector<8x128xf32> -> vector<8x128xf32>
    %61 = arith.addf %2, %60 : vector<8x128xf32>
    %c0_22 = arith.constant 0 : index
    %c0_23 = arith.constant 0 : index
    %62 = vector.load %arg6[%c0_22, %c0_23] : memref<1x128xf32, #tpu.memory_space<vmem>>, vector<1x128xf32>
    %63 = vector.broadcast %62 : vector<1x128xf32> to vector<8x128xf32>
    %64 = arith.addf %61, %63 : vector<8x128xf32>
    %c0_24 = arith.constant 0 : index
    %c0_25 = arith.constant 0 : index
    %65 = vector.load %arg7[%c0_24, %c0_25] : memref<1x128xf32, #tpu.memory_space<vmem>>, vector<1x128xf32>
    %c0_26 = arith.constant 0 : index
    %c0_27 = arith.constant 0 : index
    %66 = vector.load %arg8[%c0_26, %c0_27] : memref<1x128xf32, #tpu.memory_space<vmem>>, vector<1x128xf32>
    %cst_28 = arith.constant dense<0.000000e+00> : vector<8xf32>
    %67 = vector.multi_reduction <add>, %64, %cst_28 [1] : vector<8x128xf32> to vector<8xf32>
    %68 = vector.shape_cast %67 : vector<8xf32> to vector<8x1xf32>
    %cst_29 = arith.constant 1.280000e+02 : f32
    %69 = vector.broadcast %cst_29 : f32 to vector<8x1xf32>
    %70 = arith.divf %68, %69 : vector<8x1xf32>
    %71 = vector.broadcast %70 : vector<8x1xf32> to vector<8x128xf32>
    %72 = arith.subf %64, %71 : vector<8x128xf32>
    %73 = arith.mulf %72, %72 : vector<8x128xf32>
    %cst_30 = arith.constant dense<0.000000e+00> : vector<8xf32>
    %74 = vector.multi_reduction <add>, %73, %cst_30 [1] : vector<8x128xf32> to vector<8xf32>
    %75 = vector.shape_cast %74 : vector<8xf32> to vector<8x1xf32>
    %cst_31 = arith.constant 1.280000e+02 : f32
    %76 = vector.broadcast %cst_31 : f32 to vector<8x1xf32>
    %77 = arith.divf %75, %76 : vector<8x1xf32>
    %78 = vector.broadcast %70 : vector<8x1xf32> to vector<8x128xf32>
    %79 = arith.subf %64, %78 : vector<8x128xf32>
    %cst_32 = arith.constant 9.99999996E-13 : f32
    %80 = vector.broadcast %cst_32 : f32 to vector<8x1xf32>
    %81 = arith.addf %77, %80 : vector<8x1xf32>
    %82 = math.rsqrt %81 : vector<8x1xf32>
    %83 = vector.broadcast %82 : vector<8x1xf32> to vector<8x128xf32>
    %84 = arith.mulf %79, %83 : vector<8x128xf32>
    %85 = vector.broadcast %65 : vector<1x128xf32> to vector<8x128xf32>
    %86 = arith.mulf %84, %85 : vector<8x128xf32>
    %87 = vector.broadcast %66 : vector<1x128xf32> to vector<8x128xf32>
    %88 = arith.addf %86, %87 : vector<8x128xf32>
    %89 = arith.truncf %88 : vector<8x128xf32> to vector<8x128xbf16>
    %c0_33 = arith.constant 0 : index
    %c0_34 = arith.constant 0 : index
    %90 = vector.load %arg9[%c0_33, %c0_34] : memref<128x512xbf16, #tpu.memory_space<vmem>>, vector<128x512xbf16>
    %cst_35 = arith.constant dense<0.000000e+00> : vector<8x512xf32>
    %91 = tpu.matmul %89, %90, %cst_35 {dimension_numbers = #tpu.dot_dimension_numbers<[1], [0], [0], [1], [0, 0, 1, 1], [], []>} : vector<8x128xbf16>, vector<128x512xbf16>, vector<8x512xf32> -> vector<8x512xf32>
    %c0_36 = arith.constant 0 : index
    %c0_37 = arith.constant 0 : index
    %92 = vector.load %arg10[%c0_36, %c0_37] : memref<1x512xf32, #tpu.memory_space<vmem>>, vector<1x512xf32>
    %93 = vector.broadcast %92 : vector<1x512xf32> to vector<8x512xf32>
    %94 = arith.addf %91, %93 : vector<8x512xf32>
    %cst_38 = arith.constant 5.000000e-01 : f32
    %95 = vector.broadcast %cst_38 : f32 to vector<8x512xf32>
    %96 = arith.mulf %95, %94 : vector<8x512xf32>
    %cst_39 = arith.constant 4.471500e-02 : f32
    %97 = vector.broadcast %cst_39 : f32 to vector<8x512xf32>
    %98 = arith.mulf %97, %94 : vector<8x512xf32>
    %99 = arith.mulf %98, %94 : vector<8x512xf32>
    %100 = arith.mulf %99, %94 : vector<8x512xf32>
    %101 = arith.addf %94, %100 : vector<8x512xf32>
    %cst_40 = arith.constant 0.797884583 : f32
    %102 = vector.broadcast %cst_40 : f32 to vector<8x512xf32>
    %103 = arith.mulf %102, %101 : vector<8x512xf32>
    %104 = math.tanh %103 : vector<8x512xf32>
    %cst_41 = arith.constant 1.000000e+00 : f32
    %105 = vector.broadcast %cst_41 : f32 to vector<8x512xf32>
    %106 = arith.addf %105, %104 : vector<8x512xf32>
    %107 = arith.mulf %96, %106 : vector<8x512xf32>
    %108 = arith.truncf %107 : vector<8x512xf32> to vector<8x512xbf16>
    %c0_42 = arith.constant 0 : index
    %c0_43 = arith.constant 0 : index
    %109 = vector.load %arg11[%c0_42, %c0_43] : memref<512x128xbf16, #tpu.memory_space<vmem>>, vector<512x128xbf16>
    %cst_44 = arith.constant dense<0.000000e+00> : vector<8x128xf32>
    %110 = tpu.matmul %108, %109, %cst_44 {dimension_numbers = #tpu.dot_dimension_numbers<[1], [0], [0], [1], [0, 0, 1, 1], [], []>} : vector<8x512xbf16>, vector<512x128xbf16>, vector<8x128xf32> -> vector<8x128xf32>
    %111 = arith.addf %88, %110 : vector<8x128xf32>
    %c0_45 = arith.constant 0 : index
    %c0_46 = arith.constant 0 : index
    %112 = vector.load %arg12[%c0_45, %c0_46] : memref<1x128xf32, #tpu.memory_space<vmem>>, vector<1x128xf32>
    %113 = vector.broadcast %112 : vector<1x128xf32> to vector<8x128xf32>
    %114 = arith.addf %111, %113 : vector<8x128xf32>
    %c0_47 = arith.constant 0 : index
    %c0_48 = arith.constant 0 : index
    %115 = vector.load %arg13[%c0_47, %c0_48] : memref<1x128xf32, #tpu.memory_space<vmem>>, vector<1x128xf32>
    %c0_49 = arith.constant 0 : index
    %c0_50 = arith.constant 0 : index
    %116 = vector.load %arg14[%c0_49, %c0_50] : memref<1x128xf32, #tpu.memory_space<vmem>>, vector<1x128xf32>
    %cst_51 = arith.constant dense<0.000000e+00> : vector<8xf32>
    %117 = vector.multi_reduction <add>, %114, %cst_51 [1] : vector<8x128xf32> to vector<8xf32>
    %118 = vector.shape_cast %117 : vector<8xf32> to vector<8x1xf32>
    %cst_52 = arith.constant 1.280000e+02 : f32
    %119 = vector.broadcast %cst_52 : f32 to vector<8x1xf32>
    %120 = arith.divf %118, %119 : vector<8x1xf32>
    %121 = vector.broadcast %120 : vector<8x1xf32> to vector<8x128xf32>
    %122 = arith.subf %114, %121 : vector<8x128xf32>
    %123 = arith.mulf %122, %122 : vector<8x128xf32>
    %cst_53 = arith.constant dense<0.000000e+00> : vector<8xf32>
    %124 = vector.multi_reduction <add>, %123, %cst_53 [1] : vector<8x128xf32> to vector<8xf32>
    %125 = vector.shape_cast %124 : vector<8xf32> to vector<8x1xf32>
    %cst_54 = arith.constant 1.280000e+02 : f32
    %126 = vector.broadcast %cst_54 : f32 to vector<8x1xf32>
    %127 = arith.divf %125, %126 : vector<8x1xf32>
    %128 = vector.broadcast %120 : vector<8x1xf32> to vector<8x128xf32>
    %129 = arith.subf %114, %128 : vector<8x128xf32>
    %cst_55 = arith.constant 9.99999996E-13 : f32
    %130 = vector.broadcast %cst_55 : f32 to vector<8x1xf32>
    %131 = arith.addf %127, %130 : vector<8x1xf32>
    %132 = math.rsqrt %131 : vector<8x1xf32>
    %133 = vector.broadcast %132 : vector<8x1xf32> to vector<8x128xf32>
    %134 = arith.mulf %129, %133 : vector<8x128xf32>
    %135 = vector.broadcast %115 : vector<1x128xf32> to vector<8x128xf32>
    %136 = arith.mulf %134, %135 : vector<8x128xf32>
    %137 = vector.broadcast %116 : vector<1x128xf32> to vector<8x128xf32>
    %138 = arith.addf %136, %137 : vector<8x128xf32>
    %139 = arith.truncf %138 : vector<8x128xf32> to vector<8x128xbf16>
    %c0_56 = arith.constant 0 : index
    %c0_57 = arith.constant 0 : index
    %c0_58 = arith.constant 0 : index
    %140 = vector.load %arg15[%c0_56, %c0_57, %c0_58] : memref<1x8x128xbf16, #tpu.memory_space<vmem>>, vector<1x8x128xbf16>
    %141 = vector.shape_cast %140 : vector<1x8x128xbf16> to vector<8x128xbf16>
    %142 = vector.shape_cast %139 : vector<8x128xbf16> to vector<1x8x128xbf16>
    tpu.vector_store %arg15[%c0_56, %c0_57, %c0_58], %142 {strides = array<i32>} : memref<1x8x128xbf16, #tpu.memory_space<vmem>>, vector<1x8x128xbf16>,
    return
  }
  func.func @transform_0(%arg0: i32) -> (i32, i32, i32) {
    %c0_i32 = arith.constant 0 : i32
    %c0_i32_0 = arith.constant 0 : i32
    %c0_i32_1 = arith.constant 0 : i32
    return %arg0, %c0_i32, %c0_i32_0 : i32, i32, i32
  }
  func.func @transform_1(%arg0: i32) -> (i32, i32, i32) {
    %c0_i32 = arith.constant 0 : i32
    %c0_i32_0 = arith.constant 0 : i32
    %c0_i32_1 = arith.constant 0 : i32
    return %arg0, %c0_i32, %c0_i32_0 : i32, i32, i32
  }
  func.func @transform_2(%arg0: i32) -> (i32, i32) {
    %c0_i32 = arith.constant 0 : i32
    %c0_i32_0 = arith.constant 0 : i32
    %c0_i32_1 = arith.constant 0 : i32
    return %c0_i32, %c0_i32_0 : i32, i32
  }
  func.func @transform_3(%arg0: i32) -> (i32, i32) {
    %c0_i32 = arith.constant 0 : i32
    %c0_i32_0 = arith.constant 0 : i32
    %c0_i32_1 = arith.constant 0 : i32
    return %c0_i32, %c0_i32_0 : i32, i32
  }
  func.func @transform_4(%arg0: i32) -> (i32, i32) {
    %c0_i32 = arith.constant 0 : i32
    %c0_i32_0 = arith.constant 0 : i32
    %c0_i32_1 = arith.constant 0 : i32
    return %c0_i32, %c0_i32_0 : i32, i32
  }
  func.func @transform_5(%arg0: i32) -> (i32, i32) {
    %c0_i32 = arith.constant 0 : i32
    %c0_i32_0 = arith.constant 0 : i32
    %c0_i32_1 = arith.constant 0 : i32
    return %c0_i32, %c0_i32_0 : i32, i32
  }
  func.func @transform_6(%arg0: i32) -> (i32, i32) {
    %c0_i32 = arith.constant 0 : i32
    %c0_i32_0 = arith.constant 0 : i32
    %c0_i32_1 = arith.constant 0 : i32
    return %c0_i32, %c0_i32_0 : i32, i32
  }
  func.func @transform_7(%arg0: i32) -> (i32, i32) {
    %c0_i32 = arith.constant 0 : i32
    %c0_i32_0 = arith.constant 0 : i32
    %c0_i32_1 = arith.constant 0 : i32
    return %c0_i32, %c0_i32_0 : i32, i32
  }
  func.func @transform_8(%arg0: i32) -> (i32, i32) {
    %c0_i32 = arith.constant 0 : i32
    %c0_i32_0 = arith.constant 0 : i32
    %c0_i32_1 = arith.constant 0 : i32
    return %c0_i32, %c0_i32_0 : i32, i32
  }
  func.func @transform_9(%arg0: i32) -> (i32, i32) {
    %c0_i32 = arith.constant 0 : i32
    %c0_i32_0 = arith.constant 0 : i32
    %c0_i32_1 = arith.constant 0 : i32
    return %c0_i32, %c0_i32_0 : i32, i32
  }
  func.func @transform_10(%arg0: i32) -> (i32, i32) {
    %c0_i32 = arith.constant 0 : i32
    %c0_i32_0 = arith.constant 0 : i32
    %c0_i32_1 = arith.constant 0 : i32
    return %c0_i32, %c0_i32_0 : i32, i32
  }
  func.func @transform_11(%arg0: i32) -> (i32, i32) {
    %c0_i32 = arith.constant 0 : i32
    %c0_i32_0 = arith.constant 0 : i32
    %c0_i32_1 = arith.constant 0 : i32
    return %c0_i32, %c0_i32_0 : i32, i32
  }
  func.func @transform_12(%arg0: i32) -> (i32, i32) {
    %c0_i32 = arith.constant 0 : i32
    %c0_i32_0 = arith.constant 0 : i32
    %c0_i32_1 = arith.constant 0 : i32
    return %c0_i32, %c0_i32_0 : i32, i32
  }
  func.func @transform_13(%arg0: i32) -> (i32, i32) {
    %c0_i32 = arith.constant 0 : i32
    %c0_i32_0 = arith.constant 0 : i32
    %c0_i32_1 = arith.constant 0 : i32
    return %c0_i32, %c0_i32_0 : i32, i32
  }
  func.func @transform_14(%arg0: i32) -> (i32, i32, i32) {
    %c0_i32 = arith.constant 0 : i32
    %c0_i32_0 = arith.constant 0 : i32
    %c0_i32_1 = arith.constant 0 : i32
    return %arg0, %c0_i32, %c0_i32_0 : i32, i32, i32
  }
}

module attributes {stable_mosaic.version = 11 : i64} {
  func.func @_pool_cls_kernel(%arg0: i32, %arg1: memref<8x128xbf16, #tpu.memory_space<vmem>>, %arg2: memref<128x128xbf16, #tpu.memory_space<vmem>>, %arg3: memref<1x128xf32, #tpu.memory_space<vmem>>, %arg4: memref<128x128xbf16, #tpu.memory_space<vmem>>, %arg5: memref<1x128xf32, #tpu.memory_space<vmem>>, %arg6: memref<8x128xf32, #tpu.memory_space<vmem>>) attributes {dimension_semantics = [#tpu.dimension_semantics<arbitrary>], iteration_bounds = array<i64: 1>, scalar_prefetch = 0 : i64, scratch_operands = 0 : i64, tpu.core_type = #tpu.core_type<tc>, window_params = [{pipeline_mode = #tpu.pipeline_mode<synchronous>, transform_indices = @transform_0, window_bounds = array<i64: 8, 128>}, {pipeline_mode = #tpu.pipeline_mode<synchronous>, transform_indices = @transform_1, window_bounds = array<i64: 128, 128>}, {pipeline_mode = #tpu.pipeline_mode<synchronous>, transform_indices = @transform_2, window_bounds = array<i64: 1, 128>}, {pipeline_mode = #tpu.pipeline_mode<synchronous>, transform_indices = @transform_3, window_bounds = array<i64: 128, 128>}, {pipeline_mode = #tpu.pipeline_mode<synchronous>, transform_indices = @transform_4, window_bounds = array<i64: 1, 128>}, {pipeline_mode = #tpu.pipeline_mode<synchronous>, transform_indices = @transform_5, window_bounds = array<i64: 8, 128>}]} {
    %c0 = arith.constant 0 : index
    %c0_0 = arith.constant 0 : index
    %0 = vector.load %arg1[%c0, %c0_0] : memref<8x128xbf16, #tpu.memory_space<vmem>>, vector<8x128xbf16>
    %c0_1 = arith.constant 0 : index
    %c0_2 = arith.constant 0 : index
    %1 = vector.load %arg2[%c0_1, %c0_2] : memref<128x128xbf16, #tpu.memory_space<vmem>>, vector<128x128xbf16>
    %cst = arith.constant dense<0.000000e+00> : vector<8x128xf32>
    %2 = tpu.matmul %0, %1, %cst {dimension_numbers = #tpu.dot_dimension_numbers<[1], [0], [0], [1], [0, 0, 1, 1], [], []>} : vector<8x128xbf16>, vector<128x128xbf16>, vector<8x128xf32> -> vector<8x128xf32>
    %c0_3 = arith.constant 0 : index
    %c0_4 = arith.constant 0 : index
    %3 = vector.load %arg3[%c0_3, %c0_4] : memref<1x128xf32, #tpu.memory_space<vmem>>, vector<1x128xf32>
    %4 = vector.broadcast %3 : vector<1x128xf32> to vector<8x128xf32>
    %5 = arith.addf %2, %4 : vector<8x128xf32>
    %6 = math.tanh %5 : vector<8x128xf32>
    %7 = arith.truncf %6 : vector<8x128xf32> to vector<8x128xbf16>
    %c0_5 = arith.constant 0 : index
    %c0_6 = arith.constant 0 : index
    %8 = vector.load %arg4[%c0_5, %c0_6] : memref<128x128xbf16, #tpu.memory_space<vmem>>, vector<128x128xbf16>
    %cst_7 = arith.constant dense<0.000000e+00> : vector<8x128xf32>
    %9 = tpu.matmul %7, %8, %cst_7 {dimension_numbers = #tpu.dot_dimension_numbers<[1], [0], [0], [1], [0, 0, 1, 1], [], []>} : vector<8x128xbf16>, vector<128x128xbf16>, vector<8x128xf32> -> vector<8x128xf32>
    %c0_8 = arith.constant 0 : index
    %c0_9 = arith.constant 0 : index
    %10 = vector.load %arg5[%c0_8, %c0_9] : memref<1x128xf32, #tpu.memory_space<vmem>>, vector<1x128xf32>
    %11 = vector.broadcast %10 : vector<1x128xf32> to vector<8x128xf32>
    %12 = arith.addf %9, %11 : vector<8x128xf32>
    %c0_10 = arith.constant 0 : index
    %c0_11 = arith.constant 0 : index
    %13 = vector.load %arg6[%c0_10, %c0_11] : memref<8x128xf32, #tpu.memory_space<vmem>>, vector<8x128xf32>
    tpu.vector_store %arg6[%c0_10, %c0_11], %12 {strides = array<i32>} : memref<8x128xf32, #tpu.memory_space<vmem>>, vector<8x128xf32>,
    return
  }
  func.func @transform_0(%arg0: i32) -> (i32, i32) {
    %c0_i32 = arith.constant 0 : i32
    %c0_i32_0 = arith.constant 0 : i32
    %c0_i32_1 = arith.constant 0 : i32
    return %c0_i32, %c0_i32_0 : i32, i32
  }
  func.func @transform_1(%arg0: i32) -> (i32, i32) {
    %c0_i32 = arith.constant 0 : i32
    %c0_i32_0 = arith.constant 0 : i32
    %c0_i32_1 = arith.constant 0 : i32
    return %c0_i32, %c0_i32_0 : i32, i32
  }
  func.func @transform_2(%arg0: i32) -> (i32, i32) {
    %c0_i32 = arith.constant 0 : i32
    %c0_i32_0 = arith.constant 0 : i32
    %c0_i32_1 = arith.constant 0 : i32
    return %c0_i32, %c0_i32_0 : i32, i32
  }
  func.func @transform_3(%arg0: i32) -> (i32, i32) {
    %c0_i32 = arith.constant 0 : i32
    %c0_i32_0 = arith.constant 0 : i32
    %c0_i32_1 = arith.constant 0 : i32
    return %c0_i32, %c0_i32_0 : i32, i32
  }
  func.func @transform_4(%arg0: i32) -> (i32, i32) {
    %c0_i32 = arith.constant 0 : i32
    %c0_i32_0 = arith.constant 0 : i32
    %c0_i32_1 = arith.constant 0 : i32
    return %c0_i32, %c0_i32_0 : i32, i32
  }
  func.func @transform_5(%arg0: i32) -> (i32, i32) {
    %c0_i32 = arith.constant 0 : i32
    %c0_i32_0 = arith.constant 0 : i32
    %c0_i32_1 = arith.constant 0 : i32
    return %c0_i32, %c0_i32_0 : i32, i32
  }
}

module attributes {stable_mosaic.version = 11 : i64} {
  func.func @_encoder_layer_kernel(%arg0: i32, %arg1: memref<1x8x128xbf16, #tpu.memory_space<vmem>>, %arg2: memref<1x1x8xf32, #tpu.memory_space<vmem>>, %arg3: memref<1x128xf32, #tpu.memory_space<vmem>>, %arg4: memref<1x128xf32, #tpu.memory_space<vmem>>, %arg5: memref<128x768xbf16, #tpu.memory_space<vmem>>, %arg6: memref<1x768xf32, #tpu.memory_space<vmem>>, %arg7: memref<256x128xbf16, #tpu.memory_space<vmem>>, %arg8: memref<1x128xf32, #tpu.memory_space<vmem>>, %arg9: memref<1x128xf32, #tpu.memory_space<vmem>>, %arg10: memref<1x128xf32, #tpu.memory_space<vmem>>, %arg11: memref<128x512xbf16, #tpu.memory_space<vmem>>, %arg12: memref<1x512xf32, #tpu.memory_space<vmem>>, %arg13: memref<512x128xbf16, #tpu.memory_space<vmem>>, %arg14: memref<1x128xf32, #tpu.memory_space<vmem>>, %arg15: memref<1x128xf32, #tpu.memory_space<vmem>>, %arg16: memref<1x128xf32, #tpu.memory_space<vmem>>, %arg17: memref<1x8x128xbf16, #tpu.memory_space<vmem>>) attributes {dimension_semantics = [#tpu.dimension_semantics<parallel>], iteration_bounds = array<i64: 2>, scalar_prefetch = 0 : i64, scratch_operands = 0 : i64, tpu.core_type = #tpu.core_type<tc>, window_params = [{transform_indices = @transform_0, window_bounds = array<i64: 1, 8, 128>}, {transform_indices = @transform_1, window_bounds = array<i64: 1, 1, 8>}, {pipeline_mode = #tpu.pipeline_mode<synchronous>, transform_indices = @transform_2, window_bounds = array<i64: 1, 128>}, {pipeline_mode = #tpu.pipeline_mode<synchronous>, transform_indices = @transform_3, window_bounds = array<i64: 1, 128>}, {pipeline_mode = #tpu.pipeline_mode<synchronous>, transform_indices = @transform_4, window_bounds = array<i64: 128, 768>}, {pipeline_mode = #tpu.pipeline_mode<synchronous>, transform_indices = @transform_5, window_bounds = array<i64: 1, 768>}, {pipeline_mode = #tpu.pipeline_mode<synchronous>, transform_indices = @transform_6, window_bounds = array<i64: 256, 128>}, {pipeline_mode = #tpu.pipeline_mode<synchronous>, transform_indices = @transform_7, window_bounds = array<i64: 1, 128>}, {pipeline_mode = #tpu.pipeline_mode<synchronous>, transform_indices = @transform_8, window_bounds = array<i64: 1, 128>}, {pipeline_mode = #tpu.pipeline_mode<synchronous>, transform_indices = @transform_9, window_bounds = array<i64: 1, 128>}, {pipeline_mode = #tpu.pipeline_mode<synchronous>, transform_indices = @transform_10, window_bounds = array<i64: 128, 512>}, {pipeline_mode = #tpu.pipeline_mode<synchronous>, transform_indices = @transform_11, window_bounds = array<i64: 1, 512>}, {pipeline_mode = #tpu.pipeline_mode<synchronous>, transform_indices = @transform_12, window_bounds = array<i64: 512, 128>}, {pipeline_mode = #tpu.pipeline_mode<synchronous>, transform_indices = @transform_13, window_bounds = array<i64: 1, 128>}, {pipeline_mode = #tpu.pipeline_mode<synchronous>, transform_indices = @transform_14, window_bounds = array<i64: 1, 128>}, {pipeline_mode = #tpu.pipeline_mode<synchronous>, transform_indices = @transform_15, window_bounds = array<i64: 1, 128>}, {transform_indices = @transform_16, window_bounds = array<i64: 1, 8, 128>}]} {
    %c0 = arith.constant 0 : index
    %c0_0 = arith.constant 0 : index
    %c0_1 = arith.constant 0 : index
    %0 = vector.load %arg1[%c0, %c0_0, %c0_1] : memref<1x8x128xbf16, #tpu.memory_space<vmem>>, vector<1x8x128xbf16>
    %1 = vector.shape_cast %0 : vector<1x8x128xbf16> to vector<8x128xbf16>
    %2 = arith.extf %1 : vector<8x128xbf16> to vector<8x128xf32>
    %c0_2 = arith.constant 0 : index
    %c0_3 = arith.constant 0 : index
    %c0_4 = arith.constant 0 : index
    %3 = vector.load %arg2[%c0_2, %c0_3, %c0_4] : memref<1x1x8xf32, #tpu.memory_space<vmem>>, vector<1x1x8xf32>
    %4 = vector.shape_cast %3 : vector<1x1x8xf32> to vector<1x8xf32>
    %c0_5 = arith.constant 0 : index
    %c0_6 = arith.constant 0 : index
    %5 = vector.load %arg3[%c0_5, %c0_6] : memref<1x128xf32, #tpu.memory_space<vmem>>, vector<1x128xf32>
    %c0_7 = arith.constant 0 : index
    %c0_8 = arith.constant 0 : index
    %6 = vector.load %arg4[%c0_7, %c0_8] : memref<1x128xf32, #tpu.memory_space<vmem>>, vector<1x128xf32>
    %cst = arith.constant dense<0.000000e+00> : vector<8xf32>
    %7 = vector.multi_reduction <add>, %2, %cst [1] : vector<8x128xf32> to vector<8xf32>
    %8 = vector.shape_cast %7 : vector<8xf32> to vector<8x1xf32>
    %cst_9 = arith.constant 1.280000e+02 : f32
    %9 = vector.broadcast %cst_9 : f32 to vector<8x1xf32>
    %10 = arith.divf %8, %9 : vector<8x1xf32>
    %11 = vector.broadcast %10 : vector<8x1xf32> to vector<8x128xf32>
    %12 = arith.subf %2, %11 : vector<8x128xf32>
    %13 = arith.mulf %12, %12 : vector<8x128xf32>
    %cst_10 = arith.constant dense<0.000000e+00> : vector<8xf32>
    %14 = vector.multi_reduction <add>, %13, %cst_10 [1] : vector<8x128xf32> to vector<8xf32>
    %15 = vector.shape_cast %14 : vector<8xf32> to vector<8x1xf32>
    %cst_11 = arith.constant 1.280000e+02 : f32
    %16 = vector.broadcast %cst_11 : f32 to vector<8x1xf32>
    %17 = arith.divf %15, %16 : vector<8x1xf32>
    %18 = vector.broadcast %10 : vector<8x1xf32> to vector<8x128xf32>
    %19 = arith.subf %2, %18 : vector<8x128xf32>
    %cst_12 = arith.constant 9.99999996E-13 : f32
    %20 = vector.broadcast %cst_12 : f32 to vector<8x1xf32>
    %21 = arith.addf %17, %20 : vector<8x1xf32>
    %22 = math.rsqrt %21 : vector<8x1xf32>
    %23 = vector.broadcast %22 : vector<8x1xf32> to vector<8x128xf32>
    %24 = arith.mulf %19, %23 : vector<8x128xf32>
    %25 = vector.broadcast %5 : vector<1x128xf32> to vector<8x128xf32>
    %26 = arith.mulf %24, %25 : vector<8x128xf32>
    %27 = vector.broadcast %6 : vector<1x128xf32> to vector<8x128xf32>
    %28 = arith.addf %26, %27 : vector<8x128xf32>
    %29 = arith.truncf %28 : vector<8x128xf32> to vector<8x128xbf16>
    %c0_13 = arith.constant 0 : index
    %c0_14 = arith.constant 0 : index
    %30 = vector.load %arg5[%c0_13, %c0_14] : memref<128x768xbf16, #tpu.memory_space<vmem>>, vector<128x768xbf16>
    %cst_15 = arith.constant dense<0.000000e+00> : vector<8x768xf32>
    %31 = tpu.matmul %29, %30, %cst_15 {dimension_numbers = #tpu.dot_dimension_numbers<[1], [0], [0], [1], [0, 0, 1, 1], [], []>} : vector<8x128xbf16>, vector<128x768xbf16>, vector<8x768xf32> -> vector<8x768xf32>
    %c0_16 = arith.constant 0 : index
    %c0_17 = arith.constant 0 : index
    %32 = vector.load %arg6[%c0_16, %c0_17] : memref<1x768xf32, #tpu.memory_space<vmem>>, vector<1x768xf32>
    %33 = vector.broadcast %32 : vector<1x768xf32> to vector<8x768xf32>
    %34 = arith.addf %31, %33 : vector<8x768xf32>
    %35 = vector.extract_strided_slice %34 {offsets = [0, 0], sizes = [8, 128], strides = [1, 1]} : vector<8x768xf32> to vector<8x128xf32>
    %36 = arith.truncf %35 : vector<8x128xf32> to vector<8x128xbf16>
    %37 = vector.extract_strided_slice %34 {offsets = [0, 256], sizes = [8, 128], strides = [1, 1]} : vector<8x768xf32> to vector<8x128xf32>
    %38 = arith.truncf %37 : vector<8x128xf32> to vector<8x128xbf16>
    %39 = vector.extract_strided_slice %34 {offsets = [0, 512], sizes = [8, 128], strides = [1, 1]} : vector<8x768xf32> to vector<8x128xf32>
    %40 = arith.truncf %39 : vector<8x128xf32> to vector<8x128xbf16>
    %cst_18 = arith.constant dense<0.000000e+00> : vector<8x8xf32>
    %41 = tpu.matmul %36, %38, %cst_18 {dimension_numbers = #tpu.dot_dimension_numbers<[1], [1], [0], [0], [0, 0, 1, 0], [], []>} : vector<8x128xbf16>, vector<8x128xbf16>, vector<8x8xf32> -> vector<8x8xf32>
    %cst_19 = arith.constant 1.250000e-01 : f32
    %42 = vector.broadcast %cst_19 : f32 to vector<8x8xf32>
    %43 = arith.mulf %41, %42 : vector<8x8xf32>
    %44 = vector.broadcast %4 : vector<1x8xf32> to vector<8x8xf32>
    %45 = arith.addf %43, %44 : vector<8x8xf32>
    %cst_20 = arith.constant dense<0xFF800000> : vector<8xf32>
    %46 = vector.multi_reduction <maximumf>, %45, %cst_20 [1] : vector<8x8xf32> to vector<8xf32>
    %47 = vector.shape_cast %46 : vector<8xf32> to vector<8x1xf32>
    %48 = vector.broadcast %47 : vector<8x1xf32> to vector<8x8xf32>
    %49 = arith.subf %45, %48 : vector<8x8xf32>
    %50 = math.exp %49 : vector<8x8xf32>
    %cst_21 = arith.constant dense<0.000000e+00> : vector<8xf32>
    %51 = vector.multi_reduction <add>, %50, %cst_21 [1] : vector<8x8xf32> to vector<8xf32>
    %52 = vector.shape_cast %51 : vector<8xf32> to vector<8x1xf32>
    %53 = tpu.reciprocal %52 {approx = true} : vector<8x1xf32> -> vector<8x1xf32>
    %54 = vector.broadcast %53 : vector<8x1xf32> to vector<8x8xf32>
    %55 = arith.mulf %50, %54 : vector<8x8xf32>
    %56 = arith.truncf %55 : vector<8x8xf32> to vector<8x8xbf16>
    %cst_22 = arith.constant dense<0.000000e+00> : vector<8x128xf32>
    %57 = tpu.matmul %56, %40, %cst_22 {dimension_numbers = #tpu.dot_dimension_numbers<[1], [0], [0], [1], [0, 0, 1, 1], [], []>} : vector<8x8xbf16>, vector<8x128xbf16>, vector<8x128xf32> -> vector<8x128xf32>
    %58 = vector.extract_strided_slice %34 {offsets = [0, 128], sizes = [8, 128], strides = [1, 1]} : vector<8x768xf32> to vector<8x128xf32>
    %59 = arith.truncf %58 : vector<8x128xf32> to vector<8x128xbf16>
    %60 = vector.extract_strided_slice %34 {offsets = [0, 384], sizes = [8, 128], strides = [1, 1]} : vector<8x768xf32> to vector<8x128xf32>
    %61 = arith.truncf %60 : vector<8x128xf32> to vector<8x128xbf16>
    %62 = vector.extract_strided_slice %34 {offsets = [0, 640], sizes = [8, 128], strides = [1, 1]} : vector<8x768xf32> to vector<8x128xf32>
    %63 = arith.truncf %62 : vector<8x128xf32> to vector<8x128xbf16>
    %cst_23 = arith.constant dense<0.000000e+00> : vector<8x8xf32>
    %64 = tpu.matmul %59, %61, %cst_23 {dimension_numbers = #tpu.dot_dimension_numbers<[1], [1], [0], [0], [0, 0, 1, 0], [], []>} : vector<8x128xbf16>, vector<8x128xbf16>, vector<8x8xf32> -> vector<8x8xf32>
    %cst_24 = arith.constant 1.250000e-01 : f32
    %65 = vector.broadcast %cst_24 : f32 to vector<8x8xf32>
    %66 = arith.mulf %64, %65 : vector<8x8xf32>
    %67 = vector.broadcast %4 : vector<1x8xf32> to vector<8x8xf32>
    %68 = arith.addf %66, %67 : vector<8x8xf32>
    %cst_25 = arith.constant dense<0xFF800000> : vector<8xf32>
    %69 = vector.multi_reduction <maximumf>, %68, %cst_25 [1] : vector<8x8xf32> to vector<8xf32>
    %70 = vector.shape_cast %69 : vector<8xf32> to vector<8x1xf32>
    %71 = vector.broadcast %70 : vector<8x1xf32> to vector<8x8xf32>
    %72 = arith.subf %68, %71 : vector<8x8xf32>
    %73 = math.exp %72 : vector<8x8xf32>
    %cst_26 = arith.constant dense<0.000000e+00> : vector<8xf32>
    %74 = vector.multi_reduction <add>, %73, %cst_26 [1] : vector<8x8xf32> to vector<8xf32>
    %75 = vector.shape_cast %74 : vector<8xf32> to vector<8x1xf32>
    %76 = tpu.reciprocal %75 {approx = true} : vector<8x1xf32> -> vector<8x1xf32>
    %77 = vector.broadcast %76 : vector<8x1xf32> to vector<8x8xf32>
    %78 = arith.mulf %73, %77 : vector<8x8xf32>
    %79 = arith.truncf %78 : vector<8x8xf32> to vector<8x8xbf16>
    %cst_27 = arith.constant dense<0.000000e+00> : vector<8x128xf32>
    %80 = tpu.matmul %79, %63, %cst_27 {dimension_numbers = #tpu.dot_dimension_numbers<[1], [0], [0], [1], [0, 0, 1, 1], [], []>} : vector<8x8xbf16>, vector<8x128xbf16>, vector<8x128xf32> -> vector<8x128xf32>
    %81 = tpu.concatenate %57, %80 in 1 : vector<8x128xf32>, vector<8x128xf32> -> vector<8x256xf32>
    %82 = arith.truncf %81 : vector<8x256xf32> to vector<8x256xbf16>
    %c0_28 = arith.constant 0 : index
    %c0_29 = arith.constant 0 : index
    %83 = vector.load %arg7[%c0_28, %c0_29] : memref<256x128xbf16, #tpu.memory_space<vmem>>, vector<256x128xbf16>
    %cst_30 = arith.constant dense<0.000000e+00> : vector<8x128xf32>
    %84 = tpu.matmul %82, %83, %cst_30 {dimension_numbers = #tpu.dot_dimension_numbers<[1], [0], [0], [1], [0, 0, 1, 1], [], []>} : vector<8x256xbf16>, vector<256x128xbf16>, vector<8x128xf32> -> vector<8x128xf32>
    %85 = arith.addf %28, %84 : vector<8x128xf32>
    %c0_31 = arith.constant 0 : index
    %c0_32 = arith.constant 0 : index
    %86 = vector.load %arg8[%c0_31, %c0_32] : memref<1x128xf32, #tpu.memory_space<vmem>>, vector<1x128xf32>
    %87 = vector.broadcast %86 : vector<1x128xf32> to vector<8x128xf32>
    %88 = arith.addf %85, %87 : vector<8x128xf32>
    %c0_33 = arith.constant 0 : index
    %c0_34 = arith.constant 0 : index
    %89 = vector.load %arg9[%c0_33, %c0_34] : memref<1x128xf32, #tpu.memory_space<vmem>>, vector<1x128xf32>
    %c0_35 = arith.constant 0 : index
    %c0_36 = arith.constant 0 : index
    %90 = vector.load %arg10[%c0_35, %c0_36] : memref<1x128xf32, #tpu.memory_space<vmem>>, vector<1x128xf32>
    %cst_37 = arith.constant dense<0.000000e+00> : vector<8xf32>
    %91 = vector.multi_reduction <add>, %88, %cst_37 [1] : vector<8x128xf32> to vector<8xf32>
    %92 = vector.shape_cast %91 : vector<8xf32> to vector<8x1xf32>
    %cst_38 = arith.constant 1.280000e+02 : f32
    %93 = vector.broadcast %cst_38 : f32 to vector<8x1xf32>
    %94 = arith.divf %92, %93 : vector<8x1xf32>
    %95 = vector.broadcast %94 : vector<8x1xf32> to vector<8x128xf32>
    %96 = arith.subf %88, %95 : vector<8x128xf32>
    %97 = arith.mulf %96, %96 : vector<8x128xf32>
    %cst_39 = arith.constant dense<0.000000e+00> : vector<8xf32>
    %98 = vector.multi_reduction <add>, %97, %cst_39 [1] : vector<8x128xf32> to vector<8xf32>
    %99 = vector.shape_cast %98 : vector<8xf32> to vector<8x1xf32>
    %cst_40 = arith.constant 1.280000e+02 : f32
    %100 = vector.broadcast %cst_40 : f32 to vector<8x1xf32>
    %101 = arith.divf %99, %100 : vector<8x1xf32>
    %102 = vector.broadcast %94 : vector<8x1xf32> to vector<8x128xf32>
    %103 = arith.subf %88, %102 : vector<8x128xf32>
    %cst_41 = arith.constant 9.99999996E-13 : f32
    %104 = vector.broadcast %cst_41 : f32 to vector<8x1xf32>
    %105 = arith.addf %101, %104 : vector<8x1xf32>
    %106 = math.rsqrt %105 : vector<8x1xf32>
    %107 = vector.broadcast %106 : vector<8x1xf32> to vector<8x128xf32>
    %108 = arith.mulf %103, %107 : vector<8x128xf32>
    %109 = vector.broadcast %89 : vector<1x128xf32> to vector<8x128xf32>
    %110 = arith.mulf %108, %109 : vector<8x128xf32>
    %111 = vector.broadcast %90 : vector<1x128xf32> to vector<8x128xf32>
    %112 = arith.addf %110, %111 : vector<8x128xf32>
    %113 = arith.truncf %112 : vector<8x128xf32> to vector<8x128xbf16>
    %c0_42 = arith.constant 0 : index
    %c0_43 = arith.constant 0 : index
    %114 = vector.load %arg11[%c0_42, %c0_43] : memref<128x512xbf16, #tpu.memory_space<vmem>>, vector<128x512xbf16>
    %cst_44 = arith.constant dense<0.000000e+00> : vector<8x512xf32>
    %115 = tpu.matmul %113, %114, %cst_44 {dimension_numbers = #tpu.dot_dimension_numbers<[1], [0], [0], [1], [0, 0, 1, 1], [], []>} : vector<8x128xbf16>, vector<128x512xbf16>, vector<8x512xf32> -> vector<8x512xf32>
    %c0_45 = arith.constant 0 : index
    %c0_46 = arith.constant 0 : index
    %116 = vector.load %arg12[%c0_45, %c0_46] : memref<1x512xf32, #tpu.memory_space<vmem>>, vector<1x512xf32>
    %117 = vector.broadcast %116 : vector<1x512xf32> to vector<8x512xf32>
    %118 = arith.addf %115, %117 : vector<8x512xf32>
    %cst_47 = arith.constant 5.000000e-01 : f32
    %119 = vector.broadcast %cst_47 : f32 to vector<8x512xf32>
    %120 = arith.mulf %119, %118 : vector<8x512xf32>
    %cst_48 = arith.constant 4.471500e-02 : f32
    %121 = vector.broadcast %cst_48 : f32 to vector<8x512xf32>
    %122 = arith.mulf %121, %118 : vector<8x512xf32>
    %123 = arith.mulf %122, %118 : vector<8x512xf32>
    %124 = arith.mulf %123, %118 : vector<8x512xf32>
    %125 = arith.addf %118, %124 : vector<8x512xf32>
    %cst_49 = arith.constant 0.797884583 : f32
    %126 = vector.broadcast %cst_49 : f32 to vector<8x512xf32>
    %127 = arith.mulf %126, %125 : vector<8x512xf32>
    %128 = math.tanh %127 : vector<8x512xf32>
    %cst_50 = arith.constant 1.000000e+00 : f32
    %129 = vector.broadcast %cst_50 : f32 to vector<8x512xf32>
    %130 = arith.addf %129, %128 : vector<8x512xf32>
    %131 = arith.mulf %120, %130 : vector<8x512xf32>
    %132 = arith.truncf %131 : vector<8x512xf32> to vector<8x512xbf16>
    %c0_51 = arith.constant 0 : index
    %c0_52 = arith.constant 0 : index
    %133 = vector.load %arg13[%c0_51, %c0_52] : memref<512x128xbf16, #tpu.memory_space<vmem>>, vector<512x128xbf16>
    %cst_53 = arith.constant dense<0.000000e+00> : vector<8x128xf32>
    %134 = tpu.matmul %132, %133, %cst_53 {dimension_numbers = #tpu.dot_dimension_numbers<[1], [0], [0], [1], [0, 0, 1, 1], [], []>} : vector<8x512xbf16>, vector<512x128xbf16>, vector<8x128xf32> -> vector<8x128xf32>
    %135 = arith.addf %112, %134 : vector<8x128xf32>
    %c0_54 = arith.constant 0 : index
    %c0_55 = arith.constant 0 : index
    %136 = vector.load %arg14[%c0_54, %c0_55] : memref<1x128xf32, #tpu.memory_space<vmem>>, vector<1x128xf32>
    %137 = vector.broadcast %136 : vector<1x128xf32> to vector<8x128xf32>
    %138 = arith.addf %135, %137 : vector<8x128xf32>
    %c0_56 = arith.constant 0 : index
    %c0_57 = arith.constant 0 : index
    %139 = vector.load %arg15[%c0_56, %c0_57] : memref<1x128xf32, #tpu.memory_space<vmem>>, vector<1x128xf32>
    %c0_58 = arith.constant 0 : index
    %c0_59 = arith.constant 0 : index
    %140 = vector.load %arg16[%c0_58, %c0_59] : memref<1x128xf32, #tpu.memory_space<vmem>>, vector<1x128xf32>
    %cst_60 = arith.constant dense<0.000000e+00> : vector<8xf32>
    %141 = vector.multi_reduction <add>, %138, %cst_60 [1] : vector<8x128xf32> to vector<8xf32>
    %142 = vector.shape_cast %141 : vector<8xf32> to vector<8x1xf32>
    %cst_61 = arith.constant 1.280000e+02 : f32
    %143 = vector.broadcast %cst_61 : f32 to vector<8x1xf32>
    %144 = arith.divf %142, %143 : vector<8x1xf32>
    %145 = vector.broadcast %144 : vector<8x1xf32> to vector<8x128xf32>
    %146 = arith.subf %138, %145 : vector<8x128xf32>
    %147 = arith.mulf %146, %146 : vector<8x128xf32>
    %cst_62 = arith.constant dense<0.000000e+00> : vector<8xf32>
    %148 = vector.multi_reduction <add>, %147, %cst_62 [1] : vector<8x128xf32> to vector<8xf32>
    %149 = vector.shape_cast %148 : vector<8xf32> to vector<8x1xf32>
    %cst_63 = arith.constant 1.280000e+02 : f32
    %150 = vector.broadcast %cst_63 : f32 to vector<8x1xf32>
    %151 = arith.divf %149, %150 : vector<8x1xf32>
    %152 = vector.broadcast %144 : vector<8x1xf32> to vector<8x128xf32>
    %153 = arith.subf %138, %152 : vector<8x128xf32>
    %cst_64 = arith.constant 9.99999996E-13 : f32
    %154 = vector.broadcast %cst_64 : f32 to vector<8x1xf32>
    %155 = arith.addf %151, %154 : vector<8x1xf32>
    %156 = math.rsqrt %155 : vector<8x1xf32>
    %157 = vector.broadcast %156 : vector<8x1xf32> to vector<8x128xf32>
    %158 = arith.mulf %153, %157 : vector<8x128xf32>
    %159 = vector.broadcast %139 : vector<1x128xf32> to vector<8x128xf32>
    %160 = arith.mulf %158, %159 : vector<8x128xf32>
    %161 = vector.broadcast %140 : vector<1x128xf32> to vector<8x128xf32>
    %162 = arith.addf %160, %161 : vector<8x128xf32>
    %163 = arith.truncf %162 : vector<8x128xf32> to vector<8x128xbf16>
    %c0_65 = arith.constant 0 : index
    %c0_66 = arith.constant 0 : index
    %c0_67 = arith.constant 0 : index
    %164 = vector.load %arg17[%c0_65, %c0_66, %c0_67] : memref<1x8x128xbf16, #tpu.memory_space<vmem>>, vector<1x8x128xbf16>
    %165 = vector.shape_cast %164 : vector<1x8x128xbf16> to vector<8x128xbf16>
    %166 = vector.shape_cast %163 : vector<8x128xbf16> to vector<1x8x128xbf16>
    tpu.vector_store %arg17[%c0_65, %c0_66, %c0_67], %166 {strides = array<i32>} : memref<1x8x128xbf16, #tpu.memory_space<vmem>>, vector<1x8x128xbf16>,
    return
  }
  func.func @transform_0(%arg0: i32) -> (i32, i32, i32) {
    %c0_i32 = arith.constant 0 : i32
    %c0_i32_0 = arith.constant 0 : i32
    %c0_i32_1 = arith.constant 0 : i32
    return %arg0, %c0_i32, %c0_i32_0 : i32, i32, i32
  }
  func.func @transform_1(%arg0: i32) -> (i32, i32, i32) {
    %c0_i32 = arith.constant 0 : i32
    %c0_i32_0 = arith.constant 0 : i32
    %c0_i32_1 = arith.constant 0 : i32
    return %arg0, %c0_i32, %c0_i32_0 : i32, i32, i32
  }
  func.func @transform_2(%arg0: i32) -> (i32, i32) {
    %c0_i32 = arith.constant 0 : i32
    %c0_i32_0 = arith.constant 0 : i32
    %c0_i32_1 = arith.constant 0 : i32
    return %c0_i32, %c0_i32_0 : i32, i32
  }
  func.func @transform_3(%arg0: i32) -> (i32, i32) {
    %c0_i32 = arith.constant 0 : i32
    %c0_i32_0 = arith.constant 0 : i32
    %c0_i32_1 = arith.constant 0 : i32
    return %c0_i32, %c0_i32_0 : i32, i32
  }
  func.func @transform_4(%arg0: i32) -> (i32, i32) {
    %c0_i32 = arith.constant 0 : i32
    %c0_i32_0 = arith.constant 0 : i32
    %c0_i32_1 = arith.constant 0 : i32
    return %c0_i32, %c0_i32_0 : i32, i32
  }
  func.func @transform_5(%arg0: i32) -> (i32, i32) {
    %c0_i32 = arith.constant 0 : i32
    %c0_i32_0 = arith.constant 0 : i32
    %c0_i32_1 = arith.constant 0 : i32
    return %c0_i32, %c0_i32_0 : i32, i32
  }
  func.func @transform_6(%arg0: i32) -> (i32, i32) {
    %c0_i32 = arith.constant 0 : i32
    %c0_i32_0 = arith.constant 0 : i32
    %c0_i32_1 = arith.constant 0 : i32
    return %c0_i32, %c0_i32_0 : i32, i32
  }
  func.func @transform_7(%arg0: i32) -> (i32, i32) {
    %c0_i32 = arith.constant 0 : i32
    %c0_i32_0 = arith.constant 0 : i32
    %c0_i32_1 = arith.constant 0 : i32
    return %c0_i32, %c0_i32_0 : i32, i32
  }
  func.func @transform_8(%arg0: i32) -> (i32, i32) {
    %c0_i32 = arith.constant 0 : i32
    %c0_i32_0 = arith.constant 0 : i32
    %c0_i32_1 = arith.constant 0 : i32
    return %c0_i32, %c0_i32_0 : i32, i32
  }
  func.func @transform_9(%arg0: i32) -> (i32, i32) {
    %c0_i32 = arith.constant 0 : i32
    %c0_i32_0 = arith.constant 0 : i32
    %c0_i32_1 = arith.constant 0 : i32
    return %c0_i32, %c0_i32_0 : i32, i32
  }
  func.func @transform_10(%arg0: i32) -> (i32, i32) {
    %c0_i32 = arith.constant 0 : i32
    %c0_i32_0 = arith.constant 0 : i32
    %c0_i32_1 = arith.constant 0 : i32
    return %c0_i32, %c0_i32_0 : i32, i32
  }
  func.func @transform_11(%arg0: i32) -> (i32, i32) {
    %c0_i32 = arith.constant 0 : i32
    %c0_i32_0 = arith.constant 0 : i32
    %c0_i32_1 = arith.constant 0 : i32
    return %c0_i32, %c0_i32_0 : i32, i32
  }
  func.func @transform_12(%arg0: i32) -> (i32, i32) {
    %c0_i32 = arith.constant 0 : i32
    %c0_i32_0 = arith.constant 0 : i32
    %c0_i32_1 = arith.constant 0 : i32
    return %c0_i32, %c0_i32_0 : i32, i32
  }
  func.func @transform_13(%arg0: i32) -> (i32, i32) {
    %c0_i32 = arith.constant 0 : i32
    %c0_i32_0 = arith.constant 0 : i32
    %c0_i32_1 = arith.constant 0 : i32
    return %c0_i32, %c0_i32_0 : i32, i32
  }
  func.func @transform_14(%arg0: i32) -> (i32, i32) {
    %c0_i32 = arith.constant 0 : i32
    %c0_i32_0 = arith.constant 0 : i32
    %c0_i32_1 = arith.constant 0 : i32
    return %c0_i32, %c0_i32_0 : i32, i32
  }
  func.func @transform_15(%arg0: i32) -> (i32, i32) {
    %c0_i32 = arith.constant 0 : i32
    %c0_i32_0 = arith.constant 0 : i32
    %c0_i32_1 = arith.constant 0 : i32
    return %c0_i32, %c0_i32_0 : i32, i32
  }
  func.func @transform_16(%arg0: i32) -> (i32, i32, i32) {
    %c0_i32 = arith.constant 0 : i32
    %c0_i32_0 = arith.constant 0 : i32
    %c0_i32_1 = arith.constant 0 : i32
    return %arg0, %c0_i32, %c0_i32_0 : i32, i32, i32
  }
}

</mosaic_0001>

<llo_original>
// kernel: bert_classifier_forward.5
$region0: #{bert_classifier_forward.5}
  #allocation0 [shape = 'u32[]', space=smem, size = 0x4, offset = 0x4, fixed_abs, tag = 'smem constant byte address 0x4 - core index']
  #allocation1 [shape = 'u32[72,128]{1,0:T(1,128)}', space=vmem, size = 0x9000, scoped, tag = 'internal scratch']
  %s0 = inlined_call_operand.vmem [shape: bf16[8,128], index: 0, kind: input, shape index: {}]
  %s1 = inlined_call_operand.vmem [shape: bf16[128,128], index: 1, kind: input, shape index: {}]
  %s2 = inlined_call_operand.vmem [shape: f32[1,128], index: 2, kind: input, shape index: {}]
  %s3 = inlined_call_operand.vmem [shape: bf16[128,128], index: 3, kind: input, shape index: {}]
  %s4 = inlined_call_operand.vmem [shape: f32[1,128], index: 4, kind: input, shape index: {}]
  %s5 = inlined_call_operand.vmem [shape: f32[8,128], index: 5, kind: output, shape index: {}]
  %s6 = sld [smem:[#allocation0]]
  $region30: #{bert_classifier_forward.5} parent=0
    _
  %s8 = ssub.s32 1, %s6
  %s9 = scalar_select 0, %s8, %s6
  // Predicated region
  $region2: #{bert_classifier_forward.5} parent=0 // pred_check
    _
  $region3: #{bert_classifier_forward.5} parent=0 // pred_check_branch
    %11 = sbr.rel (0) target = $region5
  $region4: #{bert_classifier_forward.5} parent=0 // pred_region
    _
  $region5: #{bert_classifier_forward.5} parent=0 // pred_fallthru
    _
  // Predicated region
  $region6: #{bert_classifier_forward.5} parent=0 // pred_check
    _
  $region7: #{bert_classifier_forward.5} parent=0 // pred_check_branch
    %13 = sbr.rel (0) target = $region9
  $region8: #{bert_classifier_forward.5} parent=0 // pred_region
    _
  $region9: #{bert_classifier_forward.5} parent=0 // pred_fallthru
    _
  // Predicated region
  $region10: #{bert_classifier_forward.5} parent=0 // pred_check
    _
  $region11: #{bert_classifier_forward.5} parent=0 // pred_check_branch
    %15 = sbr.rel (0) target = $region13
  $region12: #{bert_classifier_forward.5} parent=0 // pred_region
    _
  $region13: #{bert_classifier_forward.5} parent=0 // pred_fallthru
    _
  // Predicated region
  $region14: #{bert_classifier_forward.5} parent=0 // pred_check
    _
  $region15: #{bert_classifier_forward.5} parent=0 // pred_check_branch
    %17 = sbr.rel (0) target = $region17
  $region16: #{bert_classifier_forward.5} parent=0 // pred_region
    _
  $region17: #{bert_classifier_forward.5} parent=0 // pred_fallthru
    _
  // Predicated region
  $region18: #{bert_classifier_forward.5} parent=0 // pred_check
    _
  $region19: #{bert_classifier_forward.5} parent=0 // pred_check_branch
    %19 = sbr.rel (0) target = $region21
  $region20: #{bert_classifier_forward.5} parent=0 // pred_region
    _
  $region21: #{bert_classifier_forward.5} parent=0 // pred_fallthru
    _
  %v20 = vld [vmem:[%s0] sm:$0xf]
  %v21 = vld [vmem:[%s1] sm:$0xf]
  %v22 = vld [vmem:[%s1 + $0x4] sm:$0xf]
  %v23 = vld [vmem:[%s1 + $0x8] sm:$0xf]
  %v24 = vld [vmem:[%s1 + $0xc] sm:$0xf]
  %v25 = vld [vmem:[%s1 + $0x10] sm:$0xf]
  %v26 = vld [vmem:[%s1 + $0x14] sm:$0xf]
  %v27 = vld [vmem:[%s1 + $0x18] sm:$0xf]
  %v28 = vld [vmem:[%s1 + $0x1c] sm:$0xf]
  %v29 = vld [vmem:[%s1 + $0x20] sm:$0xf]
  %v30 = vld [vmem:[%s1 + $0x24] sm:$0xf]
  %v31 = vld [vmem:[%s1 + $0x28] sm:$0xf]
  %v32 = vld [vmem:[%s1 + $0x2c] sm:$0xf]
  %v33 = vld [vmem:[%s1 + $0x30] sm:$0xf]
  %v34 = vld [vmem:[%s1 + $0x34] sm:$0xf]
  %v35 = vld [vmem:[%s1 + $0x38] sm:$0xf]
  %v36 = vld [vmem:[%s1 + $0x3c] sm:$0xf]
  %v37 = vld [vmem:[%s2] sm:$0x1]
  %v39 = vperm.slane %v37, 0
  %v57 = vunpack.c.l.b16 %v21
  %v58 = vunpack.c.l.b16 %v22
  %v59 = vunpack.c.l.b16 %v23
  %v60 = vunpack.c.l.b16 %v24
  %v61 = vunpack.c.l.b16 %v25
  %v62 = vunpack.c.l.b16 %v26
  %v63 = vunpack.c.l.b16 %v27
  %v64 = vunpack.c.l.b16 %v28
  %v65 = vunpack.c.l.b16 %v29
  %v66 = vunpack.c.l.b16 %v30
  %v67 = vunpack.c.l.b16 %v31
  %v68 = vunpack.c.l.b16 %v32
  %v69 = vunpack.c.l.b16 %v33
  %v70 = vunpack.c.l.b16 %v34
  %v71 = vunpack.c.l.b16 %v35
  %v72 = vunpack.c.l.b16 %v36
  %v73 = vpack.c.b16 %v58, %v57
  %v74 = vpack.c.b16 %v60, %v59
  %v75 = vpack.c.b16 %v62, %v61
  %v76 = vpack.c.b16 %v64, %v63
  %v77 = vpack.c.b16 %v66, %v65
  %v78 = vpack.c.b16 %v68, %v67
  %v79 = vpack.c.b16 %v70, %v69
  %v80 = vpack.c.b16 %v72, %v71
  %89 = vmatpush.bf16.msra.mxu0 %v80
  %90 = vmatpush.bf16.msra.mxu0 %v79
  %91 = vmatpush.bf16.msra.mxu0 %v78
  %92 = vmatpush.bf16.msra.mxu0 %v77
  %93 = vmatpush.bf16.msra.mxu0 %v76
  %94 = vmatpush.bf16.msra.mxu0 %v75
  %95 = vmatpush.bf16.msra.mxu0 %v74
  %96 = vmatpush.bf16.msra.mxu0 %v73
  %97 = vmatmul.bf16.gmra.mxu0 %v20
  %v98 = vpop.f32.mrf.mxu0
  %v99 = vadd.f32 %v39, %v98
  %v100 = vpop.f32.mrf.mxu0
  %101 = vdwg.mxu0
  %v102 = vtanh.pop %v99
  %v103 = vpack.c.bf16 %v102, %v102
  %v104 = vld [vmem:[%s3] sm:$0xf]
  %v105 = vld [vmem:[%s3 + $0x4] sm:$0xf]
  %v106 = vld [vmem:[%s3 + $0x8] sm:$0xf]
  %v107 = vld [vmem:[%s3 + $0xc] sm:$0xf]
  %v108 = vld [vmem:[%s3 + $0x10] sm:$0xf]
  %v109 = vld [vmem:[%s3 + $0x14] sm:$0xf]
  %v110 = vld [vmem:[%s3 + $0x18] sm:$0xf]
  %v111 = vld [vmem:[%s3 + $0x1c] sm:$0xf]
  %v112 = vld [vmem:[%s3 + $0x20] sm:$0xf]
  %v113 = vld [vmem:[%s3 + $0x24] sm:$0xf]
  %v114 = vld [vmem:[%s3 + $0x28] sm:$0xf]
  %v115 = vld [vmem:[%s3 + $0x2c] sm:$0xf]
  %v116 = vld [vmem:[%s3 + $0x30] sm:$0xf]
  %v117 = vld [vmem:[%s3 + $0x34] sm:$0xf]
  %v118 = vld [vmem:[%s3 + $0x38] sm:$0xf]
  %v119 = vld [vmem:[%s3 + $0x3c] sm:$0xf]
  %v120 = vld [vmem:[%s4] sm:$0x1]
  %v122 = vperm.slane %v120, 0
  %v140 = vunpack.c.l.b16 %v104
  %v141 = vunpack.c.l.b16 %v105
  %v142 = vunpack.c.l.b16 %v106
  %v143 = vunpack.c.l.b16 %v107
  %v144 = vunpack.c.l.b16 %v108
  %v145 = vunpack.c.l.b16 %v109
  %v146 = vunpack.c.l.b16 %v110
  %v147 = vunpack.c.l.b16 %v111
  %v148 = vunpack.c.l.b16 %v112
  %v149 = vunpack.c.l.b16 %v113
  %v150 = vunpack.c.l.b16 %v114
  %v151 = vunpack.c.l.b16 %v115
  %v152 = vunpack.c.l.b16 %v116
  %v153 = vunpack.c.l.b16 %v117
  %v154 = vunpack.c.l.b16 %v118
  %v155 = vunpack.c.l.b16 %v119
  %v156 = vpack.c.b16 %v141, %v140
  %v157 = vpack.c.b16 %v143, %v142
  %v158 = vpack.c.b16 %v145, %v144
  %v159 = vpack.c.b16 %v147, %v146
  %v160 = vpack.c.b16 %v149, %v148
  %v161 = vpack.c.b16 %v151, %v150
  %v162 = vpack.c.b16 %v153, %v152
  %v163 = vpack.c.b16 %v155, %v154
  %172 = vmatpush.bf16.msra.mxu0 %v163
  %173 = vmatpush.bf16.msra.mxu0 %v162
  %174 = vmatpush.bf16.msra.mxu0 %v161
  %175 = vmatpush.bf16.msra.mxu0 %v160
  %176 = vmatpush.bf16.msra.mxu0 %v159
  %177 = vmatpush.bf16.msra.mxu0 %v158
  %178 = vmatpush.bf16.msra.mxu0 %v157
  %179 = vmatpush.bf16.msra.mxu0 %v156
  %180 = vmatmul.bf16.gmra.mxu0 %v103
  %v181 = vpop.f32.mrf.mxu0
  %v182 = vadd.f32 %v122, %v181
  %v183 = vpop.f32.mrf.mxu0
  %184 = vdwg.mxu0
  %185 = vst [vmem:[%s5] sm:$0xff] %v182
  // Predicated region
  $region22: #{bert_classifier_forward.5} parent=0 // pred_check
    _
  $region23: #{bert_classifier_forward.5} parent=0 // pred_check_branch
    %187 = sbr.rel (0) target = $region25
  $region24: #{bert_classifier_forward.5} parent=0 // pred_region
    _
  $region25: #{bert_classifier_forward.5} parent=0 // pred_fallthru
    _
  // Predicated region
  $region26: #{bert_classifier_forward.5} parent=0 // pred_check
    _
  $region27: #{bert_classifier_forward.5} parent=0 // pred_check_branch
    %189 = sbr.rel (0) target = $region29
  $region28: #{bert_classifier_forward.5} parent=0 // pred_region
    _
  $region29: #{bert_classifier_forward.5} parent=0 // pred_fallthru
    _

// kernel: bert_classifier_forward.3
$region0: #{bert_classifier_forward.3}
  #allocation0 [shape = 'u32[]', space=smem, size = 0x4, offset = 0x4, fixed_abs, tag = 'smem constant byte address 0x4 - core index']
  #allocation1 [shape = 'u32[72,128]{1,0:T(1,128)}', space=vmem, size = 0x9000, scoped, tag = 'internal scratch']
  %s0 = inlined_call_operand.vmem [shape: bf16[2,8,128], index: 0, kind: input, shape index: {}]
  %s1 = inlined_call_operand.vmem [shape: f32[2,1,8], index: 1, kind: input, shape index: {}]
  %s2 = inlined_call_operand.vmem [shape: f32[1,128], index: 2, kind: input, shape index: {}]
  %s3 = inlined_call_operand.vmem [shape: f32[1,128], index: 3, kind: input, shape index: {}]
  %s4 = inlined_call_operand.hbm [shape: bf16[128,768], index: 4, kind: input, shape index: {}]
  %s5 = inlined_call_operand.vmem [shape: f32[1,768], index: 5, kind: input, shape index: {}]
  %s6 = inlined_call_operand.vmem [shape: bf16[256,128], index: 6, kind: input, shape index: {}]
  %s7 = inlined_call_operand.vmem [shape: f32[1,128], index: 7, kind: input, shape index: {}]
  %s8 = inlined_call_operand.vmem [shape: f32[1,128], index: 8, kind: input, shape index: {}]
  %s9 = inlined_call_operand.vmem [shape: f32[1,128], index: 9, kind: input, shape index: {}]
  %s10 = inlined_call_operand.hbm [shape: bf16[128,512], index: 10, kind: input, shape index: {}]
  %s11 = inlined_call_operand.vmem [shape: f32[1,512], index: 11, kind: input, shape index: {}]
  %s12 = inlined_call_operand.hbm [shape: bf16[512,128], index: 12, kind: input, shape index: {}]
  %s13 = inlined_call_operand.vmem [shape: f32[1,128], index: 13, kind: input, shape index: {}]
  %s14 = inlined_call_operand.hbm [shape: f32[1,128], index: 14, kind: input, shape index: {}]
  %s15 = inlined_call_operand.hbm [shape: f32[1,128], index: 15, kind: input, shape index: {}]
  %s16 = inlined_call_operand.vmem [shape: bf16[2,8,128], index: 16, kind: output, shape index: {}]
  %s17 = sld [smem:[#allocation0]]
  $region117: #{bert_classifier_forward.3} parent=0
    _
  %s19 = ssub.s32 1, %s17
  %s20 = scalar_select 0, %s19, %s17
  $region1: #{bert_classifier_forward.3} parent=0
    #allocation2 [shape = 'u8[196608]{0}', space=vmem, size = 0x30000, scoped, tag = 'input window, operand 4, single buffered']
    #allocation3 [shape = 's32[2]{0}', space=sflag, size = 0x8, scoped, tag = 'scoped memory for bert_classifier_forward.3']
    #allocation4 [shape = 'u8[131072]{0}', space=vmem, size = 0x20000, scoped, tag = 'input window, operand 10, single buffered']
    #allocation5 [shape = 's32[1]{0}', space=sflag, size = 0x4, scoped, tag = 'scoped memory for bert_classifier_forward.3']
    #allocation6 [shape = 'u8[131072]{0}', space=vmem, size = 0x20000, scoped, tag = 'input window, operand 12, single buffered']
    #allocation7 [shape = 'u8[512]{0}', space=vmem, size = 0x400, scoped, tag = 'input window, operand 14, single buffered']
    #allocation8 [shape = 's32[1]{0}', space=sflag, size = 0x4, scoped, tag = 'scoped memory for bert_classifier_forward.3']
    #allocation9 [shape = 'u8[512]{0}', space=vmem, size = 0x400, scoped, tag = 'input window, operand 15, single buffered']
    %21 = vsyncpa [#allocation3], 0
    %22 = vsyncpa [#allocation5], 0
    %23 = vsyncpa [#allocation8], 0
    loop: start=0, step=1, limit=4
    $region2: #{bert_classifier_forward.3} parent=1 // loop_pre_header
      _
    $region3: #{bert_classifier_forward.3} parent=1 // loop_header
      %s25 = sphi 0, %s29
      %p26 = scmp.ge.s32.totalorder %s25, 4
      %s35 = sphi 0, %s37
      %s38 = sphi 0, %s35
      %s39 = sphi 0, %s38
      %s55 = sphi 0, %s39
      %s61 = sphi 0, %s63
      %s64 = sphi 0, %s61
      %s65 = sphi 0, %s64
      %s81 = sphi 0, %s65
      %s85 = sphi 0, %s85
      %s87 = sphi 0, %s85
      %s88 = sphi 0, %s87
      %s102 = sphi 0, %s88
      %s106 = sphi 0, %s106
      %s108 = sphi 0, %s106
      %s109 = sphi 0, %s108
      %s123 = sphi 0, %s109
      %s127 = sphi 0, %s127
      %s129 = sphi 0, %s127
      %s130 = sphi 0, %s129
      %s144 = sphi 0, %s130
      %s148 = sphi 0, %s148
      %s150 = sphi 0, %s148
      %s151 = sphi 0, %s150
      %s165 = sphi 0, %s151
      %s169 = sphi 0, %s169
      %s171 = sphi 0, %s169
      %s172 = sphi 0, %s171
      %s186 = sphi 0, %s172
      %s190 = sphi 0, %s190
      %s192 = sphi 0, %s190
      %s193 = sphi 0, %s192
      %s207 = sphi 0, %s193
      %s211 = sphi 0, %s211
      %s213 = sphi 0, %s211
      %s214 = sphi 0, %s213
      %s228 = sphi 0, %s214
      %s232 = sphi 0, %s232
      %s234 = sphi 0, %s232
      %s235 = sphi 0, %s234
      %s249 = sphi 0, %s235
      %s253 = sphi 0, %s253
      %s255 = sphi 0, %s253
      %s256 = sphi 0, %s255
      %s270 = sphi 0, %s256
      %s274 = sphi 0, %s274
      %s276 = sphi 0, %s274
      %s277 = sphi 0, %s276
      %s291 = sphi 0, %s277
      %s295 = sphi 0, %s295
      %s297 = sphi 0, %s295
      %s298 = sphi 0, %s297
      %s312 = sphi 0, %s298
      %s316 = sphi 0, %s316
      %s318 = sphi 0, %s316
      %s319 = sphi 0, %s318
      %s333 = sphi 0, %s319
      %s337 = sphi 0, %s337
      %s339 = sphi 0, %s337
      %s340 = sphi 0, %s339
      %s354 = sphi 0, %s340
      %s358 = sphi 0, %s358
      %s360 = sphi 0, %s358
      %s361 = sphi 0, %s360
      %s375 = sphi 0, %s361
      %s381 = sphi 0, %s383
      %s384 = sphi 0, %s381
      %s385 = sphi 0, %s384
      %s401 = sphi 0, %s385
    $region4: #{bert_classifier_forward.3} parent=1 // loop_header_branch
      %28 = sbr.rel (%p26) target = $region8
    $region5: #{bert_classifier_forward.3} parent=1 // loop_body
      %s30 = ssub.s32 %s25, 1
      %s31 = ssub.s32 %s25, 2
      %s32 = sadd.s32 %s25, 1
      %s33 = ssub.s32 %s25, %s32
      %p34 = scmp.eq.s32.totalorder %s33, 0
      %s36 = sadd.s32 %s35, 1
      %s37 = scalar_select %p34, %s35, %s36
      %p40 = pneg %p34
      %p41 = scmp.eq.s32.totalorder %s25, 1
      %p42 = por %p40, %p41
      %p43 = scmp.ne.s32.totalorder %s35, %s38
      %p44 = scmp.eq.s32.totalorder %s25, 0
      %p45 = por %p43, %p44
      %p46 = scmp.ne.s32.totalorder %s35, %s38
      %p47 = scmp.eq.s32.totalorder %s30, 1
      %p48 = por %p46, %p47
      %p49 = scmp.ne.s32.totalorder %s38, %s39
      %p50 = scmp.eq.s32.totalorder %s30, 0
      %p51 = por %p49, %p50
      %p52 = scmp.ne.s32.totalorder %s38, %s39
      %p53 = scmp.eq.s32.totalorder %s31, 1
      %p54 = por %p52, %p53
      %p56 = scmp.ne.s32.totalorder %s39, %s55
      %p57 = scmp.eq.s32.totalorder %s31, 0
      %p58 = por %p56, %p57
      %s59 = ssub.s32 %s25, %s32
      %p60 = scmp.eq.s32.totalorder %s59, 0
      %s62 = sadd.s32 %s61, 1
      %s63 = scalar_select %p60, %s61, %s62
      %p66 = pneg %p60
      %p67 = scmp.eq.s32.totalorder %s25, 1
      %p68 = por %p66, %p67
      %p69 = scmp.ne.s32.totalorder %s61, %s64
      %p70 = scmp.eq.s32.totalorder %s25, 0
      %p71 = por %p69, %p70
      %p72 = scmp.ne.s32.totalorder %s61, %s64
      %p73 = scmp.eq.s32.totalorder %s30, 1
      %p74 = por %p72, %p73
      %p75 = scmp.ne.s32.totalorder %s64, %s65
      %p76 = scmp.eq.s32.totalorder %s30, 0
      %p77 = por %p75, %p76
      %p78 = scmp.ne.s32.totalorder %s64, %s65
      %p79 = scmp.eq.s32.totalorder %s31, 1
      %p80 = por %p78, %p79
      %p82 = scmp.ne.s32.totalorder %s65, %s81
      %p83 = scmp.eq.s32.totalorder %s31, 0
      %p84 = por %p82, %p83
      %s86 = sadd.s32 %s85, 1
      %p89 = scmp.eq.s32.totalorder %s25, 1
      %p90 = scmp.ne.s32.totalorder %s85, %s87
      %p91 = scmp.eq.s32.totalorder %s25, 0
      %p92 = por %p90, %p91
      %p93 = scmp.ne.s32.totalorder %s85, %s87
      %p94 = scmp.eq.s32.totalorder %s30, 1
      %p95 = por %p93, %p94
      %p96 = scmp.ne.s32.totalorder %s87, %s88
      %p97 = scmp.eq.s32.totalorder %s30, 0
      %p98 = por %p96, %p97
      %p99 = scmp.ne.s32.totalorder %s87, %s88
      %p100 = scmp.eq.s32.totalorder %s31, 1
      %p101 = por %p99, %p100
      %p103 = scmp.ne.s32.totalorder %s88, %s102
      %p104 = scmp.eq.s32.totalorder %s31, 0
      %p105 = por %p103, %p104
      %s107 = sadd.s32 %s106, 1
      %p110 = scmp.eq.s32.totalorder %s25, 1
      %p111 = scmp.ne.s32.totalorder %s106, %s108
      %p112 = scmp.eq.s32.totalorder %s25, 0
      %p113 = por %p111, %p112
      %p114 = scmp.ne.s32.totalorder %s106, %s108
      %p115 = scmp.eq.s32.totalorder %s30, 1
      %p116 = por %p114, %p115
      %p117 = scmp.ne.s32.totalorder %s108, %s109
      %p118 = scmp.eq.s32.totalorder %s30, 0
      %p119 = por %p117, %p118
      %p120 = scmp.ne.s32.totalorder %s108, %s109
      %p121 = scmp.eq.s32.totalorder %s31, 1
      %p122 = por %p120, %p121
      %p124 = scmp.ne.s32.totalorder %s109, %s123
      %p125 = scmp.eq.s32.totalorder %s31, 0
      %p126 = por %p124, %p125
      %s128 = sadd.s32 %s127, 1
      %p131 = scmp.eq.s32.totalorder %s25, 1
      %p132 = scmp.ne.s32.totalorder %s127, %s129
      %p133 = scmp.eq.s32.totalorder %s25, 0
      %p134 = por %p132, %p133
      %p135 = scmp.ne.s32.totalorder %s127, %s129
      %p136 = scmp.eq.s32.totalorder %s30, 1
      %p137 = por %p135, %p136
      %p138 = scmp.ne.s32.totalorder %s129, %s130
      %p139 = scmp.eq.s32.totalorder %s30, 0
      %p140 = por %p138, %p139
      %p141 = scmp.ne.s32.totalorder %s129, %s130
      %p142 = scmp.eq.s32.totalorder %s31, 1
      %p143 = por %p141, %p142
      %p145 = scmp.ne.s32.totalorder %s130, %s144
      %p146 = scmp.eq.s32.totalorder %s31, 0
      %p147 = por %p145, %p146
      %s149 = sadd.s32 %s148, 1
      %p152 = scmp.eq.s32.totalorder %s25, 1
      %p153 = scmp.ne.s32.totalorder %s148, %s150
      %p154 = scmp.eq.s32.totalorder %s25, 0
      %p155 = por %p153, %p154
      %p156 = scmp.ne.s32.totalorder %s148, %s150
      %p157 = scmp.eq.s32.totalorder %s30, 1
      %p158 = por %p156, %p157
      %p159 = scmp.ne.s32.totalorder %s150, %s151
      %p160 = scmp.eq.s32.totalorder %s30, 0
      %p161 = por %p159, %p160
      %p162 = scmp.ne.s32.totalorder %s150, %s151
      %p163 = scmp.eq.s32.totalorder %s31, 1
      %p164 = por %p162, %p163
      %p166 = scmp.ne.s32.totalorder %s151, %s165
      %p167 = scmp.eq.s32.totalorder %s31, 0
      %p168 = por %p166, %p167
      %s170 = sadd.s32 %s169, 1
      %p173 = scmp.eq.s32.totalorder %s25, 1
      %p174 = scmp.ne.s32.totalorder %s169, %s171
      %p175 = scmp.eq.s32.totalorder %s25, 0
      %p176 = por %p174, %p175
      %p177 = scmp.ne.s32.totalorder %s169, %s171
      %p178 = scmp.eq.s32.totalorder %s30, 1
      %p179 = por %p177, %p178
      %p180 = scmp.ne.s32.totalorder %s171, %s172
      %p181 = scmp.eq.s32.totalorder %s30, 0
      %p182 = por %p180, %p181
      %p183 = scmp.ne.s32.totalorder %s171, %s172
      %p184 = scmp.eq.s32.totalorder %s31, 1
      %p185 = por %p183, %p184
      %p187 = scmp.ne.s32.totalorder %s172, %s186
      %p188 = scmp.eq.s32.totalorder %s31, 0
      %p189 = por %p187, %p188
      %s191 = sadd.s32 %s190, 1
      %p194 = scmp.eq.s32.totalorder %s25, 1
      %p195 = scmp.ne.s32.totalorder %s190, %s192
      %p196 = scmp.eq.s32.totalorder %s25, 0
      %p197 = por %p195, %p196
      %p198 = scmp.ne.s32.totalorder %s190, %s192
      %p199 = scmp.eq.s32.totalorder %s30, 1
      %p200 = por %p198, %p199
      %p201 = scmp.ne.s32.totalorder %s192, %s193
      %p202 = scmp.eq.s32.totalorder %s30, 0
      %p203 = por %p201, %p202
      %p204 = scmp.ne.s32.totalorder %s192, %s193
      %p205 = scmp.eq.s32.totalorder %s31, 1
      %p206 = por %p204, %p205
      %p208 = scmp.ne.s32.totalorder %s193, %s207
      %p209 = scmp.eq.s32.totalorder %s31, 0
      %p210 = por %p208, %p209
      %s212 = sadd.s32 %s211, 1
      %p215 = scmp.eq.s32.totalorder %s25, 1
      %p216 = scmp.ne.s32.totalorder %s211, %s213
      %p217 = scmp.eq.s32.totalorder %s25, 0
      %p218 = por %p216, %p217
      %p219 = scmp.ne.s32.totalorder %s211, %s213
      %p220 = scmp.eq.s32.totalorder %s30, 1
      %p221 = por %p219, %p220
      %p222 = scmp.ne.s32.totalorder %s213, %s214
      %p223 = scmp.eq.s32.totalorder %s30, 0
      %p224 = por %p222, %p223
      %p225 = scmp.ne.s32.totalorder %s213, %s214
      %p226 = scmp.eq.s32.totalorder %s31, 1
      %p227 = por %p225, %p226
      %p229 = scmp.ne.s32.totalorder %s214, %s228
      %p230 = scmp.eq.s32.totalorder %s31, 0
      %p231 = por %p229, %p230
      %s233 = sadd.s32 %s232, 1
      %p236 = scmp.eq.s32.totalorder %s25, 1
      %p237 = scmp.ne.s32.totalorder %s232, %s234
      %p238 = scmp.eq.s32.totalorder %s25, 0
      %p239 = por %p237, %p238
      %p240 = scmp.ne.s32.totalorder %s232, %s234
      %p241 = scmp.eq.s32.totalorder %s30, 1
      %p242 = por %p240, %p241
      %p243 = scmp.ne.s32.totalorder %s234, %s235
      %p244 = scmp.eq.s32.totalorder %s30, 0
      %p245 = por %p243, %p244
      %p246 = scmp.ne.s32.totalorder %s234, %s235
      %p247 = scmp.eq.s32.totalorder %s31, 1
      %p248 = por %p246, %p247
      %p250 = scmp.ne.s32.totalorder %s235, %s249
      %p251 = scmp.eq.s32.totalorder %s31, 0
      %p252 = por %p250, %p251
      %s254 = sadd.s32 %s253, 1
      %p257 = scmp.eq.s32.totalorder %s25, 1
      %p258 = scmp.ne.s32.totalorder %s253, %s255
      %p259 = scmp.eq.s32.totalorder %s25, 0
      %p260 = por %p258, %p259
      %p261 = scmp.ne.s32.totalorder %s253, %s255
      %p262 = scmp.eq.s32.totalorder %s30, 1
      %p263 = por %p261, %p262
      %p264 = scmp.ne.s32.totalorder %s255, %s256
      %p265 = scmp.eq.s32.totalorder %s30, 0
      %p266 = por %p264, %p265
      %p267 = scmp.ne.s32.totalorder %s255, %s256
      %p268 = scmp.eq.s32.totalorder %s31, 1
      %p269 = por %p267, %p268
      %p271 = scmp.ne.s32.totalorder %s256, %s270
      %p272 = scmp.eq.s32.totalorder %s31, 0
      %p273 = por %p271, %p272
      %s275 = sadd.s32 %s274, 1
      %p278 = scmp.eq.s32.totalorder %s25, 1
      %p279 = scmp.ne.s32.totalorder %s274, %s276
      %p280 = scmp.eq.s32.totalorder %s25, 0
      %p281 = por %p279, %p280
      %p282 = scmp.ne.s32.totalorder %s274, %s276
      %p283 = scmp.eq.s32.totalorder %s30, 1
      %p284 = por %p282, %p283
      %p285 = scmp.ne.s32.totalorder %s276, %s277
      %p286 = scmp.eq.s32.totalorder %s30, 0
      %p287 = por %p285, %p286
      %p288 = scmp.ne.s32.totalorder %s276, %s277
      %p289 = scmp.eq.s32.totalorder %s31, 1
      %p290 = por %p288, %p289
      %p292 = scmp.ne.s32.totalorder %s277, %s291
      %p293 = scmp.eq.s32.totalorder %s31, 0
      %p294 = por %p292, %p293
      %s296 = sadd.s32 %s295, 1
      %p299 = scmp.eq.s32.totalorder %s25, 1
      %p300 = scmp.ne.s32.totalorder %s295, %s297
      %p301 = scmp.eq.s32.totalorder %s25, 0
      %p302 = por %p300, %p301
      %p303 = scmp.ne.s32.totalorder %s295, %s297
      %p304 = scmp.eq.s32.totalorder %s30, 1
      %p305 = por %p303, %p304
      %p306 = scmp.ne.s32.totalorder %s297, %s298
      %p307 = scmp.eq.s32.totalorder %s30, 0
      %p308 = por %p306, %p307
      %p309 = scmp.ne.s32.totalorder %s297, %s298
      %p310 = scmp.eq.s32.totalorder %s31, 1
      %p311 = por %p309, %p310
      %p313 = scmp.ne.s32.totalorder %s298, %s312
      %p314 = scmp.eq.s32.totalorder %s31, 0
      %p315 = por %p313, %p314
      %s317 = sadd.s32 %s316, 1
      %p320 = scmp.eq.s32.totalorder %s25, 1
      %p321 = scmp.ne.s32.totalorder %s316, %s318
      %p322 = scmp.eq.s32.totalorder %s25, 0
      %p323 = por %p321, %p322
      %p324 = scmp.ne.s32.totalorder %s316, %s318
      %p325 = scmp.eq.s32.totalorder %s30, 1
      %p326 = por %p324, %p325
      %p327 = scmp.ne.s32.totalorder %s318, %s319
      %p328 = scmp.eq.s32.totalorder %s30, 0
      %p329 = por %p327, %p328
      %p330 = scmp.ne.s32.totalorder %s318, %s319
      %p331 = scmp.eq.s32.totalorder %s31, 1
      %p332 = por %p330, %p331
      %p334 = scmp.ne.s32.totalorder %s319, %s333
      %p335 = scmp.eq.s32.totalorder %s31, 0
      %p336 = por %p334, %p335
      %s338 = sadd.s32 %s337, 1
      %p341 = scmp.eq.s32.totalorder %s25, 1
      %p342 = scmp.ne.s32.totalorder %s337, %s339
      %p343 = scmp.eq.s32.totalorder %s25, 0
      %p344 = por %p342, %p343
      %p345 = scmp.ne.s32.totalorder %s337, %s339
      %p346 = scmp.eq.s32.totalorder %s30, 1
      %p347 = por %p345, %p346
      %p348 = scmp.ne.s32.totalorder %s339, %s340
      %p349 = scmp.eq.s32.totalorder %s30, 0
      %p350 = por %p348, %p349
      %p351 = scmp.ne.s32.totalorder %s339, %s340
      %p352 = scmp.eq.s32.totalorder %s31, 1
      %p353 = por %p351, %p352
      %p355 = scmp.ne.s32.totalorder %s340, %s354
      %p356 = scmp.eq.s32.totalorder %s31, 0
      %p357 = por %p355, %p356
      %s359 = sadd.s32 %s358, 1
      %p362 = scmp.eq.s32.totalorder %s25, 1
      %p363 = scmp.ne.s32.totalorder %s358, %s360
      %p364 = scmp.eq.s32.totalorder %s25, 0
      %p365 = por %p363, %p364
      %p366 = scmp.ne.s32.totalorder %s358, %s360
      %p367 = scmp.eq.s32.totalorder %s30, 1
      %p368 = por %p366, %p367
      %p369 = scmp.ne.s32.totalorder %s360, %s361
      %p370 = scmp.eq.s32.totalorder %s30, 0
      %p371 = por %p369, %p370
      %p372 = scmp.ne.s32.totalorder %s360, %s361
      %p373 = scmp.eq.s32.totalorder %s31, 1
      %p374 = por %p372, %p373
      %p376 = scmp.ne.s32.totalorder %s361, %s375
      %p377 = scmp.eq.s32.totalorder %s31, 0
      %p378 = por %p376, %p377
      %s379 = ssub.s32 %s25, %s32
      %p380 = scmp.eq.s32.totalorder %s379, 0
      %s382 = sadd.s32 %s381, 1
      %s383 = scalar_select %p380, %s381, %s382
      %p386 = pneg %p380
      %p387 = scmp.eq.s32.totalorder %s25, 1
      %p388 = por %p386, %p387
      %p389 = scmp.ne.s32.totalorder %s381, %s384
      %p390 = scmp.eq.s32.totalorder %s25, 0
      %p391 = por %p389, %p390
      %p392 = scmp.ne.s32.totalorder %s381, %s384
      %p393 = scmp.eq.s32.totalorder %s30, 1
      %p394 = por %p392, %p393
      %p395 = scmp.ne.s32.totalorder %s384, %s385
      %p396 = scmp.eq.s32.totalorder %s30, 0
      %p397 = por %p395, %p396
      %p398 = scmp.ne.s32.totalorder %s384, %s385
      %p399 = scmp.eq.s32.totalorder %s31, 1
      %p400 = por %p398, %p399
      %p402 = scmp.ne.s32.totalorder %s385, %s401
      %p403 = scmp.eq.s32.totalorder %s31, 0
      %p404 = por %p402, %p403
      %p405 = scmp.le.s32.totalorder 1, %s25
      %p406 = scmp.lt.s32.totalorder %s25, 3
      %p407 = pnand %p405, %p406
      %p408 = pneg %p407
      // Predicated region
      $region9: #{bert_classifier_forward.3} parent=5 // pred_check
        _
      $region10: #{bert_classifier_forward.3} parent=5 // pred_check_branch
        %410 = sbr.rel (%p407) target = $region12
      $region11: #{bert_classifier_forward.3} parent=5 // pred_region
        %s411 = ssub.s32 %s25, 1
        // Predicated region
        $region13: #{bert_classifier_forward.3} parent=11 // pred_check
          %p412 = pneg %p98
        $region14: #{bert_classifier_forward.3} parent=11 // pred_check_branch
          %414 = sbr.rel (%p412) target = $region16
        $region15: #{bert_classifier_forward.3} parent=11 // pred_region
          _
        $region16: #{bert_classifier_forward.3} parent=11 // pred_fallthru
          _
        // Predicated region
        $region17: #{bert_classifier_forward.3} parent=11 // pred_check
          %p415 = pneg %p119
        $region18: #{bert_classifier_forward.3} parent=11 // pred_check_branch
          %417 = sbr.rel (%p415) target = $region20
        $region19: #{bert_classifier_forward.3} parent=11 // pred_region
          _
        $region20: #{bert_classifier_forward.3} parent=11 // pred_fallthru
          _
        // Predicated region
        $region21: #{bert_classifier_forward.3} parent=11 // pred_check
          %p418 = pneg %p140
        $region22: #{bert_classifier_forward.3} parent=11 // pred_check_branch
          %420 = sbr.rel (%p418) target = $region24
        $region23: #{bert_classifier_forward.3} parent=11 // pred_region
          %422 = vsyncadd [#allocation3], 0
          %s423 = sshll.u32 %s4, 4
          %s424 = int_to_ptr.hbm [resolvable:$true] %s423
          %s425 = sshll.u32 [#allocation2], 4
          %s426 = int_to_ptr.vmem [resolvable:$true] %s425
          %431 = dma.hbm_to_vmem [thread:$0]  %s424, 6144, %s426, [#allocation3], 384, 384, 24
        $region24: #{bert_classifier_forward.3} parent=11 // pred_fallthru
          _
        // Predicated region
        $region25: #{bert_classifier_forward.3} parent=11 // pred_check
          %p432 = pneg %p161
        $region26: #{bert_classifier_forward.3} parent=11 // pred_check_branch
          %434 = sbr.rel (%p432) target = $region28
        $region27: #{bert_classifier_forward.3} parent=11 // pred_region
          _
        $region28: #{bert_classifier_forward.3} parent=11 // pred_fallthru
          _
        // Predicated region
        $region29: #{bert_classifier_forward.3} parent=11 // pred_check
          %p435 = pneg %p182
        $region30: #{bert_classifier_forward.3} parent=11 // pred_check_branch
          %437 = sbr.rel (%p435) target = $region32
        $region31: #{bert_classifier_forward.3} parent=11 // pred_region
          _
        $region32: #{bert_classifier_forward.3} parent=11 // pred_fallthru
          _
        // Predicated region
        $region33: #{bert_classifier_forward.3} parent=11 // pred_check
          %p438 = pneg %p203
        $region34: #{bert_classifier_forward.3} parent=11 // pred_check_branch
          %440 = sbr.rel (%p438) target = $region36
        $region35: #{bert_classifier_forward.3} parent=11 // pred_region
          _
        $region36: #{bert_classifier_forward.3} parent=11 // pred_fallthru
          _
        // Predicated region
        $region37: #{bert_classifier_forward.3} parent=11 // pred_check
          %p441 = pneg %p224
        $region38: #{bert_classifier_forward.3} parent=11 // pred_check_branch
          %443 = sbr.rel (%p441) target = $region40
        $region39: #{bert_classifier_forward.3} parent=11 // pred_region
          _
        $region40: #{bert_classifier_forward.3} parent=11 // pred_fallthru
          _
        // Predicated region
        $region41: #{bert_classifier_forward.3} parent=11 // pred_check
          %p444 = pneg %p245
        $region42: #{bert_classifier_forward.3} parent=11 // pred_check_branch
          %446 = sbr.rel (%p444) target = $region44
        $region43: #{bert_classifier_forward.3} parent=11 // pred_region
          _
        $region44: #{bert_classifier_forward.3} parent=11 // pred_fallthru
          _
        // Predicated region
        $region45: #{bert_classifier_forward.3} parent=11 // pred_check
          %p447 = pneg %p266
        $region46: #{bert_classifier_forward.3} parent=11 // pred_check_branch
          %449 = sbr.rel (%p447) target = $region48
        $region47: #{bert_classifier_forward.3} parent=11 // pred_region
          %451 = vsyncadd [#allocation5], 0
          %s452 = sshll.u32 %s10, 4
          %s453 = int_to_ptr.hbm [resolvable:$true] %s452
          %s454 = sshll.u32 [#allocation4], 4
          %s455 = int_to_ptr.vmem [resolvable:$true] %s454
          %460 = dma.hbm_to_vmem [thread:$0]  %s453, 4096, %s455, [#allocation5], 256, 256, 16
        $region48: #{bert_classifier_forward.3} parent=11 // pred_fallthru
          _
        // Predicated region
        $region49: #{bert_classifier_forward.3} parent=11 // pred_check
          %p461 = pneg %p287
        $region50: #{bert_classifier_forward.3} parent=11 // pred_check_branch
          %463 = sbr.rel (%p461) target = $region52
        $region51: #{bert_classifier_forward.3} parent=11 // pred_region
          _
        $region52: #{bert_classifier_forward.3} parent=11 // pred_fallthru
          _
        // Predicated region
        $region53: #{bert_classifier_forward.3} parent=11 // pred_check
          %p464 = pneg %p308
        $region54: #{bert_classifier_forward.3} parent=11 // pred_check_branch
          %466 = sbr.rel (%p464) target = $region56
        $region55: #{bert_classifier_forward.3} parent=11 // pred_region
          %468 = vsyncadd [#allocation5], 0
          %s469 = sshll.u32 %s12, 4
          %s470 = int_to_ptr.hbm [resolvable:$true] %s469
          %s471 = sshll.u32 [#allocation6], 4
          %s472 = int_to_ptr.vmem [resolvable:$true] %s471
          %477 = dma.hbm_to_vmem [thread:$0]  %s470, 4096, %s472, [#allocation5], 64, 64, 4
        $region56: #{bert_classifier_forward.3} parent=11 // pred_fallthru
          _
        // Predicated region
        $region57: #{bert_classifier_forward.3} parent=11 // pred_check
          %p478 = pneg %p329
        $region58: #{bert_classifier_forward.3} parent=11 // pred_check_branch
          %480 = sbr.rel (%p478) target = $region60
        $region59: #{bert_classifier_forward.3} parent=11 // pred_region
          _
        $region60: #{bert_classifier_forward.3} parent=11 // pred_fallthru
          _
        // Predicated region
        $region61: #{bert_classifier_forward.3} parent=11 // pred_check
          %p481 = pneg %p350
        $region62: #{bert_classifier_forward.3} parent=11 // pred_check_branch
          %483 = sbr.rel (%p481) target = $region64
        $region63: #{bert_classifier_forward.3} parent=11 // pred_region
          %485 = vsyncadd [#allocation8], 0
          %s487 = sshll.u32 %s14, 4
          %s488 = int_to_ptr.hbm [resolvable:$true] %s487
          %s489 = sshll.u32 [#allocation7], 4
          %s490 = int_to_ptr.vmem [resolvable:$true] %s489
          %492 = dma.hbm_to_vmem [thread:$0]  %s488, 16, %s490, [#allocation8]
        $region64: #{bert_classifier_forward.3} parent=11 // pred_fallthru
          _
        // Predicated region
        $region65: #{bert_classifier_forward.3} parent=11 // pred_check
          %p493 = pneg %p371
        $region66: #{bert_classifier_forward.3} parent=11 // pred_check_branch
          %495 = sbr.rel (%p493) target = $region68
        $region67: #{bert_classifier_forward.3} parent=11 // pred_region
          %497 = vsyncadd [#allocation8], 0
          %s499 = sshll.u32 %s15, 4
          %s500 = int_to_ptr.hbm [resolvable:$true] %s499
          %s501 = sshll.u32 [#allocation9], 4
          %s502 = int_to_ptr.vmem [resolvable:$true] %s501
          %504 = dma.hbm_to_vmem [thread:$0]  %s500, 16, %s502, [#allocation8]
        $region68: #{bert_classifier_forward.3} parent=11 // pred_fallthru
          _
      $region12: #{bert_classifier_forward.3} parent=5 // pred_fallthru
        _
      %p505 = scmp.lt.s32.totalorder %s25, 2
      // Predicated region
      $region69: #{bert_classifier_forward.3} parent=5 // pred_check
        %p506 = pneg %p505
      $region70: #{bert_classifier_forward.3} parent=5 // pred_check_branch
        %508 = sbr.rel (%p506) target = $region72
      $region71: #{bert_classifier_forward.3} parent=5 // pred_region
        // Predicated region
        $region73: #{bert_classifier_forward.3} parent=71 // pred_check
          %p509 = pneg %p45
        $region74: #{bert_classifier_forward.3} parent=71 // pred_check_branch
          %511 = sbr.rel (%p509) target = $region76
        $region75: #{bert_classifier_forward.3} parent=71 // pred_region
          %p512 = scmp.lt.s32.totalorder %s25, 1
          %s513 = scalar_select %p512, %s25, 1
          %s514 = smul.addr %s513, 4
          %s515 = scalar_lea.vmem %s0, %s514
        $region76: #{bert_classifier_forward.3} parent=71 // pred_fallthru
          _
        // Predicated region
        $region77: #{bert_classifier_forward.3} parent=71 // pred_check
          %p516 = pneg %p71
        $region78: #{bert_classifier_forward.3} parent=71 // pred_check_branch
          %518 = sbr.rel (%p516) target = $region80
        $region79: #{bert_classifier_forward.3} parent=71 // pred_region
          %p519 = scmp.lt.s32.totalorder %s25, 1
          %s520 = scalar_select %p519, %s25, 1
          %s521 = scalar_lea.vmem %s1, %s520
        $region80: #{bert_classifier_forward.3} parent=71 // pred_fallthru
          _
      $region72: #{bert_classifier_forward.3} parent=5 // pred_fallthru
        _
      %p522 = scmp.le.s32.totalorder 1, %s25
      %p523 = scmp.lt.s32.totalorder %s25, 3
      %p524 = pnand %p522, %p523
      %p525 = pneg %p524
      // Predicated region
      $region81: #{bert_classifier_forward.3} parent=5 // pred_check
        _
      $region82: #{bert_classifier_forward.3} parent=5 // pred_check_branch
        %527 = sbr.rel (%p524) target = $region84
      $region83: #{bert_classifier_forward.3} parent=5 // pred_region
        %s528 = ssub.s32 %s25, 1
        // Predicated region
        $region85: #{bert_classifier_forward.3} parent=83 // pred_check
          %p529 = pneg %p140
        $region86: #{bert_classifier_forward.3} parent=83 // pred_check_branch
          %531 = sbr.rel (%p529) target = $region88
        $region87: #{bert_classifier_forward.3} parent=83 // pred_region
          %533 = dma.done [#allocation3], 6144
        $region88: #{bert_classifier_forward.3} parent=83 // pred_fallthru
          _
        // Predicated region
        $region89: #{bert_classifier_forward.3} parent=83 // pred_check
          %p534 = pneg %p266
        $region90: #{bert_classifier_forward.3} parent=83 // pred_check_branch
          %536 = sbr.rel (%p534) target = $region92
        $region91: #{bert_classifier_forward.3} parent=83 // pred_region
          %538 = dma.done [#allocation5], 4096
        $region92: #{bert_classifier_forward.3} parent=83 // pred_fallthru
          _
        // Predicated region
        $region93: #{bert_classifier_forward.3} parent=83 // pred_check
          %p539 = pneg %p308
        $region94: #{bert_classifier_forward.3} parent=83 // pred_check_branch
          %541 = sbr.rel (%p539) target = $region96
        $region95: #{bert_classifier_forward.3} parent=83 // pred_region
          %543 = dma.done [#allocation5], 4096
        $region96: #{bert_classifier_forward.3} parent=83 // pred_fallthru
          _
        // Predicated region
        $region97: #{bert_classifier_forward.3} parent=83 // pred_check
          %p544 = pneg %p350
        $region98: #{bert_classifier_forward.3} parent=83 // pred_check_branch
          %546 = sbr.rel (%p544) target = $region100
        $region99: #{bert_classifier_forward.3} parent=83 // pred_region
          %548 = dma.done [#allocation8], 16
        $region100: #{bert_classifier_forward.3} parent=83 // pred_fallthru
          _
        // Predicated region
        $region101: #{bert_classifier_forward.3} parent=83 // pred_check
          %p549 = pneg %p371
        $region102: #{bert_classifier_forward.3} parent=83 // pred_check_branch
          %551 = sbr.rel (%p549) target = $region104
        $region103: #{bert_classifier_forward.3} parent=83 // pred_region
          %553 = dma.done [#allocation8], 16
        $region104: #{bert_classifier_forward.3} parent=83 // pred_fallthru
          _
        %p554 = scmp.lt.s32.totalorder %s30, 1
        %s555 = scalar_select %p554, %s30, 1
        %s556 = smul.addr %s555, 4
        %s557 = scalar_lea.vmem %s0, %s556
        %p558 = pneg %p51
        %p559 = pneg %p48
        %p560 = scmp.lt.s32.totalorder %s30, 1
        %s561 = scalar_select %p560, %s30, 1
        %s562 = scalar_lea.vmem %s1, %s561
        %p563 = pneg %p77
        %p564 = pneg %p74
        %p565 = pneg %p98
        %p566 = pneg %p95
        %p567 = pneg %p119
        %p568 = pneg %p116
        %p569 = pneg %p140
        %p570 = pneg %p137
        %p571 = pneg %p161
        %p572 = pneg %p158
        %p573 = pneg %p182
        %p574 = pneg %p179
        %p575 = pneg %p203
        %p576 = pneg %p200
        %p577 = pneg %p224
        %p578 = pneg %p221
        %p579 = pneg %p245
        %p580 = pneg %p242
        %p581 = pneg %p266
        %p582 = pneg %p263
        %p583 = pneg %p287
        %p584 = pneg %p284
        %p585 = pneg %p308
        %p586 = pneg %p305
        %p587 = pneg %p329
        %p588 = pneg %p326
        %p589 = pneg %p350
        %p590 = pneg %p347
        %p591 = pneg %p371
        %p592 = pneg %p368
        %p593 = pneg %p397
        %p594 = pneg %p394
        %p595 = scmp.lt.s32.totalorder %s30, 1
        %s596 = scalar_select %p595, %s30, 1
        %s597 = smul.addr %s596, 4
        %s598 = scalar_lea.vmem %s16, %s597
        %p599 = scmp.lt.s32.totalorder %s30, 1
        %s600 = scalar_select %p599, %s30, 1
        %s601 = smul.addr %s600, 4
        %s602 = scalar_lea.vmem %s0, %s601
        %p603 = scmp.lt.s32.totalorder %s30, 1
        %s604 = scalar_select %p603, %s30, 1
        %s605 = scalar_lea.vmem %s1, %s604
        %p606 = scmp.lt.s32.totalorder %s30, 1
        %s607 = scalar_select %p606, %s30, 1
        %s608 = smul.addr %s607, 4
        %s609 = scalar_lea.vmem %s16, %s608
        %v611 = vld [vmem:[%s602] sm:$0xf]
        %v612 = vunpack.c.l.bf16 %v611
        %v613 = vld [vmem:[%s605] sm:$0x1]
        %v614 = vld [vmem:[%s2] sm:$0x1]
        %v615 = vld [vmem:[%s3] sm:$0x1]
        %616 = vadd.xlane.f32.xlu0 %v612
        %v617 = vpop.xlane.xlu0 %616
        %v618 = vrcp.pop 128.0
        %v619 = vmul.f32 128.0, %v618
        %v620 = vsub.f32 1.0, %v619
        %v621 = vmul.f32 %v618, %v620
        %v622 = vadd.f32 %v618, %v621
        %vm623 = vweird.f32 %v618
        %v624 = vsel %vm623, %v618, %v622
        %v625 = vmul.f32 %v617, %v624
        %v626 = vsub.f32 %v612, %v625
        %v627 = vmul.f32 %v626, %v626
        %628 = vadd.xlane.f32.xlu0 %v627
        %v629 = vpop.xlane.xlu0 %628
        %v630 = vmul.f32 %v629, %v624
        %v631 = vadd.f32 %v630, 1e-12
        %v632 = vrsqrt.pop %v631
        %v633 = vmul.f32 %v632, %v631
        %v634 = vmul.f32 %v633, %v632
        %v635 = vmul.f32 0.5, %v634
        %v636 = vsub.f32 1.5, %v635
        %v637 = vmul.f32 %v632, %v636
        %vm638 = vweird.f32 %v631
        %vm639 = vweird.f32 %v632
        %vm640 = vmor %vm638, %vm639
        %v641 = vsel %vm640, %v632, %v637
        %v642 = vmul.f32 %v626, %v641
        %v644 = vperm.slane %v614, 0
        %v646 = vmul.f32 %v642, %v644
        %v648 = vperm.slane %v615, 0
        %v650 = vadd.f32 %v646, %v648
        %v651 = vpack.c.bf16 %v650, %v650
        %v652 = vld [vmem:[#allocation2] sm:$0xff]
        %v653 = vld [vmem:[#allocation2 + $0x8] sm:$0xff]
        %v654 = vld [vmem:[#allocation2 + $0x10] sm:$0xff]
        %v655 = vld [vmem:[#allocation2 + $0x18] sm:$0xff]
        %v656 = vld [vmem:[#allocation2 + $0x20] sm:$0xff]
        %v657 = vld [vmem:[#allocation2 + $0x28] sm:$0xff]
        %v658 = vld [vmem:[#allocation2 + $0x30] sm:$0xff]
        %v659 = vld [vmem:[#allocation2 + $0x38] sm:$0xff]
        %v660 = vld [vmem:[#allocation2 + $0x40] sm:$0xff]
        %v661 = vld [vmem:[#allocation2 + $0x48] sm:$0xff]
        %v662 = vld [vmem:[#allocation2 + $0x50] sm:$0xff]
        %v663 = vld [vmem:[#allocation2 + $0x58] sm:$0xff]
        %v664 = vld [vmem:[#allocation2 + $0x60] sm:$0xff]
        %v665 = vld [vmem:[#allocation2 + $0x68] sm:$0xff]
        %v666 = vld [vmem:[#allocation2 + $0x70] sm:$0xff]
        %v667 = vld [vmem:[#allocation2 + $0x78] sm:$0xff]
        %v668 = vld [vmem:[#allocation2 + $0x80] sm:$0xff]
        %v669 = vld [vmem:[#allocation2 + $0x88] sm:$0xff]
        %v670 = vld [vmem:[#allocation2 + $0x90] sm:$0xff]
        %v671 = vld [vmem:[#allocation2 + $0x98] sm:$0xff]
        %v672 = vld [vmem:[#allocation2 + $0xa0] sm:$0xff]
        %v673 = vld [vmem:[#allocation2 + $0xa8] sm:$0xff]
        %v674 = vld [vmem:[#allocation2 + $0xb0] sm:$0xff]
        %v675 = vld [vmem:[#allocation2 + $0xb8] sm:$0xff]
        %v676 = vld [vmem:[#allocation2 + $0xc0] sm:$0xff]
        %v677 = vld [vmem:[#allocation2 + $0xc8] sm:$0xff]
        %v678 = vld [vmem:[#allocation2 + $0xd0] sm:$0xff]
        %v679 = vld [vmem:[#allocation2 + $0xd8] sm:$0xff]
        %v680 = vld [vmem:[#allocation2 + $0xe0] sm:$0xff]
        %v681 = vld [vmem:[#allocation2 + $0xe8] sm:$0xff]
        %v682 = vld [vmem:[#allocation2 + $0xf0] sm:$0xff]
        %v683 = vld [vmem:[#allocation2 + $0xf8] sm:$0xff]
        %v684 = vld [vmem:[#allocation2 + $0x100] sm:$0xff]
        %v685 = vld [vmem:[#allocation2 + $0x108] sm:$0xff]
        %v686 = vld [vmem:[#allocation2 + $0x110] sm:$0xff]
        %v687 = vld [vmem:[#allocation2 + $0x118] sm:$0xff]
        %v688 = vld [vmem:[#allocation2 + $0x120] sm:$0xff]
        %v689 = vld [vmem:[#allocation2 + $0x128] sm:$0xff]
        %v690 = vld [vmem:[#allocation2 + $0x130] sm:$0xff]
        %v691 = vld [vmem:[#allocation2 + $0x138] sm:$0xff]
        %v692 = vld [vmem:[#allocation2 + $0x140] sm:$0xff]
        %v693 = vld [vmem:[#allocation2 + $0x148] sm:$0xff]
        %v694 = vld [vmem:[#allocation2 + $0x150] sm:$0xff]
        %v695 = vld [vmem:[#allocation2 + $0x158] sm:$0xff]
        %v696 = vld [vmem:[#allocation2 + $0x160] sm:$0xff]
        %v697 = vld [vmem:[#allocation2 + $0x168] sm:$0xff]
        %v698 = vld [vmem:[#allocation2 + $0x170] sm:$0xff]
        %v699 = vld [vmem:[#allocation2 + $0x178] sm:$0xff]
        %v700 = vld [vmem:[%s5] sm:$0x3f]
        %v702 = vperm.slane %v700, 0
        %v703 = vperm.slane %v700, 1
        %v704 = vperm.slane %v700, 2
        %v705 = vperm.slane %v700, 3
        %v706 = vperm.slane %v700, 4
        %v707 = vperm.slane %v700, 5
        %v762 = vunpack.c.l.b16 %v652
        %v763 = vunpack.c.h.b16 %v652
        %v764 = vunpack.c.l.b16 %v653
        %v765 = vunpack.c.h.b16 %v653
        %v766 = vunpack.c.l.b16 %v654
        %v767 = vunpack.c.h.b16 %v654
        %v768 = vunpack.c.l.b16 %v655
        %v769 = vunpack.c.h.b16 %v655
        %v770 = vunpack.c.l.b16 %v656
        %v771 = vunpack.c.h.b16 %v656
        %v772 = vunpack.c.l.b16 %v657
        %v773 = vunpack.c.h.b16 %v657
        %v774 = vunpack.c.l.b16 %v658
        %v775 = vunpack.c.h.b16 %v658
        %v776 = vunpack.c.l.b16 %v659
        %v777 = vunpack.c.h.b16 %v659
        %v778 = vunpack.c.l.b16 %v660
        %v779 = vunpack.c.h.b16 %v660
        %v780 = vunpack.c.l.b16 %v661
        %v781 = vunpack.c.h.b16 %v661
        %v782 = vunpack.c.l.b16 %v662
        %v783 = vunpack.c.h.b16 %v662
        %v784 = vunpack.c.l.b16 %v663
        %v785 = vunpack.c.h.b16 %v663
        %v786 = vunpack.c.l.b16 %v664
        %v787 = vunpack.c.h.b16 %v664
        %v788 = vunpack.c.l.b16 %v665
        %v789 = vunpack.c.h.b16 %v665
        %v790 = vunpack.c.l.b16 %v666
        %v791 = vunpack.c.h.b16 %v666
        %v792 = vunpack.c.l.b16 %v667
        %v793 = vunpack.c.h.b16 %v667
        %v794 = vunpack.c.l.b16 %v668
        %v795 = vunpack.c.h.b16 %v668
        %v796 = vunpack.c.l.b16 %v669
        %v797 = vunpack.c.h.b16 %v669
        %v798 = vunpack.c.l.b16 %v670
        %v799 = vunpack.c.h.b16 %v670
        %v800 = vunpack.c.l.b16 %v671
        %v801 = vunpack.c.h.b16 %v671
        %v802 = vunpack.c.l.b16 %v672
        %v803 = vunpack.c.h.b16 %v672
        %v804 = vunpack.c.l.b16 %v673
        %v805 = vunpack.c.h.b16 %v673
        %v806 = vunpack.c.l.b16 %v674
        %v807 = vunpack.c.h.b16 %v674
        %v808 = vunpack.c.l.b16 %v675
        %v809 = vunpack.c.h.b16 %v675
        %v810 = vunpack.c.l.b16 %v676
        %v811 = vunpack.c.h.b16 %v676
        %v812 = vunpack.c.l.b16 %v677
        %v813 = vunpack.c.h.b16 %v677
        %v814 = vunpack.c.l.b16 %v678
        %v815 = vunpack.c.h.b16 %v678
        %v816 = vunpack.c.l.b16 %v679
        %v817 = vunpack.c.h.b16 %v679
        %v818 = vunpack.c.l.b16 %v680
        %v819 = vunpack.c.h.b16 %v680
        %v820 = vunpack.c.l.b16 %v681
        %v821 = vunpack.c.h.b16 %v681
        %v822 = vunpack.c.l.b16 %v682
        %v823 = vunpack.c.h.b16 %v682
        %v824 = vunpack.c.l.b16 %v683
        %v825 = vunpack.c.h.b16 %v683
        %v826 = vunpack.c.l.b16 %v684
        %v827 = vunpack.c.h.b16 %v684
        %v828 = vunpack.c.l.b16 %v685
        %v829 = vunpack.c.h.b16 %v685
        %v830 = vunpack.c.l.b16 %v686
        %v831 = vunpack.c.h.b16 %v686
        %v832 = vunpack.c.l.b16 %v687
        %v833 = vunpack.c.h.b16 %v687
        %v834 = vunpack.c.l.b16 %v688
        %v835 = vunpack.c.h.b16 %v688
        %v836 = vunpack.c.l.b16 %v689
        %v837 = vunpack.c.h.b16 %v689
        %v838 = vunpack.c.l.b16 %v690
        %v839 = vunpack.c.h.b16 %v690
        %v840 = vunpack.c.l.b16 %v691
        %v841 = vunpack.c.h.b16 %v691
        %v842 = vunpack.c.l.b16 %v692
        %v843 = vunpack.c.h.b16 %v692
        %v844 = vunpack.c.l.b16 %v693
        %v845 = vunpack.c.h.b16 %v693
        %v846 = vunpack.c.l.b16 %v694
        %v847 = vunpack.c.h.b16 %v694
        %v848 = vunpack.c.l.b16 %v695
        %v849 = vunpack.c.h.b16 %v695
        %v850 = vunpack.c.l.b16 %v696
        %v851 = vunpack.c.h.b16 %v696
        %v852 = vunpack.c.l.b16 %v697
        %v853 = vunpack.c.h.b16 %v697
        %v854 = vunpack.c.l.b16 %v698
        %v855 = vunpack.c.h.b16 %v698
        %v856 = vunpack.c.l.b16 %v699
        %v857 = vunpack.c.h.b16 %v699
        %v858 = vpack.c.b16 %v768, %v762
        %v859 = vpack.c.b16 %v769, %v763
        %v860 = vpack.c.b16 %v770, %v764
        %v861 = vpack.c.b16 %v771, %v765
        %v862 = vpack.c.b16 %v772, %v766
        %v863 = vpack.c.b16 %v773, %v767
        %v864 = vpack.c.b16 %v780, %v774
        %v865 = vpack.c.b16 %v781, %v775
        %v866 = vpack.c.b16 %v782, %v776
        %v867 = vpack.c.b16 %v783, %v777
        %v868 = vpack.c.b16 %v784, %v778
        %v869 = vpack.c.b16 %v785, %v779
        %v870 = vpack.c.b16 %v792, %v786
        %v871 = vpack.c.b16 %v793, %v787
        %v872 = vpack.c.b16 %v794, %v788
        %v873 = vpack.c.b16 %v795, %v789
        %v874 = vpack.c.b16 %v796, %v790
        %v875 = vpack.c.b16 %v797, %v791
        %v876 = vpack.c.b16 %v804, %v798
        %v877 = vpack.c.b16 %v805, %v799
        %v878 = vpack.c.b16 %v806, %v800
        %v879 = vpack.c.b16 %v807, %v801
        %v880 = vpack.c.b16 %v808, %v802
        %v881 = vpack.c.b16 %v809, %v803
        %v882 = vpack.c.b16 %v816, %v810
        %v883 = vpack.c.b16 %v817, %v811
        %v884 = vpack.c.b16 %v818, %v812
        %v885 = vpack.c.b16 %v819, %v813
        %v886 = vpack.c.b16 %v820, %v814
        %v887 = vpack.c.b16 %v821, %v815
        %v888 = vpack.c.b16 %v828, %v822
        %v889 = vpack.c.b16 %v829, %v823
        %v890 = vpack.c.b16 %v830, %v824
        %v891 = vpack.c.b16 %v831, %v825
        %v892 = vpack.c.b16 %v832, %v826
        %v893 = vpack.c.b16 %v833, %v827
        %v894 = vpack.c.b16 %v840, %v834
        %v895 = vpack.c.b16 %v841, %v835
        %v896 = vpack.c.b16 %v842, %v836
        %v897 = vpack.c.b16 %v843, %v837
        %v898 = vpack.c.b16 %v844, %v838
        %v899 = vpack.c.b16 %v845, %v839
        %v900 = vpack.c.b16 %v852, %v846
        %v901 = vpack.c.b16 %v853, %v847
        %v902 = vpack.c.b16 %v854, %v848
        %v903 = vpack.c.b16 %v855, %v849
        %v904 = vpack.c.b16 %v856, %v850
        %v905 = vpack.c.b16 %v857, %v851
        %954 = vmatpush.bf16.msra.mxu0 %v900
        %955 = vmatpush.bf16.msra.mxu0 %v894
        %956 = vmatpush.bf16.msra.mxu0 %v888
        %957 = vmatpush.bf16.msra.mxu0 %v882
        %958 = vmatpush.bf16.msra.mxu0 %v876
        %959 = vmatpush.bf16.msra.mxu0 %v870
        %960 = vmatpush.bf16.msra.mxu0 %v864
        %961 = vmatpush.bf16.msra.mxu0 %v858
        %962 = vmatmul.bf16.gmra.mxu0 %v651
        %v963 = vpop.f32.mrf.mxu0
        %v964 = vadd.f32 %v702, %v963
        %v965 = vpop.f32.mrf.mxu0
        %966 = vdwg.mxu0
        %967 = vmatpush.bf16.msra.mxu0 %v901
        %968 = vmatpush.bf16.msra.mxu0 %v895
        %969 = vmatpush.bf16.msra.mxu0 %v889
        %970 = vmatpush.bf16.msra.mxu0 %v883
        %971 = vmatpush.bf16.msra.mxu0 %v877
        %972 = vmatpush.bf16.msra.mxu0 %v871
        %973 = vmatpush.bf16.msra.mxu0 %v865
        %974 = vmatpush.bf16.msra.mxu0 %v859
        %975 = vmatmul.bf16.gmra.mxu0 %v651
        %v976 = vpop.f32.mrf.mxu0
        %v977 = vadd.f32 %v703, %v976
        %v978 = vpop.f32.mrf.mxu0
        %979 = vdwg.mxu0
        %980 = vmatpush.bf16.msra.mxu0 %v902
        %981 = vmatpush.bf16.msra.mxu0 %v896
        %982 = vmatpush.bf16.msra.mxu0 %v890
        %983 = vmatpush.bf16.msra.mxu0 %v884
        %984 = vmatpush.bf16.msra.mxu0 %v878
        %985 = vmatpush.bf16.msra.mxu0 %v872
        %986 = vmatpush.bf16.msra.mxu0 %v866
        %987 = vmatpush.bf16.msra.mxu0 %v860
        %988 = vmatmul.bf16.gmra.mxu0 %v651
        %v989 = vpop.f32.mrf.mxu0
        %v990 = vadd.f32 %v704, %v989
        %v991 = vpop.f32.mrf.mxu0
        %992 = vdwg.mxu0
        %993 = vmatpush.bf16.msra.mxu0 %v903
        %994 = vmatpush.bf16.msra.mxu0 %v897
        %995 = vmatpush.bf16.msra.mxu0 %v891
        %996 = vmatpush.bf16.msra.mxu0 %v885
        %997 = vmatpush.bf16.msra.mxu0 %v879
        %998 = vmatpush.bf16.msra.mxu0 %v873
        %999 = vmatpush.bf16.msra.mxu0 %v867
        %1000 = vmatpush.bf16.msra.mxu0 %v861
        %1001 = vmatmul.bf16.gmra.mxu0 %v651
        %v1002 = vpop.f32.mrf.mxu0
        %v1003 = vadd.f32 %v705, %v1002
        %v1004 = vpop.f32.mrf.mxu0
        %1005 = vdwg.mxu0
        %1006 = vmatpush.bf16.msra.mxu0 %v904
        %1007 = vmatpush.bf16.msra.mxu0 %v898
        %1008 = vmatpush.bf16.msra.mxu0 %v892
        %1009 = vmatpush.bf16.msra.mxu0 %v886
        %1010 = vmatpush.bf16.msra.mxu0 %v880
        %1011 = vmatpush.bf16.msra.mxu0 %v874
        %1012 = vmatpush.bf16.msra.mxu0 %v868
        %1013 = vmatpush.bf16.msra.mxu0 %v862
        %1014 = vmatmul.bf16.gmra.mxu0 %v651
        %v1015 = vpop.f32.mrf.mxu0
        %v1016 = vadd.f32 %v706, %v1015
        %v1017 = vpop.f32.mrf.mxu0
        %1018 = vdwg.mxu0
        %1019 = vmatpush.bf16.msra.mxu0 %v905
        %1020 = vmatpush.bf16.msra.mxu0 %v899
        %1021 = vmatpush.bf16.msra.mxu0 %v893
        %1022 = vmatpush.bf16.msra.mxu0 %v887
        %1023 = vmatpush.bf16.msra.mxu0 %v881
        %1024 = vmatpush.bf16.msra.mxu0 %v875
        %1025 = vmatpush.bf16.msra.mxu0 %v869
        %1026 = vmatpush.bf16.msra.mxu0 %v863
        %1027 = vmatmul.bf16.gmra.mxu0 %v651
        %v1028 = vpop.f32.mrf.mxu0
        %v1029 = vadd.f32 %v707, %v1028
        %v1030 = vpop.f32.mrf.mxu0
        %1031 = vdwg.mxu0
        %v1032 = vpack.c.bf16 %v964, %v964
        %v1033 = vpack.c.bf16 %v990, %v990
        %v1034 = vpack.c.bf16 %v1016, %v1016
        %1035 = vmatpush.bf16.xpose.msra.mxu0 0
        %1036 = vmatpush.bf16.xpose.msra.mxu0 0
        %1037 = vmatpush.bf16.xpose.msra.mxu0 0
        %1038 = vmatpush.bf16.xpose.msra.mxu0 0
        %1039 = vmatpush.bf16.xpose.msra.mxu0 0
        %1040 = vmatpush.bf16.xpose.msra.mxu0 0
        %1041 = vmatpush.bf16.xpose.msra.mxu0 0
        %1042 = vmatpush.bf16.xpose.msra.mxu0 %v1033
        %1043 = vmatmul.bf16.gmra.mxu0 %v1032
        %v1044 = vpop.f32.mrf.mxu0
        %v1045 = vadd.f32 0.0, %v1044
        %v1046 = vpop.f32.mrf.mxu0
        %1047 = vdwg.mxu0
        %v1048 = vmul.f32 %v1045, 0.125
        %v1050 = vperm.slane %v613, 0
        %v1052 = vadd.f32 %v1048, %v1050
        %vm1053 = vcmask 64512
        %v1054 = vsel %vm1053, %v1052, -inf
        %1055 = vmax.xlane.f32.xlu0 %v1054
        %v1056 = vpop.xlane.xlu0 %1055
        %v1057 = vsub.f32 %v1052, %v1056
        %v1058 = vmul.f32 %v1057, 1.442695
        %v1059 = vpow.pop %v1058
        %v1060 = vsel %vm1053, %v1059, 0.0
        %1061 = vadd.xlane.f32.xlu0 %v1060
        %v1062 = vpop.xlane.xlu0 %1061
        %v1063 = vrcp.pop %v1062
        %v1064 = vmul.f32 %v1059, %v1063
        %v1065 = vpack.c.bf16 %v1064, %v1064
        %v1067 = vsel %vm1053, %v1065, 0
        %vm1069 = vcmask 1043456
        %v1071 = vsel %vm1069, %v1034, 0
        %1073 = vmatpush.bf16.msra.mxu0 0
        %1074 = vmatpush.bf16.msra.mxu0 0
        %1075 = vmatpush.bf16.msra.mxu0 0
        %1076 = vmatpush.bf16.msra.mxu0 0
        %1077 = vmatpush.bf16.msra.mxu0 0
        %1078 = vmatpush.bf16.msra.mxu0 0
        %1079 = vmatpush.bf16.msra.mxu0 0
        %1080 = vmatpush.bf16.msra.mxu0 %v1071
        %1081 = vmatmul.bf16.gmra.mxu0 %v1067
        %v1082 = vpop.f32.mrf.mxu0
        %v1083 = vadd.f32 0.0, %v1082
        %v1084 = vpop.f32.mrf.mxu0
        %1085 = vdwg.mxu0
        %v1086 = vpack.c.bf16 %v977, %v977
        %v1087 = vpack.c.bf16 %v1003, %v1003
        %v1088 = vpack.c.bf16 %v1029, %v1029
        %1089 = vmatpush.bf16.xpose.msra.mxu0 0
        %1090 = vmatpush.bf16.xpose.msra.mxu0 0
        %1091 = vmatpush.bf16.xpose.msra.mxu0 0
        %1092 = vmatpush.bf16.xpose.msra.mxu0 0
        %1093 = vmatpush.bf16.xpose.msra.mxu0 0
        %1094 = vmatpush.bf16.xpose.msra.mxu0 0
        %1095 = vmatpush.bf16.xpose.msra.mxu0 0
        %1096 = vmatpush.bf16.xpose.msra.mxu0 %v1087
        %1097 = vmatmul.bf16.gmra.mxu0 %v1086
        %v1098 = vpop.f32.mrf.mxu0
        %v1099 = vadd.f32 0.0, %v1098
        %v1100 = vpop.f32.mrf.mxu0
        %1101 = vdwg.mxu0
        %v1102 = vmul.f32 %v1099, 0.125
        %v1103 = vadd.f32 %v1102, %v1050
        %v1104 = vsel %vm1053, %v1103, -inf
        %1105 = vmax.xlane.f32.xlu0 %v1104
        %v1106 = vpop.xlane.xlu0 %1105
        %v1107 = vsub.f32 %v1103, %v1106
        %v1108 = vmul.f32 %v1107, 1.442695
        %v1109 = vpow.pop %v1108
        %v1110 = vsel %vm1053, %v1109, 0.0
        %1111 = vadd.xlane.f32.xlu0 %v1110
        %v1112 = vpop.xlane.xlu0 %1111
        %v1113 = vrcp.pop %v1112
        %v1114 = vmul.f32 %v1109, %v1113
        %v1115 = vpack.c.bf16 %v1114, %v1114
        %v1117 = vsel %vm1053, %v1115, 0
        %v1120 = vsel %vm1069, %v1088, 0
        %1122 = vmatpush.bf16.msra.mxu0 0
        %1123 = vmatpush.bf16.msra.mxu0 0
        %1124 = vmatpush.bf16.msra.mxu0 0
        %1125 = vmatpush.bf16.msra.mxu0 0
        %1126 = vmatpush.bf16.msra.mxu0 0
        %1127 = vmatpush.bf16.msra.mxu0 0
        %1128 = vmatpush.bf16.msra.mxu0 0
        %1129 = vmatpush.bf16.msra.mxu0 %v1120
        %1130 = vmatmul.bf16.gmra.mxu0 %v1117
        %v1131 = vpop.f32.mrf.mxu0
        %v1132 = vadd.f32 0.0, %v1131
        %v1133 = vpop.f32.mrf.mxu0
        %1134 = vdwg.mxu0
        %v1135 = vpack.c.bf16 %v1083, %v1083
        %v1136 = vpack.c.bf16 %v1132, %v1132
        %v1137 = vld [vmem:[%s6] sm:$0xf]
        %v1138 = vld [vmem:[%s6 + $0x4] sm:$0xf]
        %v1139 = vld [vmem:[%s6 + $0x8] sm:$0xf]
        %v1140 = vld [vmem:[%s6 + $0xc] sm:$0xf]
        %v1141 = vld [vmem:[%s6 + $0x10] sm:$0xf]
        %v1142 = vld [vmem:[%s6 + $0x14] sm:$0xf]
        %v1143 = vld [vmem:[%s6 + $0x18] sm:$0xf]
        %v1144 = vld [vmem:[%s6 + $0x1c] sm:$0xf]
        %v1145 = vld [vmem:[%s6 + $0x20] sm:$0xf]
        %v1146 = vld [vmem:[%s6 + $0x24] sm:$0xf]
        %v1147 = vld [vmem:[%s6 + $0x28] sm:$0xf]
        %v1148 = vld [vmem:[%s6 + $0x2c] sm:$0xf]
        %v1149 = vld [vmem:[%s6 + $0x30] sm:$0xf]
        %v1150 = vld [vmem:[%s6 + $0x34] sm:$0xf]
        %v1151 = vld [vmem:[%s6 + $0x38] sm:$0xf]
        %v1152 = vld [vmem:[%s6 + $0x3c] sm:$0xf]
        %v1153 = vld [vmem:[%s6 + $0x40] sm:$0xf]
        %v1154 = vld [vmem:[%s6 + $0x44] sm:$0xf]
        %v1155 = vld [vmem:[%s6 + $0x48] sm:$0xf]
        %v1156 = vld [vmem:[%s6 + $0x4c] sm:$0xf]
        %v1157 = vld [vmem:[%s6 + $0x50] sm:$0xf]
        %v1158 = vld [vmem:[%s6 + $0x54] sm:$0xf]
        %v1159 = vld [vmem:[%s6 + $0x58] sm:$0xf]
        %v1160 = vld [vmem:[%s6 + $0x5c] sm:$0xf]
        %v1161 = vld [vmem:[%s6 + $0x60] sm:$0xf]
        %v1162 = vld [vmem:[%s6 + $0x64] sm:$0xf]
        %v1163 = vld [vmem:[%s6 + $0x68] sm:$0xf]
        %v1164 = vld [vmem:[%s6 + $0x6c] sm:$0xf]
        %v1165 = vld [vmem:[%s6 + $0x70] sm:$0xf]
        %v1166 = vld [vmem:[%s6 + $0x74] sm:$0xf]
        %v1167 = vld [vmem:[%s6 + $0x78] sm:$0xf]
        %v1168 = vld [vmem:[%s6 + $0x7c] sm:$0xf]
        %v1201 = vunpack.c.l.b16 %v1137
        %v1202 = vunpack.c.l.b16 %v1138
        %v1203 = vunpack.c.l.b16 %v1139
        %v1204 = vunpack.c.l.b16 %v1140
        %v1205 = vunpack.c.l.b16 %v1141
        %v1206 = vunpack.c.l.b16 %v1142
        %v1207 = vunpack.c.l.b16 %v1143
        %v1208 = vunpack.c.l.b16 %v1144
        %v1209 = vunpack.c.l.b16 %v1145
        %v1210 = vunpack.c.l.b16 %v1146
        %v1211 = vunpack.c.l.b16 %v1147
        %v1212 = vunpack.c.l.b16 %v1148
        %v1213 = vunpack.c.l.b16 %v1149
        %v1214 = vunpack.c.l.b16 %v1150
        %v1215 = vunpack.c.l.b16 %v1151
        %v1216 = vunpack.c.l.b16 %v1152
        %v1217 = vunpack.c.l.b16 %v1153
        %v1218 = vunpack.c.l.b16 %v1154
        %v1219 = vunpack.c.l.b16 %v1155
        %v1220 = vunpack.c.l.b16 %v1156
        %v1221 = vunpack.c.l.b16 %v1157
        %v1222 = vunpack.c.l.b16 %v1158
        %v1223 = vunpack.c.l.b16 %v1159
        %v1224 = vunpack.c.l.b16 %v1160
        %v1225 = vunpack.c.l.b16 %v1161
        %v1226 = vunpack.c.l.b16 %v1162
        %v1227 = vunpack.c.l.b16 %v1163
        %v1228 = vunpack.c.l.b16 %v1164
        %v1229 = vunpack.c.l.b16 %v1165
        %v1230 = vunpack.c.l.b16 %v1166
        %v1231 = vunpack.c.l.b16 %v1167
        %v1232 = vunpack.c.l.b16 %v1168
        %v1233 = vpack.c.b16 %v1202, %v1201
        %v1234 = vpack.c.b16 %v1204, %v1203
        %v1235 = vpack.c.b16 %v1206, %v1205
        %v1236 = vpack.c.b16 %v1208, %v1207
        %v1237 = vpack.c.b16 %v1210, %v1209
        %v1238 = vpack.c.b16 %v1212, %v1211
        %v1239 = vpack.c.b16 %v1214, %v1213
        %v1240 = vpack.c.b16 %v1216, %v1215
        %v1241 = vpack.c.b16 %v1218, %v1217
        %v1242 = vpack.c.b16 %v1220, %v1219
        %v1243 = vpack.c.b16 %v1222, %v1221
        %v1244 = vpack.c.b16 %v1224, %v1223
        %v1245 = vpack.c.b16 %v1226, %v1225
        %v1246 = vpack.c.b16 %v1228, %v1227
        %v1247 = vpack.c.b16 %v1230, %v1229
        %v1248 = vpack.c.b16 %v1232, %v1231
        %1265 = vmatpush.bf16.msra.mxu0 %v1240
        %1266 = vmatpush.bf16.msra.mxu0 %v1239
        %1267 = vmatpush.bf16.msra.mxu0 %v1238
        %1268 = vmatpush.bf16.msra.mxu0 %v1237
        %1269 = vmatpush.bf16.msra.mxu0 %v1236
        %1270 = vmatpush.bf16.msra.mxu0 %v1235
        %1271 = vmatpush.bf16.msra.mxu0 %v1234
        %1272 = vmatpush.bf16.msra.mxu0 %v1233
        %1273 = vmatmul.bf16.gmra.mxu0 %v1135
        %v1274 = vpop.f32.mrf.mxu0
        %v1275 = vadd.f32 0.0, %v1274
        %v1276 = vpop.f32.mrf.mxu0
        %1277 = vdwg.mxu0
        %1278 = vmatpush.bf16.msra.mxu0 %v1248
        %1279 = vmatpush.bf16.msra.mxu0 %v1247
        %1280 = vmatpush.bf16.msra.mxu0 %v1246
        %1281 = vmatpush.bf16.msra.mxu0 %v1245
        %1282 = vmatpush.bf16.msra.mxu0 %v1244
        %1283 = vmatpush.bf16.msra.mxu0 %v1243
        %1284 = vmatpush.bf16.msra.mxu0 %v1242
        %1285 = vmatpush.bf16.msra.mxu0 %v1241
        %1286 = vmatmul.bf16.gmra.mxu0 %v1136
        %v1287 = vpop.f32.mrf.mxu0
        %v1288 = vadd.f32 %v1275, %v1287
        %v1289 = vpop.f32.mrf.mxu0
        %1290 = vdwg.mxu0
        %v1291 = vadd.f32 %v650, %v1288
        %v1292 = vld [vmem:[%s7] sm:$0x1]
        %v1294 = vperm.slane %v1292, 0
        %v1296 = vadd.f32 %v1291, %v1294
        %v1297 = vld [vmem:[%s8] sm:$0x1]
        %v1298 = vld [vmem:[%s9] sm:$0x1]
        %1299 = vadd.xlane.f32.xlu0 %v1296
        %v1300 = vpop.xlane.xlu0 %1299
        %v1301 = vmul.f32 %v1300, %v624
        %v1302 = vsub.f32 %v1296, %v1301
        %v1303 = vmul.f32 %v1302, %v1302
        %1304 = vadd.xlane.f32.xlu0 %v1303
        %v1305 = vpop.xlane.xlu0 %1304
        %v1306 = vmul.f32 %v1305, %v624
        %v1307 = vadd.f32 %v1306, 1e-12
        %v1308 = vrsqrt.pop %v1307
        %v1309 = vmul.f32 %v1308, %v1307
        %v1310 = vmul.f32 %v1309, %v1308
        %v1311 = vmul.f32 0.5, %v1310
        %v1312 = vsub.f32 1.5, %v1311
        %v1313 = vmul.f32 %v1308, %v1312
        %vm1314 = vweird.f32 %v1307
        %vm1315 = vweird.f32 %v1308
        %vm1316 = vmor %vm1314, %vm1315
        %v1317 = vsel %vm1316, %v1308, %v1313
        %v1318 = vmul.f32 %v1302, %v1317
        %v1320 = vperm.slane %v1297, 0
        %v1322 = vmul.f32 %v1318, %v1320
        %v1324 = vperm.slane %v1298, 0
        %v1326 = vadd.f32 %v1322, %v1324
        %v1327 = vpack.c.bf16 %v1326, %v1326
        %v1328 = vld [vmem:[#allocation4] sm:$0xff]
        %v1329 = vld [vmem:[#allocation4 + $0x8] sm:$0xff]
        %v1330 = vld [vmem:[#allocation4 + $0x10] sm:$0xff]
        %v1331 = vld [vmem:[#allocation4 + $0x18] sm:$0xff]
        %v1332 = vld [vmem:[#allocation4 + $0x20] sm:$0xff]
        %v1333 = vld [vmem:[#allocation4 + $0x28] sm:$0xff]
        %v1334 = vld [vmem:[#allocation4 + $0x30] sm:$0xff]
        %v1335 = vld [vmem:[#allocation4 + $0x38] sm:$0xff]
        %v1336 = vld [vmem:[#allocation4 + $0x40] sm:$0xff]
        %v1337 = vld [vmem:[#allocation4 + $0x48] sm:$0xff]
        %v1338 = vld [vmem:[#allocation4 + $0x50] sm:$0xff]
        %v1339 = vld [vmem:[#allocation4 + $0x58] sm:$0xff]
        %v1340 = vld [vmem:[#allocation4 + $0x60] sm:$0xff]
        %v1341 = vld [vmem:[#allocation4 + $0x68] sm:$0xff]
        %v1342 = vld [vmem:[#allocation4 + $0x70] sm:$0xff]
        %v1343 = vld [vmem:[#allocation4 + $0x78] sm:$0xff]
        %v1344 = vld [vmem:[#allocation4 + $0x80] sm:$0xff]
        %v1345 = vld [vmem:[#allocation4 + $0x88] sm:$0xff]
        %v1346 = vld [vmem:[#allocation4 + $0x90] sm:$0xff]
        %v1347 = vld [vmem:[#allocation4 + $0x98] sm:$0xff]
        %v1348 = vld [vmem:[#allocation4 + $0xa0] sm:$0xff]
        %v1349 = vld [vmem:[#allocation4 + $0xa8] sm:$0xff]
        %v1350 = vld [vmem:[#allocation4 + $0xb0] sm:$0xff]
        %v1351 = vld [vmem:[#allocation4 + $0xb8] sm:$0xff]
        %v1352 = vld [vmem:[#allocation4 + $0xc0] sm:$0xff]
        %v1353 = vld [vmem:[#allocation4 + $0xc8] sm:$0xff]
        %v1354 = vld [vmem:[#allocation4 + $0xd0] sm:$0xff]
        %v1355 = vld [vmem:[#allocation4 + $0xd8] sm:$0xff]
        %v1356 = vld [vmem:[#allocation4 + $0xe0] sm:$0xff]
        %v1357 = vld [vmem:[#allocation4 + $0xe8] sm:$0xff]
        %v1358 = vld [vmem:[#allocation4 + $0xf0] sm:$0xff]
        %v1359 = vld [vmem:[#allocation4 + $0xf8] sm:$0xff]
        %v1360 = vld [vmem:[%s11] sm:$0xf]
        %v1362 = vperm.slane %v1360, 0
        %v1363 = vperm.slane %v1360, 1
        %v1364 = vperm.slane %v1360, 2
        %v1365 = vperm.slane %v1360, 3
        %v1402 = vunpack.c.l.b16 %v1328
        %v1403 = vunpack.c.h.b16 %v1328
        %v1404 = vunpack.c.l.b16 %v1329
        %v1405 = vunpack.c.h.b16 %v1329
        %v1406 = vunpack.c.l.b16 %v1330
        %v1407 = vunpack.c.h.b16 %v1330
        %v1408 = vunpack.c.l.b16 %v1331
        %v1409 = vunpack.c.h.b16 %v1331
        %v1410 = vunpack.c.l.b16 %v1332
        %v1411 = vunpack.c.h.b16 %v1332
        %v1412 = vunpack.c.l.b16 %v1333
        %v1413 = vunpack.c.h.b16 %v1333
        %v1414 = vunpack.c.l.b16 %v1334
        %v1415 = vunpack.c.h.b16 %v1334
        %v1416 = vunpack.c.l.b16 %v1335
        %v1417 = vunpack.c.h.b16 %v1335
        %v1418 = vunpack.c.l.b16 %v1336
        %v1419 = vunpack.c.h.b16 %v1336
        %v1420 = vunpack.c.l.b16 %v1337
        %v1421 = vunpack.c.h.b16 %v1337
        %v1422 = vunpack.c.l.b16 %v1338
        %v1423 = vunpack.c.h.b16 %v1338
        %v1424 = vunpack.c.l.b16 %v1339
        %v1425 = vunpack.c.h.b16 %v1339
        %v1426 = vunpack.c.l.b16 %v1340
        %v1427 = vunpack.c.h.b16 %v1340
        %v1428 = vunpack.c.l.b16 %v1341
        %v1429 = vunpack.c.h.b16 %v1341
        %v1430 = vunpack.c.l.b16 %v1342
        %v1431 = vunpack.c.h.b16 %v1342
        %v1432 = vunpack.c.l.b16 %v1343
        %v1433 = vunpack.c.h.b16 %v1343
        %v1434 = vunpack.c.l.b16 %v1344
        %v1435 = vunpack.c.h.b16 %v1344
        %v1436 = vunpack.c.l.b16 %v1345
        %v1437 = vunpack.c.h.b16 %v1345
        %v1438 = vunpack.c.l.b16 %v1346
        %v1439 = vunpack.c.h.b16 %v1346
        %v1440 = vunpack.c.l.b16 %v1347
        %v1441 = vunpack.c.h.b16 %v1347
        %v1442 = vunpack.c.l.b16 %v1348
        %v1443 = vunpack.c.h.b16 %v1348
        %v1444 = vunpack.c.l.b16 %v1349
        %v1445 = vunpack.c.h.b16 %v1349
        %v1446 = vunpack.c.l.b16 %v1350
        %v1447 = vunpack.c.h.b16 %v1350
        %v1448 = vunpack.c.l.b16 %v1351
        %v1449 = vunpack.c.h.b16 %v1351
        %v1450 = vunpack.c.l.b16 %v1352
        %v1451 = vunpack.c.h.b16 %v1352
        %v1452 = vunpack.c.l.b16 %v1353
        %v1453 = vunpack.c.h.b16 %v1353
        %v1454 = vunpack.c.l.b16 %v1354
        %v1455 = vunpack.c.h.b16 %v1354
        %v1456 = vunpack.c.l.b16 %v1355
        %v1457 = vunpack.c.h.b16 %v1355
        %v1458 = vunpack.c.l.b16 %v1356
        %v1459 = vunpack.c.h.b16 %v1356
        %v1460 = vunpack.c.l.b16 %v1357
        %v1461 = vunpack.c.h.b16 %v1357
        %v1462 = vunpack.c.l.b16 %v1358
        %v1463 = vunpack.c.h.b16 %v1358
        %v1464 = vunpack.c.l.b16 %v1359
        %v1465 = vunpack.c.h.b16 %v1359
        %v1466 = vpack.c.b16 %v1406, %v1402
        %v1467 = vpack.c.b16 %v1407, %v1403
        %v1468 = vpack.c.b16 %v1408, %v1404
        %v1469 = vpack.c.b16 %v1409, %v1405
        %v1470 = vpack.c.b16 %v1414, %v1410
        %v1471 = vpack.c.b16 %v1415, %v1411
        %v1472 = vpack.c.b16 %v1416, %v1412
        %v1473 = vpack.c.b16 %v1417, %v1413
        %v1474 = vpack.c.b16 %v1422, %v1418
        %v1475 = vpack.c.b16 %v1423, %v1419
        %v1476 = vpack.c.b16 %v1424, %v1420
        %v1477 = vpack.c.b16 %v1425, %v1421
        %v1478 = vpack.c.b16 %v1430, %v1426
        %v1479 = vpack.c.b16 %v1431, %v1427
        %v1480 = vpack.c.b16 %v1432, %v1428
        %v1481 = vpack.c.b16 %v1433, %v1429
        %v1482 = vpack.c.b16 %v1438, %v1434
        %v1483 = vpack.c.b16 %v1439, %v1435
        %v1484 = vpack.c.b16 %v1440, %v1436
        %v1485 = vpack.c.b16 %v1441, %v1437
        %v1486 = vpack.c.b16 %v1446, %v1442
        %v1487 = vpack.c.b16 %v1447, %v1443
        %v1488 = vpack.c.b16 %v1448, %v1444
        %v1489 = vpack.c.b16 %v1449, %v1445
        %v1490 = vpack.c.b16 %v1454, %v1450
        %v1491 = vpack.c.b16 %v1455, %v1451
        %v1492 = vpack.c.b16 %v1456, %v1452
        %v1493 = vpack.c.b16 %v1457, %v1453
        %v1494 = vpack.c.b16 %v1462, %v1458
        %v1495 = vpack.c.b16 %v1463, %v1459
        %v1496 = vpack.c.b16 %v1464, %v1460
        %v1497 = vpack.c.b16 %v1465, %v1461
        %1530 = vmatpush.bf16.msra.mxu0 %v1494
        %1531 = vmatpush.bf16.msra.mxu0 %v1490
        %1532 = vmatpush.bf16.msra.mxu0 %v1486
        %1533 = vmatpush.bf16.msra.mxu0 %v1482
        %1534 = vmatpush.bf16.msra.mxu0 %v1478
        %1535 = vmatpush.bf16.msra.mxu0 %v1474
        %1536 = vmatpush.bf16.msra.mxu0 %v1470
        %1537 = vmatpush.bf16.msra.mxu0 %v1466
        %1538 = vmatmul.bf16.gmra.mxu0 %v1327
        %v1539 = vpop.f32.mrf.mxu0
        %v1540 = vadd.f32 %v1362, %v1539
        %v1541 = vpop.f32.mrf.mxu0
        %1542 = vdwg.mxu0
        %1543 = vmatpush.bf16.msra.mxu0 %v1495
        %1544 = vmatpush.bf16.msra.mxu0 %v1491
        %1545 = vmatpush.bf16.msra.mxu0 %v1487
        %1546 = vmatpush.bf16.msra.mxu0 %v1483
        %1547 = vmatpush.bf16.msra.mxu0 %v1479
        %1548 = vmatpush.bf16.msra.mxu0 %v1475
        %1549 = vmatpush.bf16.msra.mxu0 %v1471
        %1550 = vmatpush.bf16.msra.mxu0 %v1467
        %1551 = vmatmul.bf16.gmra.mxu0 %v1327
        %v1552 = vpop.f32.mrf.mxu0
        %v1553 = vadd.f32 %v1363, %v1552
        %v1554 = vpop.f32.mrf.mxu0
        %1555 = vdwg.mxu0
        %1556 = vmatpush.bf16.msra.mxu0 %v1496
        %1557 = vmatpush.bf16.msra.mxu0 %v1492
        %1558 = vmatpush.bf16.msra.mxu0 %v1488
        %1559 = vmatpush.bf16.msra.mxu0 %v1484
        %1560 = vmatpush.bf16.msra.mxu0 %v1480
        %1561 = vmatpush.bf16.msra.mxu0 %v1476
        %1562 = vmatpush.bf16.msra.mxu0 %v1472
        %1563 = vmatpush.bf16.msra.mxu0 %v1468
        %1564 = vmatmul.bf16.gmra.mxu0 %v1327
        %v1565 = vpop.f32.mrf.mxu0
        %v1566 = vadd.f32 %v1364, %v1565
        %v1567 = vpop.f32.mrf.mxu0
        %1568 = vdwg.mxu0
        %1569 = vmatpush.bf16.msra.mxu0 %v1497
        %1570 = vmatpush.bf16.msra.mxu0 %v1493
        %1571 = vmatpush.bf16.msra.mxu0 %v1489
        %1572 = vmatpush.bf16.msra.mxu0 %v1485
        %1573 = vmatpush.bf16.msra.mxu0 %v1481
        %1574 = vmatpush.bf16.msra.mxu0 %v1477
        %1575 = vmatpush.bf16.msra.mxu0 %v1473
        %1576 = vmatpush.bf16.msra.mxu0 %v1469
        %1577 = vmatmul.bf16.gmra.mxu0 %v1327
        %v1578 = vpop.f32.mrf.mxu0
        %v1579 = vadd.f32 %v1365, %v1578
        %v1580 = vpop.f32.mrf.mxu0
        %1581 = vdwg.mxu0
        %v1582 = vmul.f32 %v1540, 0.5
        %v1583 = vmul.f32 %v1553, 0.5
        %v1584 = vmul.f32 %v1566, 0.5
        %v1585 = vmul.f32 %v1579, 0.5
        %v1586 = vmul.f32 %v1540, 0.044715
        %v1587 = vmul.f32 %v1553, 0.044715
        %v1588 = vmul.f32 %v1566, 0.044715
        %v1589 = vmul.f32 %v1579, 0.044715
        %v1590 = vmul.f32 %v1586, %v1540
        %v1591 = vmul.f32 %v1587, %v1553
        %v1592 = vmul.f32 %v1588, %v1566
        %v1593 = vmul.f32 %v1589, %v1579
        %v1594 = vmul.f32 %v1590, %v1540
        %v1595 = vmul.f32 %v1591, %v1553
        %v1596 = vmul.f32 %v1592, %v1566
        %v1597 = vmul.f32 %v1593, %v1579
        %v1598 = vadd.f32 %v1540, %v1594
        %v1599 = vadd.f32 %v1553, %v1595
        %v1600 = vadd.f32 %v1566, %v1596
        %v1601 = vadd.f32 %v1579, %v1597
        %v1602 = vmul.f32 %v1598, 0.7978846
        %v1603 = vmul.f32 %v1599, 0.7978846
        %v1604 = vmul.f32 %v1600, 0.7978846
        %v1605 = vmul.f32 %v1601, 0.7978846
        %v1606 = vtanh.pop %v1602
        %v1607 = vtanh.pop %v1603
        %v1608 = vtanh.pop %v1604
        %v1609 = vtanh.pop %v1605
        %v1610 = vadd.f32 %v1606, 1.0
        %v1611 = vadd.f32 %v1607, 1.0
        %v1612 = vadd.f32 %v1608, 1.0
        %v1613 = vadd.f32 %v1609, 1.0
        %v1614 = vmul.f32 %v1582, %v1610
        %v1615 = vmul.f32 %v1583, %v1611
        %v1616 = vmul.f32 %v1584, %v1612
        %v1617 = vmul.f32 %v1585, %v1613
        %v1618 = vpack.c.bf16 %v1614, %v1614
        %v1619 = vpack.c.bf16 %v1615, %v1615
        %v1620 = vpack.c.bf16 %v1616, %v1616
        %v1621 = vpack.c.bf16 %v1617, %v1617
        %v1622 = vld [vmem:[#allocation6] sm:$0xf]
        %v1623 = vld [vmem:[#allocation6 + $0x4] sm:$0xf]
        %v1624 = vld [vmem:[#allocation6 + $0x8] sm:$0xf]
        %v1625 = vld [vmem:[#allocation6 + $0xc] sm:$0xf]
        %v1626 = vld [vmem:[#allocation6 + $0x10] sm:$0xf]
        %v1627 = vld [vmem:[#allocation6 + $0x14] sm:$0xf]
        %v1628 = vld [vmem:[#allocation6 + $0x18] sm:$0xf]
        %v1629 = vld [vmem:[#allocation6 + $0x1c] sm:$0xf]
        %v1630 = vld [vmem:[#allocation6 + $0x20] sm:$0xf]
        %v1631 = vld [vmem:[#allocation6 + $0x24] sm:$0xf]
        %v1632 = vld [vmem:[#allocation6 + $0x28] sm:$0xf]
        %v1633 = vld [vmem:[#allocation6 + $0x2c] sm:$0xf]
        %v1634 = vld [vmem:[#allocation6 + $0x30] sm:$0xf]
        %v1635 = vld [vmem:[#allocation6 + $0x34] sm:$0xf]
        %v1636 = vld [vmem:[#allocation6 + $0x38] sm:$0xf]
        %v1637 = vld [vmem:[#allocation6 + $0x3c] sm:$0xf]
        %v1638 = vld [vmem:[#allocation6 + $0x40] sm:$0xf]
        %v1639 = vld [vmem:[#allocation6 + $0x44] sm:$0xf]
        %v1640 = vld [vmem:[#allocation6 + $0x48] sm:$0xf]
        %v1641 = vld [vmem:[#allocation6 + $0x4c] sm:$0xf]
        %v1642 = vld [vmem:[#allocation6 + $0x50] sm:$0xf]
        %v1643 = vld [vmem:[#allocation6 + $0x54] sm:$0xf]
        %v1644 = vld [vmem:[#allocation6 + $0x58] sm:$0xf]
        %v1645 = vld [vmem:[#allocation6 + $0x5c] sm:$0xf]
        %v1646 = vld [vmem:[#allocation6 + $0x60] sm:$0xf]
        %v1647 = vld [vmem:[#allocation6 + $0x64] sm:$0xf]
        %v1648 = vld [vmem:[#allocation6 + $0x68] sm:$0xf]
        %v1649 = vld [vmem:[#allocation6 + $0x6c] sm:$0xf]
        %v1650 = vld [vmem:[#allocation6 + $0x70] sm:$0xf]
        %v1651 = vld [vmem:[#allocation6 + $0x74] sm:$0xf]
        %v1652 = vld [vmem:[#allocation6 + $0x78] sm:$0xf]
        %v1653 = vld [vmem:[#allocation6 + $0x7c] sm:$0xf]
        %v1654 = vld [vmem:[#allocation6 + $0x80] sm:$0xf]
        %v1655 = vld [vmem:[#allocation6 + $0x84] sm:$0xf]
        %v1656 = vld [vmem:[#allocation6 + $0x88] sm:$0xf]
        %v1657 = vld [vmem:[#allocation6 + $0x8c] sm:$0xf]
        %v1658 = vld [vmem:[#allocation6 + $0x90] sm:$0xf]
        %v1659 = vld [vmem:[#allocation6 + $0x94] sm:$0xf]
        %v1660 = vld [vmem:[#allocation6 + $0x98] sm:$0xf]
        %v1661 = vld [vmem:[#allocation6 + $0x9c] sm:$0xf]
        %v1662 = vld [vmem:[#allocation6 + $0xa0] sm:$0xf]
        %v1663 = vld [vmem:[#allocation6 + $0xa4] sm:$0xf]
        %v1664 = vld [vmem:[#allocation6 + $0xa8] sm:$0xf]
        %v1665 = vld [vmem:[#allocation6 + $0xac] sm:$0xf]
        %v1666 = vld [vmem:[#allocation6 + $0xb0] sm:$0xf]
        %v1667 = vld [vmem:[#allocation6 + $0xb4] sm:$0xf]
        %v1668 = vld [vmem:[#allocation6 + $0xb8] sm:$0xf]
        %v1669 = vld [vmem:[#allocation6 + $0xbc] sm:$0xf]
        %v1670 = vld [vmem:[#allocation6 + $0xc0] sm:$0xf]
        %v1671 = vld [vmem:[#allocation6 + $0xc4] sm:$0xf]
        %v1672 = vld [vmem:[#allocation6 + $0xc8] sm:$0xf]
        %v1673 = vld [vmem:[#allocation6 + $0xcc] sm:$0xf]
        %v1674 = vld [vmem:[#allocation6 + $0xd0] sm:$0xf]
        %v1675 = vld [vmem:[#allocation6 + $0xd4] sm:$0xf]
        %v1676 = vld [vmem:[#allocation6 + $0xd8] sm:$0xf]
        %v1677 = vld [vmem:[#allocation6 + $0xdc] sm:$0xf]
        %v1678 = vld [vmem:[#allocation6 + $0xe0] sm:$0xf]
        %v1679 = vld [vmem:[#allocation6 + $0xe4] sm:$0xf]
        %v1680 = vld [vmem:[#allocation6 + $0xe8] sm:$0xf]
        %v1681 = vld [vmem:[#allocation6 + $0xec] sm:$0xf]
        %v1682 = vld [vmem:[#allocation6 + $0xf0] sm:$0xf]
        %v1683 = vld [vmem:[#allocation6 + $0xf4] sm:$0xf]
        %v1684 = vld [vmem:[#allocation6 + $0xf8] sm:$0xf]
        %v1685 = vld [vmem:[#allocation6 + $0xfc] sm:$0xf]
        %v1750 = vunpack.c.l.b16 %v1622
        %v1751 = vunpack.c.l.b16 %v1623
        %v1752 = vunpack.c.l.b16 %v1624
        %v1753 = vunpack.c.l.b16 %v1625
        %v1754 = vunpack.c.l.b16 %v1626
        %v1755 = vunpack.c.l.b16 %v1627
        %v1756 = vunpack.c.l.b16 %v1628
        %v1757 = vunpack.c.l.b16 %v1629
        %v1758 = vunpack.c.l.b16 %v1630
        %v1759 = vunpack.c.l.b16 %v1631
        %v1760 = vunpack.c.l.b16 %v1632
        %v1761 = vunpack.c.l.b16 %v1633
        %v1762 = vunpack.c.l.b16 %v1634
        %v1763 = vunpack.c.l.b16 %v1635
        %v1764 = vunpack.c.l.b16 %v1636
        %v1765 = vunpack.c.l.b16 %v1637
        %v1766 = vunpack.c.l.b16 %v1638
        %v1767 = vunpack.c.l.b16 %v1639
        %v1768 = vunpack.c.l.b16 %v1640
        %v1769 = vunpack.c.l.b16 %v1641
        %v1770 = vunpack.c.l.b16 %v1642
        %v1771 = vunpack.c.l.b16 %v1643
        %v1772 = vunpack.c.l.b16 %v1644
        %v1773 = vunpack.c.l.b16 %v1645
        %v1774 = vunpack.c.l.b16 %v1646
        %v1775 = vunpack.c.l.b16 %v1647
        %v1776 = vunpack.c.l.b16 %v1648
        %v1777 = vunpack.c.l.b16 %v1649
        %v1778 = vunpack.c.l.b16 %v1650
        %v1779 = vunpack.c.l.b16 %v1651
        %v1780 = vunpack.c.l.b16 %v1652
        %v1781 = vunpack.c.l.b16 %v1653
        %v1782 = vunpack.c.l.b16 %v1654
        %v1783 = vunpack.c.l.b16 %v1655
        %v1784 = vunpack.c.l.b16 %v1656
        %v1785 = vunpack.c.l.b16 %v1657
        %v1786 = vunpack.c.l.b16 %v1658
        %v1787 = vunpack.c.l.b16 %v1659
        %v1788 = vunpack.c.l.b16 %v1660
        %v1789 = vunpack.c.l.b16 %v1661
        %v1790 = vunpack.c.l.b16 %v1662
        %v1791 = vunpack.c.l.b16 %v1663
        %v1792 = vunpack.c.l.b16 %v1664
        %v1793 = vunpack.c.l.b16 %v1665
        %v1794 = vunpack.c.l.b16 %v1666
        %v1795 = vunpack.c.l.b16 %v1667
        %v1796 = vunpack.c.l.b16 %v1668
        %v1797 = vunpack.c.l.b16 %v1669
        %v1798 = vunpack.c.l.b16 %v1670
        %v1799 = vunpack.c.l.b16 %v1671
        %v1800 = vunpack.c.l.b16 %v1672
        %v1801 = vunpack.c.l.b16 %v1673
        %v1802 = vunpack.c.l.b16 %v1674
        %v1803 = vunpack.c.l.b16 %v1675
        %v1804 = vunpack.c.l.b16 %v1676
        %v1805 = vunpack.c.l.b16 %v1677
        %v1806 = vunpack.c.l.b16 %v1678
        %v1807 = vunpack.c.l.b16 %v1679
        %v1808 = vunpack.c.l.b16 %v1680
        %v1809 = vunpack.c.l.b16 %v1681
        %v1810 = vunpack.c.l.b16 %v1682
        %v1811 = vunpack.c.l.b16 %v1683
        %v1812 = vunpack.c.l.b16 %v1684
        %v1813 = vunpack.c.l.b16 %v1685
        %v1814 = vpack.c.b16 %v1751, %v1750
        %v1815 = vpack.c.b16 %v1753, %v1752
        %v1816 = vpack.c.b16 %v1755, %v1754
        %v1817 = vpack.c.b16 %v1757, %v1756
        %v1818 = vpack.c.b16 %v1759, %v1758
        %v1819 = vpack.c.b16 %v1761, %v1760
        %v1820 = vpack.c.b16 %v1763, %v1762
        %v1821 = vpack.c.b16 %v1765, %v1764
        %v1822 = vpack.c.b16 %v1767, %v1766
        %v1823 = vpack.c.b16 %v1769, %v1768
        %v1824 = vpack.c.b16 %v1771, %v1770
        %v1825 = vpack.c.b16 %v1773, %v1772
        %v1826 = vpack.c.b16 %v1775, %v1774
        %v1827 = vpack.c.b16 %v1777, %v1776
        %v1828 = vpack.c.b16 %v1779, %v1778
        %v1829 = vpack.c.b16 %v1781, %v1780
        %v1830 = vpack.c.b16 %v1783, %v1782
        %v1831 = vpack.c.b16 %v1785, %v1784
        %v1832 = vpack.c.b16 %v1787, %v1786
        %v1833 = vpack.c.b16 %v1789, %v1788
        %v1834 = vpack.c.b16 %v1791, %v1790
        %v1835 = vpack.c.b16 %v1793, %v1792
        %v1836 = vpack.c.b16 %v1795, %v1794
        %v1837 = vpack.c.b16 %v1797, %v1796
        %v1838 = vpack.c.b16 %v1799, %v1798
        %v1839 = vpack.c.b16 %v1801, %v1800
        %v1840 = vpack.c.b16 %v1803, %v1802
        %v1841 = vpack.c.b16 %v1805, %v1804
        %v1842 = vpack.c.b16 %v1807, %v1806
        %v1843 = vpack.c.b16 %v1809, %v1808
        %v1844 = vpack.c.b16 %v1811, %v1810
        %v1845 = vpack.c.b16 %v1813, %v1812
        %1878 = vmatpush.bf16.msra.mxu0 %v1821
        %1879 = vmatpush.bf16.msra.mxu0 %v1820
        %1880 = vmatpush.bf16.msra.mxu0 %v1819
        %1881 = vmatpush.bf16.msra.mxu0 %v1818
        %1882 = vmatpush.bf16.msra.mxu0 %v1817
        %1883 = vmatpush.bf16.msra.mxu0 %v1816
        %1884 = vmatpush.bf16.msra.mxu0 %v1815
        %1885 = vmatpush.bf16.msra.mxu0 %v1814
        %1886 = vmatmul.bf16.gmra.mxu0 %v1618
        %v1887 = vpop.f32.mrf.mxu0
        %v1888 = vadd.f32 0.0, %v1887
        %v1889 = vpop.f32.mrf.mxu0
        %1890 = vdwg.mxu0
        %1891 = vmatpush.bf16.msra.mxu0 %v1829
        %1892 = vmatpush.bf16.msra.mxu0 %v1828
        %1893 = vmatpush.bf16.msra.mxu0 %v1827
        %1894 = vmatpush.bf16.msra.mxu0 %v1826
        %1895 = vmatpush.bf16.msra.mxu0 %v1825
        %1896 = vmatpush.bf16.msra.mxu0 %v1824
        %1897 = vmatpush.bf16.msra.mxu0 %v1823
        %1898 = vmatpush.bf16.msra.mxu0 %v1822
        %1899 = vmatmul.bf16.gmra.mxu0 %v1619
        %v1900 = vpop.f32.mrf.mxu0
        %v1901 = vadd.f32 %v1888, %v1900
        %v1902 = vpop.f32.mrf.mxu0
        %1903 = vdwg.mxu0
        %1904 = vmatpush.bf16.msra.mxu0 %v1837
        %1905 = vmatpush.bf16.msra.mxu0 %v1836
        %1906 = vmatpush.bf16.msra.mxu0 %v1835
        %1907 = vmatpush.bf16.msra.mxu0 %v1834
        %1908 = vmatpush.bf16.msra.mxu0 %v1833
        %1909 = vmatpush.bf16.msra.mxu0 %v1832
        %1910 = vmatpush.bf16.msra.mxu0 %v1831
        %1911 = vmatpush.bf16.msra.mxu0 %v1830
        %1912 = vmatmul.bf16.gmra.mxu0 %v1620
        %v1913 = vpop.f32.mrf.mxu0
        %v1914 = vadd.f32 %v1901, %v1913
        %v1915 = vpop.f32.mrf.mxu0
        %1916 = vdwg.mxu0
        %1917 = vmatpush.bf16.msra.mxu0 %v1845
        %1918 = vmatpush.bf16.msra.mxu0 %v1844
        %1919 = vmatpush.bf16.msra.mxu0 %v1843
        %1920 = vmatpush.bf16.msra.mxu0 %v1842
        %1921 = vmatpush.bf16.msra.mxu0 %v1841
        %1922 = vmatpush.bf16.msra.mxu0 %v1840
        %1923 = vmatpush.bf16.msra.mxu0 %v1839
        %1924 = vmatpush.bf16.msra.mxu0 %v1838
        %1925 = vmatmul.bf16.gmra.mxu0 %v1621
        %v1926 = vpop.f32.mrf.mxu0
        %v1927 = vadd.f32 %v1914, %v1926
        %v1928 = vpop.f32.mrf.mxu0
        %1929 = vdwg.mxu0
        %v1930 = vadd.f32 %v1326, %v1927
        %v1931 = vld [vmem:[%s13] sm:$0x1]
        %v1933 = vperm.slane %v1931, 0
        %v1935 = vadd.f32 %v1930, %v1933
        %v1936 = vld [vmem:[#allocation7] sm:$0x1]
        %v1937 = vld [vmem:[#allocation9] sm:$0x1]
        %1938 = vadd.xlane.f32.xlu0 %v1935
        %v1939 = vpop.xlane.xlu0 %1938
        %v1940 = vmul.f32 %v1939, %v624
        %v1941 = vsub.f32 %v1935, %v1940
        %v1942 = vmul.f32 %v1941, %v1941
        %1943 = vadd.xlane.f32.xlu0 %v1942
        %v1944 = vpop.xlane.xlu0 %1943
        %v1945 = vmul.f32 %v1944, %v624
        %v1946 = vadd.f32 %v1945, 1e-12
        %v1947 = vrsqrt.pop %v1946
        %v1948 = vmul.f32 %v1947, %v1946
        %v1949 = vmul.f32 %v1948, %v1947
        %v1950 = vmul.f32 0.5, %v1949
        %v1951 = vsub.f32 1.5, %v1950
        %v1952 = vmul.f32 %v1947, %v1951
        %vm1953 = vweird.f32 %v1946
        %vm1954 = vweird.f32 %v1947
        %vm1955 = vmor %vm1953, %vm1954
        %v1956 = vsel %vm1955, %v1947, %v1952
        %v1957 = vmul.f32 %v1941, %v1956
        %v1959 = vperm.slane %v1936, 0
        %v1961 = vmul.f32 %v1957, %v1959
        %v1963 = vperm.slane %v1937, 0
        %v1965 = vadd.f32 %v1961, %v1963
        %v1966 = vpack.c.bf16 %v1965, %v1965
        %1967 = vst [vmem:[%s609] sm:$0xf] %v1966
        %p1968 = scmp.lt.s32.totalorder %s30, 1
        %s1969 = scalar_select %p1968, %s30, 1
        %s1970 = smul.addr %s1969, 4
        %s1971 = scalar_lea.vmem %s16, %s1970
        // Predicated region
        $region105: #{bert_classifier_forward.3} parent=83 // pred_check
          %p1972 = pneg %p394
        $region106: #{bert_classifier_forward.3} parent=83 // pred_check_branch
          %1974 = sbr.rel (%p1972) target = $region108
        $region107: #{bert_classifier_forward.3} parent=83 // pred_region
          _
        $region108: #{bert_classifier_forward.3} parent=83 // pred_fallthru
          _
      $region84: #{bert_classifier_forward.3} parent=5 // pred_fallthru
        _
      %p1975 = scmp.le.s32.totalorder 2, %s25
      // Predicated region
      $region109: #{bert_classifier_forward.3} parent=5 // pred_check
        %p1976 = pneg %p1975
      $region110: #{bert_classifier_forward.3} parent=5 // pred_check_branch
        %1978 = sbr.rel (%p1976) target = $region112
      $region111: #{bert_classifier_forward.3} parent=5 // pred_region
        %s1979 = ssub.s32 %s25, 2
        // Predicated region
        $region113: #{bert_classifier_forward.3} parent=111 // pred_check
          %p1980 = pneg %p400
        $region114: #{bert_classifier_forward.3} parent=111 // pred_check_branch
          %1982 = sbr.rel (%p1980) target = $region116
        $region115: #{bert_classifier_forward.3} parent=111 // pred_region
          %p1983 = scmp.lt.s32.totalorder %s31, 1
          %s1984 = scalar_select %p1983, %s31, 1
          %s1985 = smul.addr %s1984, 4
          %s1986 = scalar_lea.vmem %s16, %s1985
        $region116: #{bert_classifier_forward.3} parent=111 // pred_fallthru
          _
      $region112: #{bert_classifier_forward.3} parent=5 // pred_fallthru
        _
    $region6: #{bert_classifier_forward.3} parent=1 // loop_footer
      %s29 = sadd.s32 1, %s25
    $region7: #{bert_classifier_forward.3} parent=1 // loop_footer_branch
      %24 = sbr.rel target = $region3
    $region8: #{bert_classifier_forward.3} parent=1 // loop_exit
      _
    %1987 = vsyncpa [#allocation3], 1
    %s1988 = scalar_lea.sflag [#allocation3], 1
    %1989 = vsyncpa %s1988, 1
    %1990 = vsyncpa [#allocation5], 1
    %1991 = vsyncpa [#allocation8], 1

// kernel: bert_classifier_forward.4
$region0: #{bert_classifier_forward.4}
  #allocation0 [shape = 'u32[]', space=smem, size = 0x4, offset = 0x4, fixed_abs, tag = 'smem constant byte address 0x4 - core index']
  #allocation1 [shape = 'u32[72,128]{1,0:T(1,128)}', space=vmem, size = 0x9000, scoped, tag = 'internal scratch']
  %s0 = inlined_call_operand.vmem [shape: bf16[2,8,128], index: 0, kind: input, shape index: {}]
  %s1 = inlined_call_operand.vmem [shape: f32[2,1,8], index: 1, kind: input, shape index: {}]
  %s2 = inlined_call_operand.hbm [shape: bf16[128,768], index: 2, kind: input, shape index: {}]
  %s3 = inlined_call_operand.vmem [shape: f32[1,768], index: 3, kind: input, shape index: {}]
  %s4 = inlined_call_operand.hbm [shape: bf16[256,128], index: 4, kind: input, shape index: {}]
  %s5 = inlined_call_operand.vmem [shape: f32[1,128], index: 5, kind: input, shape index: {}]
  %s6 = inlined_call_operand.hbm [shape: f32[1,128], index: 6, kind: input, shape index: {}]
  %s7 = inlined_call_operand.hbm [shape: f32[1,128], index: 7, kind: input, shape index: {}]
  %s8 = inlined_call_operand.hbm [shape: bf16[128,512], index: 8, kind: input, shape index: {}]
  %s9 = inlined_call_operand.hbm [shape: f32[1,512], index: 9, kind: input, shape index: {}]
  %s10 = inlined_call_operand.hbm [shape: bf16[512,128], index: 10, kind: input, shape index: {}]
  %s11 = inlined_call_operand.hbm [shape: f32[1,128], index: 11, kind: input, shape index: {}]
  %s12 = inlined_call_operand.hbm [shape: f32[1,128], index: 12, kind: input, shape index: {}]
  %s13 = inlined_call_operand.hbm [shape: f32[1,128], index: 13, kind: input, shape index: {}]
  %s14 = inlined_call_operand.vmem [shape: bf16[2,8,128], index: 14, kind: output, shape index: {}]
  %s15 = sld [smem:[#allocation0]]
  $region129: #{bert_classifier_forward.4} parent=0
    _
  %s17 = ssub.s32 1, %s15
  %s18 = scalar_select 0, %s17, %s15
  $region1: #{bert_classifier_forward.4} parent=0
    #allocation2 [shape = 'u8[196608]{0}', space=vmem, size = 0x30000, scoped, tag = 'input window, operand 2, single buffered']
    #allocation3 [shape = 's32[2]{0}', space=sflag, size = 0x8, scoped, tag = 'scoped memory for bert_classifier_forward.4']
    #allocation4 [shape = 'u8[65536]{0}', space=vmem, size = 0x10000, scoped, tag = 'input window, operand 4, single buffered']
    #allocation5 [shape = 's32[1]{0}', space=sflag, size = 0x4, scoped, tag = 'scoped memory for bert_classifier_forward.4']
    #allocation6 [shape = 'u8[512]{0}', space=vmem, size = 0x400, scoped, tag = 'input window, operand 6, single buffered']
    #allocation7 [shape = 'u8[512]{0}', space=vmem, size = 0x400, scoped, tag = 'input window, operand 7, single buffered']
    #allocation8 [shape = 's32[1]{0}', space=sflag, size = 0x4, scoped, tag = 'scoped memory for bert_classifier_forward.4']
    #allocation9 [shape = 'u8[131072]{0}', space=vmem, size = 0x20000, scoped, tag = 'input window, operand 8, single buffered']
    #allocation10 [shape = 'u8[2048]{0}', space=vmem, size = 0x800, scoped, tag = 'input window, operand 9, single buffered']
    #allocation11 [shape = 's32[1]{0}', space=sflag, size = 0x4, scoped, tag = 'scoped memory for bert_classifier_forward.4']
    #allocation12 [shape = 'u8[131072]{0}', space=vmem, size = 0x20000, scoped, tag = 'input window, operand 10, single buffered']
    #allocation13 [shape = 'u8[512]{0}', space=vmem, size = 0x400, scoped, tag = 'input window, operand 11, single buffered']
    #allocation14 [shape = 's32[1]{0}', space=sflag, size = 0x4, scoped, tag = 'scoped memory for bert_classifier_forward.4']
    #allocation15 [shape = 'u8[512]{0}', space=vmem, size = 0x400, scoped, tag = 'input window, operand 12, single buffered']
    #allocation16 [shape = 'u8[512]{0}', space=vmem, size = 0x400, scoped, tag = 'input window, operand 13, single buffered']
    #allocation17 [shape = 's32[1]{0}', space=sflag, size = 0x4, scoped, tag = 'scoped memory for bert_classifier_forward.4']
    %19 = vsyncpa [#allocation3], 0
    %20 = vsyncpa [#allocation5], 0
    %21 = vsyncpa [#allocation8], 0
    %22 = vsyncpa [#allocation11], 0
    %23 = vsyncpa [#allocation14], 0
    %24 = vsyncpa [#allocation17], 0
    loop: start=0, step=1, limit=4
    $region2: #{bert_classifier_forward.4} parent=1 // loop_pre_header
      _
    $region3: #{bert_classifier_forward.4} parent=1 // loop_header
      %s26 = sphi 0, %s30
      %p27 = scmp.ge.s32.totalorder %s26, 4
      %s36 = sphi 0, %s38
      %s39 = sphi 0, %s36
      %s40 = sphi 0, %s39
      %s56 = sphi 0, %s40
      %s62 = sphi 0, %s64
      %s65 = sphi 0, %s62
      %s66 = sphi 0, %s65
      %s82 = sphi 0, %s66
      %s86 = sphi 0, %s86
      %s88 = sphi 0, %s86
      %s89 = sphi 0, %s88
      %s103 = sphi 0, %s89
      %s107 = sphi 0, %s107
      %s109 = sphi 0, %s107
      %s110 = sphi 0, %s109
      %s124 = sphi 0, %s110
      %s128 = sphi 0, %s128
      %s130 = sphi 0, %s128
      %s131 = sphi 0, %s130
      %s145 = sphi 0, %s131
      %s149 = sphi 0, %s149
      %s151 = sphi 0, %s149
      %s152 = sphi 0, %s151
      %s166 = sphi 0, %s152
      %s170 = sphi 0, %s170
      %s172 = sphi 0, %s170
      %s173 = sphi 0, %s172
      %s187 = sphi 0, %s173
      %s191 = sphi 0, %s191
      %s193 = sphi 0, %s191
      %s194 = sphi 0, %s193
      %s208 = sphi 0, %s194
      %s212 = sphi 0, %s212
      %s214 = sphi 0, %s212
      %s215 = sphi 0, %s214
      %s229 = sphi 0, %s215
      %s233 = sphi 0, %s233
      %s235 = sphi 0, %s233
      %s236 = sphi 0, %s235
      %s250 = sphi 0, %s236
      %s254 = sphi 0, %s254
      %s256 = sphi 0, %s254
      %s257 = sphi 0, %s256
      %s271 = sphi 0, %s257
      %s275 = sphi 0, %s275
      %s277 = sphi 0, %s275
      %s278 = sphi 0, %s277
      %s292 = sphi 0, %s278
      %s296 = sphi 0, %s296
      %s298 = sphi 0, %s296
      %s299 = sphi 0, %s298
      %s313 = sphi 0, %s299
      %s317 = sphi 0, %s317
      %s319 = sphi 0, %s317
      %s320 = sphi 0, %s319
      %s334 = sphi 0, %s320
      %s340 = sphi 0, %s342
      %s343 = sphi 0, %s340
      %s344 = sphi 0, %s343
      %s360 = sphi 0, %s344
    $region4: #{bert_classifier_forward.4} parent=1 // loop_header_branch
      %29 = sbr.rel (%p27) target = $region8
    $region5: #{bert_classifier_forward.4} parent=1 // loop_body
      %s31 = ssub.s32 %s26, 1
      %s32 = ssub.s32 %s26, 2
      %s33 = sadd.s32 %s26, 1
      %s34 = ssub.s32 %s26, %s33
      %p35 = scmp.eq.s32.totalorder %s34, 0
      %s37 = sadd.s32 %s36, 1
      %s38 = scalar_select %p35, %s36, %s37
      %p41 = pneg %p35
      %p42 = scmp.eq.s32.totalorder %s26, 1
      %p43 = por %p41, %p42
      %p44 = scmp.ne.s32.totalorder %s36, %s39
      %p45 = scmp.eq.s32.totalorder %s26, 0
      %p46 = por %p44, %p45
      %p47 = scmp.ne.s32.totalorder %s36, %s39
      %p48 = scmp.eq.s32.totalorder %s31, 1
      %p49 = por %p47, %p48
      %p50 = scmp.ne.s32.totalorder %s39, %s40
      %p51 = scmp.eq.s32.totalorder %s31, 0
      %p52 = por %p50, %p51
      %p53 = scmp.ne.s32.totalorder %s39, %s40
      %p54 = scmp.eq.s32.totalorder %s32, 1
      %p55 = por %p53, %p54
      %p57 = scmp.ne.s32.totalorder %s40, %s56
      %p58 = scmp.eq.s32.totalorder %s32, 0
      %p59 = por %p57, %p58
      %s60 = ssub.s32 %s26, %s33
      %p61 = scmp.eq.s32.totalorder %s60, 0
      %s63 = sadd.s32 %s62, 1
      %s64 = scalar_select %p61, %s62, %s63
      %p67 = pneg %p61
      %p68 = scmp.eq.s32.totalorder %s26, 1
      %p69 = por %p67, %p68
      %p70 = scmp.ne.s32.totalorder %s62, %s65
      %p71 = scmp.eq.s32.totalorder %s26, 0
      %p72 = por %p70, %p71
      %p73 = scmp.ne.s32.totalorder %s62, %s65
      %p74 = scmp.eq.s32.totalorder %s31, 1
      %p75 = por %p73, %p74
      %p76 = scmp.ne.s32.totalorder %s65, %s66
      %p77 = scmp.eq.s32.totalorder %s31, 0
      %p78 = por %p76, %p77
      %p79 = scmp.ne.s32.totalorder %s65, %s66
      %p80 = scmp.eq.s32.totalorder %s32, 1
      %p81 = por %p79, %p80
      %p83 = scmp.ne.s32.totalorder %s66, %s82
      %p84 = scmp.eq.s32.totalorder %s32, 0
      %p85 = por %p83, %p84
      %s87 = sadd.s32 %s86, 1
      %p90 = scmp.eq.s32.totalorder %s26, 1
      %p91 = scmp.ne.s32.totalorder %s86, %s88
      %p92 = scmp.eq.s32.totalorder %s26, 0
      %p93 = por %p91, %p92
      %p94 = scmp.ne.s32.totalorder %s86, %s88
      %p95 = scmp.eq.s32.totalorder %s31, 1
      %p96 = por %p94, %p95
      %p97 = scmp.ne.s32.totalorder %s88, %s89
      %p98 = scmp.eq.s32.totalorder %s31, 0
      %p99 = por %p97, %p98
      %p100 = scmp.ne.s32.totalorder %s88, %s89
      %p101 = scmp.eq.s32.totalorder %s32, 1
      %p102 = por %p100, %p101
      %p104 = scmp.ne.s32.totalorder %s89, %s103
      %p105 = scmp.eq.s32.totalorder %s32, 0
      %p106 = por %p104, %p105
      %s108 = sadd.s32 %s107, 1
      %p111 = scmp.eq.s32.totalorder %s26, 1
      %p112 = scmp.ne.s32.totalorder %s107, %s109
      %p113 = scmp.eq.s32.totalorder %s26, 0
      %p114 = por %p112, %p113
      %p115 = scmp.ne.s32.totalorder %s107, %s109
      %p116 = scmp.eq.s32.totalorder %s31, 1
      %p117 = por %p115, %p116
      %p118 = scmp.ne.s32.totalorder %s109, %s110
      %p119 = scmp.eq.s32.totalorder %s31, 0
      %p120 = por %p118, %p119
      %p121 = scmp.ne.s32.totalorder %s109, %s110
      %p122 = scmp.eq.s32.totalorder %s32, 1
      %p123 = por %p121, %p122
      %p125 = scmp.ne.s32.totalorder %s110, %s124
      %p126 = scmp.eq.s32.totalorder %s32, 0
      %p127 = por %p125, %p126
      %s129 = sadd.s32 %s128, 1
      %p132 = scmp.eq.s32.totalorder %s26, 1
      %p133 = scmp.ne.s32.totalorder %s128, %s130
      %p134 = scmp.eq.s32.totalorder %s26, 0
      %p135 = por %p133, %p134
      %p136 = scmp.ne.s32.totalorder %s128, %s130
      %p137 = scmp.eq.s32.totalorder %s31, 1
      %p138 = por %p136, %p137
      %p139 = scmp.ne.s32.totalorder %s130, %s131
      %p140 = scmp.eq.s32.totalorder %s31, 0
      %p141 = por %p139, %p140
      %p142 = scmp.ne.s32.totalorder %s130, %s131
      %p143 = scmp.eq.s32.totalorder %s32, 1
      %p144 = por %p142, %p143
      %p146 = scmp.ne.s32.totalorder %s131, %s145
      %p147 = scmp.eq.s32.totalorder %s32, 0
      %p148 = por %p146, %p147
      %s150 = sadd.s32 %s149, 1
      %p153 = scmp.eq.s32.totalorder %s26, 1
      %p154 = scmp.ne.s32.totalorder %s149, %s151
      %p155 = scmp.eq.s32.totalorder %s26, 0
      %p156 = por %p154, %p155
      %p157 = scmp.ne.s32.totalorder %s149, %s151
      %p158 = scmp.eq.s32.totalorder %s31, 1
      %p159 = por %p157, %p158
      %p160 = scmp.ne.s32.totalorder %s151, %s152
      %p161 = scmp.eq.s32.totalorder %s31, 0
      %p162 = por %p160, %p161
      %p163 = scmp.ne.s32.totalorder %s151, %s152
      %p164 = scmp.eq.s32.totalorder %s32, 1
      %p165 = por %p163, %p164
      %p167 = scmp.ne.s32.totalorder %s152, %s166
      %p168 = scmp.eq.s32.totalorder %s32, 0
      %p169 = por %p167, %p168
      %s171 = sadd.s32 %s170, 1
      %p174 = scmp.eq.s32.totalorder %s26, 1
      %p175 = scmp.ne.s32.totalorder %s170, %s172
      %p176 = scmp.eq.s32.totalorder %s26, 0
      %p177 = por %p175, %p176
      %p178 = scmp.ne.s32.totalorder %s170, %s172
      %p179 = scmp.eq.s32.totalorder %s31, 1
      %p180 = por %p178, %p179
      %p181 = scmp.ne.s32.totalorder %s172, %s173
      %p182 = scmp.eq.s32.totalorder %s31, 0
      %p183 = por %p181, %p182
      %p184 = scmp.ne.s32.totalorder %s172, %s173
      %p185 = scmp.eq.s32.totalorder %s32, 1
      %p186 = por %p184, %p185
      %p188 = scmp.ne.s32.totalorder %s173, %s187
      %p189 = scmp.eq.s32.totalorder %s32, 0
      %p190 = por %p188, %p189
      %s192 = sadd.s32 %s191, 1
      %p195 = scmp.eq.s32.totalorder %s26, 1
      %p196 = scmp.ne.s32.totalorder %s191, %s193
      %p197 = scmp.eq.s32.totalorder %s26, 0
      %p198 = por %p196, %p197
      %p199 = scmp.ne.s32.totalorder %s191, %s193
      %p200 = scmp.eq.s32.totalorder %s31, 1
      %p201 = por %p199, %p200
      %p202 = scmp.ne.s32.totalorder %s193, %s194
      %p203 = scmp.eq.s32.totalorder %s31, 0
      %p204 = por %p202, %p203
      %p205 = scmp.ne.s32.totalorder %s193, %s194
      %p206 = scmp.eq.s32.totalorder %s32, 1
      %p207 = por %p205, %p206
      %p209 = scmp.ne.s32.totalorder %s194, %s208
      %p210 = scmp.eq.s32.totalorder %s32, 0
      %p211 = por %p209, %p210
      %s213 = sadd.s32 %s212, 1
      %p216 = scmp.eq.s32.totalorder %s26, 1
      %p217 = scmp.ne.s32.totalorder %s212, %s214
      %p218 = scmp.eq.s32.totalorder %s26, 0
      %p219 = por %p217, %p218
      %p220 = scmp.ne.s32.totalorder %s212, %s214
      %p221 = scmp.eq.s32.totalorder %s31, 1
      %p222 = por %p220, %p221
      %p223 = scmp.ne.s32.totalorder %s214, %s215
      %p224 = scmp.eq.s32.totalorder %s31, 0
      %p225 = por %p223, %p224
      %p226 = scmp.ne.s32.totalorder %s214, %s215
      %p227 = scmp.eq.s32.totalorder %s32, 1
      %p228 = por %p226, %p227
      %p230 = scmp.ne.s32.totalorder %s215, %s229
      %p231 = scmp.eq.s32.totalorder %s32, 0
      %p232 = por %p230, %p231
      %s234 = sadd.s32 %s233, 1
      %p237 = scmp.eq.s32.totalorder %s26, 1
      %p238 = scmp.ne.s32.totalorder %s233, %s235
      %p239 = scmp.eq.s32.totalorder %s26, 0
      %p240 = por %p238, %p239
      %p241 = scmp.ne.s32.totalorder %s233, %s235
      %p242 = scmp.eq.s32.totalorder %s31, 1
      %p243 = por %p241, %p242
      %p244 = scmp.ne.s32.totalorder %s235, %s236
      %p245 = scmp.eq.s32.totalorder %s31, 0
      %p246 = por %p244, %p245
      %p247 = scmp.ne.s32.totalorder %s235, %s236
      %p248 = scmp.eq.s32.totalorder %s32, 1
      %p249 = por %p247, %p248
      %p251 = scmp.ne.s32.totalorder %s236, %s250
      %p252 = scmp.eq.s32.totalorder %s32, 0
      %p253 = por %p251, %p252
      %s255 = sadd.s32 %s254, 1
      %p258 = scmp.eq.s32.totalorder %s26, 1
      %p259 = scmp.ne.s32.totalorder %s254, %s256
      %p260 = scmp.eq.s32.totalorder %s26, 0
      %p261 = por %p259, %p260
      %p262 = scmp.ne.s32.totalorder %s254, %s256
      %p263 = scmp.eq.s32.totalorder %s31, 1
      %p264 = por %p262, %p263
      %p265 = scmp.ne.s32.totalorder %s256, %s257
      %p266 = scmp.eq.s32.totalorder %s31, 0
      %p267 = por %p265, %p266
      %p268 = scmp.ne.s32.totalorder %s256, %s257
      %p269 = scmp.eq.s32.totalorder %s32, 1
      %p270 = por %p268, %p269
      %p272 = scmp.ne.s32.totalorder %s257, %s271
      %p273 = scmp.eq.s32.totalorder %s32, 0
      %p274 = por %p272, %p273
      %s276 = sadd.s32 %s275, 1
      %p279 = scmp.eq.s32.totalorder %s26, 1
      %p280 = scmp.ne.s32.totalorder %s275, %s277
      %p281 = scmp.eq.s32.totalorder %s26, 0
      %p282 = por %p280, %p281
      %p283 = scmp.ne.s32.totalorder %s275, %s277
      %p284 = scmp.eq.s32.totalorder %s31, 1
      %p285 = por %p283, %p284
      %p286 = scmp.ne.s32.totalorder %s277, %s278
      %p287 = scmp.eq.s32.totalorder %s31, 0
      %p288 = por %p286, %p287
      %p289 = scmp.ne.s32.totalorder %s277, %s278
      %p290 = scmp.eq.s32.totalorder %s32, 1
      %p291 = por %p289, %p290
      %p293 = scmp.ne.s32.totalorder %s278, %s292
      %p294 = scmp.eq.s32.totalorder %s32, 0
      %p295 = por %p293, %p294
      %s297 = sadd.s32 %s296, 1
      %p300 = scmp.eq.s32.totalorder %s26, 1
      %p301 = scmp.ne.s32.totalorder %s296, %s298
      %p302 = scmp.eq.s32.totalorder %s26, 0
      %p303 = por %p301, %p302
      %p304 = scmp.ne.s32.totalorder %s296, %s298
      %p305 = scmp.eq.s32.totalorder %s31, 1
      %p306 = por %p304, %p305
      %p307 = scmp.ne.s32.totalorder %s298, %s299
      %p308 = scmp.eq.s32.totalorder %s31, 0
      %p309 = por %p307, %p308
      %p310 = scmp.ne.s32.totalorder %s298, %s299
      %p311 = scmp.eq.s32.totalorder %s32, 1
      %p312 = por %p310, %p311
      %p314 = scmp.ne.s32.totalorder %s299, %s313
      %p315 = scmp.eq.s32.totalorder %s32, 0
      %p316 = por %p314, %p315
      %s318 = sadd.s32 %s317, 1
      %p321 = scmp.eq.s32.totalorder %s26, 1
      %p322 = scmp.ne.s32.totalorder %s317, %s319
      %p323 = scmp.eq.s32.totalorder %s26, 0
      %p324 = por %p322, %p323
      %p325 = scmp.ne.s32.totalorder %s317, %s319
      %p326 = scmp.eq.s32.totalorder %s31, 1
      %p327 = por %p325, %p326
      %p328 = scmp.ne.s32.totalorder %s319, %s320
      %p329 = scmp.eq.s32.totalorder %s31, 0
      %p330 = por %p328, %p329
      %p331 = scmp.ne.s32.totalorder %s319, %s320
      %p332 = scmp.eq.s32.totalorder %s32, 1
      %p333 = por %p331, %p332
      %p335 = scmp.ne.s32.totalorder %s320, %s334
      %p336 = scmp.eq.s32.totalorder %s32, 0
      %p337 = por %p335, %p336
      %s338 = ssub.s32 %s26, %s33
      %p339 = scmp.eq.s32.totalorder %s338, 0
      %s341 = sadd.s32 %s340, 1
      %s342 = scalar_select %p339, %s340, %s341
      %p345 = pneg %p339
      %p346 = scmp.eq.s32.totalorder %s26, 1
      %p347 = por %p345, %p346
      %p348 = scmp.ne.s32.totalorder %s340, %s343
      %p349 = scmp.eq.s32.totalorder %s26, 0
      %p350 = por %p348, %p349
      %p351 = scmp.ne.s32.totalorder %s340, %s343
      %p352 = scmp.eq.s32.totalorder %s31, 1
      %p353 = por %p351, %p352
      %p354 = scmp.ne.s32.totalorder %s343, %s344
      %p355 = scmp.eq.s32.totalorder %s31, 0
      %p356 = por %p354, %p355
      %p357 = scmp.ne.s32.totalorder %s343, %s344
      %p358 = scmp.eq.s32.totalorder %s32, 1
      %p359 = por %p357, %p358
      %p361 = scmp.ne.s32.totalorder %s344, %s360
      %p362 = scmp.eq.s32.totalorder %s32, 0
      %p363 = por %p361, %p362
      %p364 = scmp.le.s32.totalorder 1, %s26
      %p365 = scmp.lt.s32.totalorder %s26, 3
      %p366 = pnand %p364, %p365
      %p367 = pneg %p366
      // Predicated region
      $region9: #{bert_classifier_forward.4} parent=5 // pred_check
        _
      $region10: #{bert_classifier_forward.4} parent=5 // pred_check_branch
        %369 = sbr.rel (%p366) target = $region12
      $region11: #{bert_classifier_forward.4} parent=5 // pred_region
        %s370 = ssub.s32 %s26, 1
        // Predicated region
        $region13: #{bert_classifier_forward.4} parent=11 // pred_check
          %p371 = pneg %p99
        $region14: #{bert_classifier_forward.4} parent=11 // pred_check_branch
          %373 = sbr.rel (%p371) target = $region16
        $region15: #{bert_classifier_forward.4} parent=11 // pred_region
          %375 = vsyncadd [#allocation3], 0
          %s376 = sshll.u32 %s2, 4
          %s377 = int_to_ptr.hbm [resolvable:$true] %s376
          %s378 = sshll.u32 [#allocation2], 4
          %s379 = int_to_ptr.vmem [resolvable:$true] %s378
          %384 = dma.hbm_to_vmem [thread:$0]  %s377, 6144, %s379, [#allocation3], 384, 384, 24
        $region16: #{bert_classifier_forward.4} parent=11 // pred_fallthru
          _
        // Predicated region
        $region17: #{bert_classifier_forward.4} parent=11 // pred_check
          %p385 = pneg %p120
        $region18: #{bert_classifier_forward.4} parent=11 // pred_check_branch
          %387 = sbr.rel (%p385) target = $region20
        $region19: #{bert_classifier_forward.4} parent=11 // pred_region
          _
        $region20: #{bert_classifier_forward.4} parent=11 // pred_fallthru
          _
        // Predicated region
        $region21: #{bert_classifier_forward.4} parent=11 // pred_check
          %p388 = pneg %p141
        $region22: #{bert_classifier_forward.4} parent=11 // pred_check_branch
          %390 = sbr.rel (%p388) target = $region24
        $region23: #{bert_classifier_forward.4} parent=11 // pred_region
          %392 = vsyncadd [#allocation5], 0
          %s393 = sshll.u32 %s4, 4
          %s394 = int_to_ptr.hbm [resolvable:$true] %s393
          %s395 = sshll.u32 [#allocation4], 4
          %s396 = int_to_ptr.vmem [resolvable:$true] %s395
          %401 = dma.hbm_to_vmem [thread:$0]  %s394, 2048, %s396, [#allocation5], 64, 64, 4
        $region24: #{bert_classifier_forward.4} parent=11 // pred_fallthru
          _
        // Predicated region
        $region25: #{bert_classifier_forward.4} parent=11 // pred_check
          %p402 = pneg %p162
        $region26: #{bert_classifier_forward.4} parent=11 // pred_check_branch
          %404 = sbr.rel (%p402) target = $region28
        $region27: #{bert_classifier_forward.4} parent=11 // pred_region
          _
        $region28: #{bert_classifier_forward.4} parent=11 // pred_fallthru
          _
        // Predicated region
        $region29: #{bert_classifier_forward.4} parent=11 // pred_check
          %p405 = pneg %p183
        $region30: #{bert_classifier_forward.4} parent=11 // pred_check_branch
          %407 = sbr.rel (%p405) target = $region32
        $region31: #{bert_classifier_forward.4} parent=11 // pred_region
          %409 = vsyncadd [#allocation5], 0
          %s411 = sshll.u32 %s6, 4
          %s412 = int_to_ptr.hbm [resolvable:$true] %s411
          %s413 = sshll.u32 [#allocation6], 4
          %s414 = int_to_ptr.vmem [resolvable:$true] %s413
          %416 = dma.hbm_to_vmem [thread:$0]  %s412, 16, %s414, [#allocation5]
        $region32: #{bert_classifier_forward.4} parent=11 // pred_fallthru
          _
        // Predicated region
        $region33: #{bert_classifier_forward.4} parent=11 // pred_check
          %p417 = pneg %p204
        $region34: #{bert_classifier_forward.4} parent=11 // pred_check_branch
          %419 = sbr.rel (%p417) target = $region36
        $region35: #{bert_classifier_forward.4} parent=11 // pred_region
          %421 = vsyncadd [#allocation8], 0
          %s423 = sshll.u32 %s7, 4
          %s424 = int_to_ptr.hbm [resolvable:$true] %s423
          %s425 = sshll.u32 [#allocation7], 4
          %s426 = int_to_ptr.vmem [resolvable:$true] %s425
          %428 = dma.hbm_to_vmem [thread:$0]  %s424, 16, %s426, [#allocation8]
        $region36: #{bert_classifier_forward.4} parent=11 // pred_fallthru
          _
        // Predicated region
        $region37: #{bert_classifier_forward.4} parent=11 // pred_check
          %p429 = pneg %p225
        $region38: #{bert_classifier_forward.4} parent=11 // pred_check_branch
          %431 = sbr.rel (%p429) target = $region40
        $region39: #{bert_classifier_forward.4} parent=11 // pred_region
          %433 = vsyncadd [#allocation8], 0
          %s434 = sshll.u32 %s8, 4
          %s435 = int_to_ptr.hbm [resolvable:$true] %s434
          %s436 = sshll.u32 [#allocation9], 4
          %s437 = int_to_ptr.vmem [resolvable:$true] %s436
          %442 = dma.hbm_to_vmem [thread:$0]  %s435, 4096, %s437, [#allocation8], 256, 256, 16
        $region40: #{bert_classifier_forward.4} parent=11 // pred_fallthru
          _
        // Predicated region
        $region41: #{bert_classifier_forward.4} parent=11 // pred_check
          %p443 = pneg %p246
        $region42: #{bert_classifier_forward.4} parent=11 // pred_check_branch
          %445 = sbr.rel (%p443) target = $region44
        $region43: #{bert_classifier_forward.4} parent=11 // pred_region
          %447 = vsyncadd [#allocation11], 0
          %s449 = sshll.u32 %s9, 4
          %s450 = int_to_ptr.hbm [resolvable:$true] %s449
          %s451 = sshll.u32 [#allocation10], 4
          %s452 = int_to_ptr.vmem [resolvable:$true] %s451
          %454 = dma.hbm_to_vmem [thread:$0]  %s450, 64, %s452, [#allocation11]
        $region44: #{bert_classifier_forward.4} parent=11 // pred_fallthru
          _
        // Predicated region
        $region45: #{bert_classifier_forward.4} parent=11 // pred_check
          %p455 = pneg %p267
        $region46: #{bert_classifier_forward.4} parent=11 // pred_check_branch
          %457 = sbr.rel (%p455) target = $region48
        $region47: #{bert_classifier_forward.4} parent=11 // pred_region
          %459 = vsyncadd [#allocation11], 0
          %s460 = sshll.u32 %s10, 4
          %s461 = int_to_ptr.hbm [resolvable:$true] %s460
          %s462 = sshll.u32 [#allocation12], 4
          %s463 = int_to_ptr.vmem [resolvable:$true] %s462
          %468 = dma.hbm_to_vmem [thread:$0]  %s461, 4096, %s463, [#allocation11], 64, 64, 4
        $region48: #{bert_classifier_forward.4} parent=11 // pred_fallthru
          _
        // Predicated region
        $region49: #{bert_classifier_forward.4} parent=11 // pred_check
          %p469 = pneg %p288
        $region50: #{bert_classifier_forward.4} parent=11 // pred_check_branch
          %471 = sbr.rel (%p469) target = $region52
        $region51: #{bert_classifier_forward.4} parent=11 // pred_region
          %473 = vsyncadd [#allocation14], 0
          %s475 = sshll.u32 %s11, 4
          %s476 = int_to_ptr.hbm [resolvable:$true] %s475
          %s477 = sshll.u32 [#allocation13], 4
          %s478 = int_to_ptr.vmem [resolvable:$true] %s477
          %480 = dma.hbm_to_vmem [thread:$0]  %s476, 16, %s478, [#allocation14]
        $region52: #{bert_classifier_forward.4} parent=11 // pred_fallthru
          _
        // Predicated region
        $region53: #{bert_classifier_forward.4} parent=11 // pred_check
          %p481 = pneg %p309
        $region54: #{bert_classifier_forward.4} parent=11 // pred_check_branch
          %483 = sbr.rel (%p481) target = $region56
        $region55: #{bert_classifier_forward.4} parent=11 // pred_region
          %485 = vsyncadd [#allocation14], 0
          %s487 = sshll.u32 %s12, 4
          %s488 = int_to_ptr.hbm [resolvable:$true] %s487
          %s489 = sshll.u32 [#allocation15], 4
          %s490 = int_to_ptr.vmem [resolvable:$true] %s489
          %492 = dma.hbm_to_vmem [thread:$0]  %s488, 16, %s490, [#allocation14]
        $region56: #{bert_classifier_forward.4} parent=11 // pred_fallthru
          _
        // Predicated region
        $region57: #{bert_classifier_forward.4} parent=11 // pred_check
          %p493 = pneg %p330
        $region58: #{bert_classifier_forward.4} parent=11 // pred_check_branch
          %495 = sbr.rel (%p493) target = $region60
        $region59: #{bert_classifier_forward.4} parent=11 // pred_region
          %497 = vsyncadd [#allocation17], 0
          %s499 = sshll.u32 %s13, 4
          %s500 = int_to_ptr.hbm [resolvable:$true] %s499
          %s501 = sshll.u32 [#allocation16], 4
          %s502 = int_to_ptr.vmem [resolvable:$true] %s501
          %504 = dma.hbm_to_vmem [thread:$0]  %s500, 16, %s502, [#allocation17]
        $region60: #{bert_classifier_forward.4} parent=11 // pred_fallthru
          _
      $region12: #{bert_classifier_forward.4} parent=5 // pred_fallthru
        _
      %p505 = scmp.lt.s32.totalorder %s26, 2
      // Predicated region
      $region61: #{bert_classifier_forward.4} parent=5 // pred_check
        %p506 = pneg %p505
      $region62: #{bert_classifier_forward.4} parent=5 // pred_check_branch
        %508 = sbr.rel (%p506) target = $region64
      $region63: #{bert_classifier_forward.4} parent=5 // pred_region
        // Predicated region
        $region65: #{bert_classifier_forward.4} parent=63 // pred_check
          %p509 = pneg %p46
        $region66: #{bert_classifier_forward.4} parent=63 // pred_check_branch
          %511 = sbr.rel (%p509) target = $region68
        $region67: #{bert_classifier_forward.4} parent=63 // pred_region
          %p512 = scmp.lt.s32.totalorder %s26, 1
          %s513 = scalar_select %p512, %s26, 1
          %s514 = smul.addr %s513, 4
          %s515 = scalar_lea.vmem %s0, %s514
        $region68: #{bert_classifier_forward.4} parent=63 // pred_fallthru
          _
        // Predicated region
        $region69: #{bert_classifier_forward.4} parent=63 // pred_check
          %p516 = pneg %p72
        $region70: #{bert_classifier_forward.4} parent=63 // pred_check_branch
          %518 = sbr.rel (%p516) target = $region72
        $region71: #{bert_classifier_forward.4} parent=63 // pred_region
          %p519 = scmp.lt.s32.totalorder %s26, 1
          %s520 = scalar_select %p519, %s26, 1
          %s521 = scalar_lea.vmem %s1, %s520
        $region72: #{bert_classifier_forward.4} parent=63 // pred_fallthru
          _
      $region64: #{bert_classifier_forward.4} parent=5 // pred_fallthru
        _
      %p522 = scmp.le.s32.totalorder 1, %s26
      %p523 = scmp.lt.s32.totalorder %s26, 3
      %p524 = pnand %p522, %p523
      %p525 = pneg %p524
      // Predicated region
      $region73: #{bert_classifier_forward.4} parent=5 // pred_check
        _
      $region74: #{bert_classifier_forward.4} parent=5 // pred_check_branch
        %527 = sbr.rel (%p524) target = $region76
      $region75: #{bert_classifier_forward.4} parent=5 // pred_region
        %s528 = ssub.s32 %s26, 1
        // Predicated region
        $region77: #{bert_classifier_forward.4} parent=75 // pred_check
          %p529 = pneg %p99
        $region78: #{bert_classifier_forward.4} parent=75 // pred_check_branch
          %531 = sbr.rel (%p529) target = $region80
        $region79: #{bert_classifier_forward.4} parent=75 // pred_region
          %533 = dma.done [#allocation3], 6144
        $region80: #{bert_classifier_forward.4} parent=75 // pred_fallthru
          _
        // Predicated region
        $region81: #{bert_classifier_forward.4} parent=75 // pred_check
          %p534 = pneg %p141
        $region82: #{bert_classifier_forward.4} parent=75 // pred_check_branch
          %536 = sbr.rel (%p534) target = $region84
        $region83: #{bert_classifier_forward.4} parent=75 // pred_region
          %538 = dma.done [#allocation5], 2048
        $region84: #{bert_classifier_forward.4} parent=75 // pred_fallthru
          _
        // Predicated region
        $region85: #{bert_classifier_forward.4} parent=75 // pred_check
          %p539 = pneg %p183
        $region86: #{bert_classifier_forward.4} parent=75 // pred_check_branch
          %541 = sbr.rel (%p539) target = $region88
        $region87: #{bert_classifier_forward.4} parent=75 // pred_region
          %543 = dma.done [#allocation5], 16
        $region88: #{bert_classifier_forward.4} parent=75 // pred_fallthru
          _
        // Predicated region
        $region89: #{bert_classifier_forward.4} parent=75 // pred_check
          %p544 = pneg %p204
        $region90: #{bert_classifier_forward.4} parent=75 // pred_check_branch
          %546 = sbr.rel (%p544) target = $region92
        $region91: #{bert_classifier_forward.4} parent=75 // pred_region
          %548 = dma.done [#allocation8], 16
        $region92: #{bert_classifier_forward.4} parent=75 // pred_fallthru
          _
        // Predicated region
        $region93: #{bert_classifier_forward.4} parent=75 // pred_check
          %p549 = pneg %p225
        $region94: #{bert_classifier_forward.4} parent=75 // pred_check_branch
          %551 = sbr.rel (%p549) target = $region96
        $region95: #{bert_classifier_forward.4} parent=75 // pred_region
          %553 = dma.done [#allocation8], 4096
        $region96: #{bert_classifier_forward.4} parent=75 // pred_fallthru
          _
        // Predicated region
        $region97: #{bert_classifier_forward.4} parent=75 // pred_check
          %p554 = pneg %p246
        $region98: #{bert_classifier_forward.4} parent=75 // pred_check_branch
          %556 = sbr.rel (%p554) target = $region100
        $region99: #{bert_classifier_forward.4} parent=75 // pred_region
          %558 = dma.done [#allocation11], 64
        $region100: #{bert_classifier_forward.4} parent=75 // pred_fallthru
          _
        // Predicated region
        $region101: #{bert_classifier_forward.4} parent=75 // pred_check
          %p559 = pneg %p267
        $region102: #{bert_classifier_forward.4} parent=75 // pred_check_branch
          %561 = sbr.rel (%p559) target = $region104
        $region103: #{bert_classifier_forward.4} parent=75 // pred_region
          %563 = dma.done [#allocation11], 4096
        $region104: #{bert_classifier_forward.4} parent=75 // pred_fallthru
          _
        // Predicated region
        $region105: #{bert_classifier_forward.4} parent=75 // pred_check
          %p564 = pneg %p288
        $region106: #{bert_classifier_forward.4} parent=75 // pred_check_branch
          %566 = sbr.rel (%p564) target = $region108
        $region107: #{bert_classifier_forward.4} parent=75 // pred_region
          %568 = dma.done [#allocation14], 16
        $region108: #{bert_classifier_forward.4} parent=75 // pred_fallthru
          _
        // Predicated region
        $region109: #{bert_classifier_forward.4} parent=75 // pred_check
          %p569 = pneg %p309
        $region110: #{bert_classifier_forward.4} parent=75 // pred_check_branch
          %571 = sbr.rel (%p569) target = $region112
        $region111: #{bert_classifier_forward.4} parent=75 // pred_region
          %573 = dma.done [#allocation14], 16
        $region112: #{bert_classifier_forward.4} parent=75 // pred_fallthru
          _
        // Predicated region
        $region113: #{bert_classifier_forward.4} parent=75 // pred_check
          %p574 = pneg %p330
        $region114: #{bert_classifier_forward.4} parent=75 // pred_check_branch
          %576 = sbr.rel (%p574) target = $region116
        $region115: #{bert_classifier_forward.4} parent=75 // pred_region
          %578 = dma.done [#allocation17], 16
        $region116: #{bert_classifier_forward.4} parent=75 // pred_fallthru
          _
        %p579 = scmp.lt.s32.totalorder %s31, 1
        %s580 = scalar_select %p579, %s31, 1
        %s581 = smul.addr %s580, 4
        %s582 = scalar_lea.vmem %s0, %s581
        %p583 = pneg %p52
        %p584 = pneg %p49
        %p585 = scmp.lt.s32.totalorder %s31, 1
        %s586 = scalar_select %p585, %s31, 1
        %s587 = scalar_lea.vmem %s1, %s586
        %p588 = pneg %p78
        %p589 = pneg %p75
        %p590 = pneg %p99
        %p591 = pneg %p96
        %p592 = pneg %p120
        %p593 = pneg %p117
        %p594 = pneg %p141
        %p595 = pneg %p138
        %p596 = pneg %p162
        %p597 = pneg %p159
        %p598 = pneg %p183
        %p599 = pneg %p180
        %p600 = pneg %p204
        %p601 = pneg %p201
        %p602 = pneg %p225
        %p603 = pneg %p222
        %p604 = pneg %p246
        %p605 = pneg %p243
        %p606 = pneg %p267
        %p607 = pneg %p264
        %p608 = pneg %p288
        %p609 = pneg %p285
        %p610 = pneg %p309
        %p611 = pneg %p306
        %p612 = pneg %p330
        %p613 = pneg %p327
        %p614 = pneg %p356
        %p615 = pneg %p353
        %p616 = scmp.lt.s32.totalorder %s31, 1
        %s617 = scalar_select %p616, %s31, 1
        %s618 = smul.addr %s617, 4
        %s619 = scalar_lea.vmem %s14, %s618
        %p620 = scmp.lt.s32.totalorder %s31, 1
        %s621 = scalar_select %p620, %s31, 1
        %s622 = smul.addr %s621, 4
        %s623 = scalar_lea.vmem %s0, %s622
        %p624 = scmp.lt.s32.totalorder %s31, 1
        %s625 = scalar_select %p624, %s31, 1
        %s626 = scalar_lea.vmem %s1, %s625
        %p627 = scmp.lt.s32.totalorder %s31, 1
        %s628 = scalar_select %p627, %s31, 1
        %s629 = smul.addr %s628, 4
        %s630 = scalar_lea.vmem %s14, %s629
        %v632 = vld [vmem:[%s623] sm:$0xf]
        %v633 = vunpack.c.l.bf16 %v632
        %v634 = vld [vmem:[%s626] sm:$0x1]
        %v635 = vld [vmem:[#allocation2] sm:$0xff]
        %v636 = vld [vmem:[#allocation2 + $0x8] sm:$0xff]
        %v637 = vld [vmem:[#allocation2 + $0x10] sm:$0xff]
        %v638 = vld [vmem:[#allocation2 + $0x18] sm:$0xff]
        %v639 = vld [vmem:[#allocation2 + $0x20] sm:$0xff]
        %v640 = vld [vmem:[#allocation2 + $0x28] sm:$0xff]
        %v641 = vld [vmem:[#allocation2 + $0x30] sm:$0xff]
        %v642 = vld [vmem:[#allocation2 + $0x38] sm:$0xff]
        %v643 = vld [vmem:[#allocation2 + $0x40] sm:$0xff]
        %v644 = vld [vmem:[#allocation2 + $0x48] sm:$0xff]
        %v645 = vld [vmem:[#allocation2 + $0x50] sm:$0xff]
        %v646 = vld [vmem:[#allocation2 + $0x58] sm:$0xff]
        %v647 = vld [vmem:[#allocation2 + $0x60] sm:$0xff]
        %v648 = vld [vmem:[#allocation2 + $0x68] sm:$0xff]
        %v649 = vld [vmem:[#allocation2 + $0x70] sm:$0xff]
        %v650 = vld [vmem:[#allocation2 + $0x78] sm:$0xff]
        %v651 = vld [vmem:[#allocation2 + $0x80] sm:$0xff]
        %v652 = vld [vmem:[#allocation2 + $0x88] sm:$0xff]
        %v653 = vld [vmem:[#allocation2 + $0x90] sm:$0xff]
        %v654 = vld [vmem:[#allocation2 + $0x98] sm:$0xff]
        %v655 = vld [vmem:[#allocation2 + $0xa0] sm:$0xff]
        %v656 = vld [vmem:[#allocation2 + $0xa8] sm:$0xff]
        %v657 = vld [vmem:[#allocation2 + $0xb0] sm:$0xff]
        %v658 = vld [vmem:[#allocation2 + $0xb8] sm:$0xff]
        %v659 = vld [vmem:[#allocation2 + $0xc0] sm:$0xff]
        %v660 = vld [vmem:[#allocation2 + $0xc8] sm:$0xff]
        %v661 = vld [vmem:[#allocation2 + $0xd0] sm:$0xff]
        %v662 = vld [vmem:[#allocation2 + $0xd8] sm:$0xff]
        %v663 = vld [vmem:[#allocation2 + $0xe0] sm:$0xff]
        %v664 = vld [vmem:[#allocation2 + $0xe8] sm:$0xff]
        %v665 = vld [vmem:[#allocation2 + $0xf0] sm:$0xff]
        %v666 = vld [vmem:[#allocation2 + $0xf8] sm:$0xff]
        %v667 = vld [vmem:[#allocation2 + $0x100] sm:$0xff]
        %v668 = vld [vmem:[#allocation2 + $0x108] sm:$0xff]
        %v669 = vld [vmem:[#allocation2 + $0x110] sm:$0xff]
        %v670 = vld [vmem:[#allocation2 + $0x118] sm:$0xff]
        %v671 = vld [vmem:[#allocation2 + $0x120] sm:$0xff]
        %v672 = vld [vmem:[#allocation2 + $0x128] sm:$0xff]
        %v673 = vld [vmem:[#allocation2 + $0x130] sm:$0xff]
        %v674 = vld [vmem:[#allocation2 + $0x138] sm:$0xff]
        %v675 = vld [vmem:[#allocation2 + $0x140] sm:$0xff]
        %v676 = vld [vmem:[#allocation2 + $0x148] sm:$0xff]
        %v677 = vld [vmem:[#allocation2 + $0x150] sm:$0xff]
        %v678 = vld [vmem:[#allocation2 + $0x158] sm:$0xff]
        %v679 = vld [vmem:[#allocation2 + $0x160] sm:$0xff]
        %v680 = vld [vmem:[#allocation2 + $0x168] sm:$0xff]
        %v681 = vld [vmem:[#allocation2 + $0x170] sm:$0xff]
        %v682 = vld [vmem:[#allocation2 + $0x178] sm:$0xff]
        %v683 = vld [vmem:[%s3] sm:$0x3f]
        %v685 = vperm.slane %v683, 0
        %v686 = vperm.slane %v683, 1
        %v687 = vperm.slane %v683, 2
        %v688 = vperm.slane %v683, 3
        %v689 = vperm.slane %v683, 4
        %v690 = vperm.slane %v683, 5
        %v745 = vunpack.c.l.b16 %v635
        %v746 = vunpack.c.h.b16 %v635
        %v747 = vunpack.c.l.b16 %v636
        %v748 = vunpack.c.h.b16 %v636
        %v749 = vunpack.c.l.b16 %v637
        %v750 = vunpack.c.h.b16 %v637
        %v751 = vunpack.c.l.b16 %v638
        %v752 = vunpack.c.h.b16 %v638
        %v753 = vunpack.c.l.b16 %v639
        %v754 = vunpack.c.h.b16 %v639
        %v755 = vunpack.c.l.b16 %v640
        %v756 = vunpack.c.h.b16 %v640
        %v757 = vunpack.c.l.b16 %v641
        %v758 = vunpack.c.h.b16 %v641
        %v759 = vunpack.c.l.b16 %v642
        %v760 = vunpack.c.h.b16 %v642
        %v761 = vunpack.c.l.b16 %v643
        %v762 = vunpack.c.h.b16 %v643
        %v763 = vunpack.c.l.b16 %v644
        %v764 = vunpack.c.h.b16 %v644
        %v765 = vunpack.c.l.b16 %v645
        %v766 = vunpack.c.h.b16 %v645
        %v767 = vunpack.c.l.b16 %v646
        %v768 = vunpack.c.h.b16 %v646
        %v769 = vunpack.c.l.b16 %v647
        %v770 = vunpack.c.h.b16 %v647
        %v771 = vunpack.c.l.b16 %v648
        %v772 = vunpack.c.h.b16 %v648
        %v773 = vunpack.c.l.b16 %v649
        %v774 = vunpack.c.h.b16 %v649
        %v775 = vunpack.c.l.b16 %v650
        %v776 = vunpack.c.h.b16 %v650
        %v777 = vunpack.c.l.b16 %v651
        %v778 = vunpack.c.h.b16 %v651
        %v779 = vunpack.c.l.b16 %v652
        %v780 = vunpack.c.h.b16 %v652
        %v781 = vunpack.c.l.b16 %v653
        %v782 = vunpack.c.h.b16 %v653
        %v783 = vunpack.c.l.b16 %v654
        %v784 = vunpack.c.h.b16 %v654
        %v785 = vunpack.c.l.b16 %v655
        %v786 = vunpack.c.h.b16 %v655
        %v787 = vunpack.c.l.b16 %v656
        %v788 = vunpack.c.h.b16 %v656
        %v789 = vunpack.c.l.b16 %v657
        %v790 = vunpack.c.h.b16 %v657
        %v791 = vunpack.c.l.b16 %v658
        %v792 = vunpack.c.h.b16 %v658
        %v793 = vunpack.c.l.b16 %v659
        %v794 = vunpack.c.h.b16 %v659
        %v795 = vunpack.c.l.b16 %v660
        %v796 = vunpack.c.h.b16 %v660
        %v797 = vunpack.c.l.b16 %v661
        %v798 = vunpack.c.h.b16 %v661
        %v799 = vunpack.c.l.b16 %v662
        %v800 = vunpack.c.h.b16 %v662
        %v801 = vunpack.c.l.b16 %v663
        %v802 = vunpack.c.h.b16 %v663
        %v803 = vunpack.c.l.b16 %v664
        %v804 = vunpack.c.h.b16 %v664
        %v805 = vunpack.c.l.b16 %v665
        %v806 = vunpack.c.h.b16 %v665
        %v807 = vunpack.c.l.b16 %v666
        %v808 = vunpack.c.h.b16 %v666
        %v809 = vunpack.c.l.b16 %v667
        %v810 = vunpack.c.h.b16 %v667
        %v811 = vunpack.c.l.b16 %v668
        %v812 = vunpack.c.h.b16 %v668
        %v813 = vunpack.c.l.b16 %v669
        %v814 = vunpack.c.h.b16 %v669
        %v815 = vunpack.c.l.b16 %v670
        %v816 = vunpack.c.h.b16 %v670
        %v817 = vunpack.c.l.b16 %v671
        %v818 = vunpack.c.h.b16 %v671
        %v819 = vunpack.c.l.b16 %v672
        %v820 = vunpack.c.h.b16 %v672
        %v821 = vunpack.c.l.b16 %v673
        %v822 = vunpack.c.h.b16 %v673
        %v823 = vunpack.c.l.b16 %v674
        %v824 = vunpack.c.h.b16 %v674
        %v825 = vunpack.c.l.b16 %v675
        %v826 = vunpack.c.h.b16 %v675
        %v827 = vunpack.c.l.b16 %v676
        %v828 = vunpack.c.h.b16 %v676
        %v829 = vunpack.c.l.b16 %v677
        %v830 = vunpack.c.h.b16 %v677
        %v831 = vunpack.c.l.b16 %v678
        %v832 = vunpack.c.h.b16 %v678
        %v833 = vunpack.c.l.b16 %v679
        %v834 = vunpack.c.h.b16 %v679
        %v835 = vunpack.c.l.b16 %v680
        %v836 = vunpack.c.h.b16 %v680
        %v837 = vunpack.c.l.b16 %v681
        %v838 = vunpack.c.h.b16 %v681
        %v839 = vunpack.c.l.b16 %v682
        %v840 = vunpack.c.h.b16 %v682
        %v841 = vpack.c.b16 %v751, %v745
        %v842 = vpack.c.b16 %v752, %v746
        %v843 = vpack.c.b16 %v753, %v747
        %v844 = vpack.c.b16 %v754, %v748
        %v845 = vpack.c.b16 %v755, %v749
        %v846 = vpack.c.b16 %v756, %v750
        %v847 = vpack.c.b16 %v763, %v757
        %v848 = vpack.c.b16 %v764, %v758
        %v849 = vpack.c.b16 %v765, %v759
        %v850 = vpack.c.b16 %v766, %v760
        %v851 = vpack.c.b16 %v767, %v761
        %v852 = vpack.c.b16 %v768, %v762
        %v853 = vpack.c.b16 %v775, %v769
        %v854 = vpack.c.b16 %v776, %v770
        %v855 = vpack.c.b16 %v777, %v771
        %v856 = vpack.c.b16 %v778, %v772
        %v857 = vpack.c.b16 %v779, %v773
        %v858 = vpack.c.b16 %v780, %v774
        %v859 = vpack.c.b16 %v787, %v781
        %v860 = vpack.c.b16 %v788, %v782
        %v861 = vpack.c.b16 %v789, %v783
        %v862 = vpack.c.b16 %v790, %v784
        %v863 = vpack.c.b16 %v791, %v785
        %v864 = vpack.c.b16 %v792, %v786
        %v865 = vpack.c.b16 %v799, %v793
        %v866 = vpack.c.b16 %v800, %v794
        %v867 = vpack.c.b16 %v801, %v795
        %v868 = vpack.c.b16 %v802, %v796
        %v869 = vpack.c.b16 %v803, %v797
        %v870 = vpack.c.b16 %v804, %v798
        %v871 = vpack.c.b16 %v811, %v805
        %v872 = vpack.c.b16 %v812, %v806
        %v873 = vpack.c.b16 %v813, %v807
        %v874 = vpack.c.b16 %v814, %v808
        %v875 = vpack.c.b16 %v815, %v809
        %v876 = vpack.c.b16 %v816, %v810
        %v877 = vpack.c.b16 %v823, %v817
        %v878 = vpack.c.b16 %v824, %v818
        %v879 = vpack.c.b16 %v825, %v819
        %v880 = vpack.c.b16 %v826, %v820
        %v881 = vpack.c.b16 %v827, %v821
        %v882 = vpack.c.b16 %v828, %v822
        %v883 = vpack.c.b16 %v835, %v829
        %v884 = vpack.c.b16 %v836, %v830
        %v885 = vpack.c.b16 %v837, %v831
        %v886 = vpack.c.b16 %v838, %v832
        %v887 = vpack.c.b16 %v839, %v833
        %v888 = vpack.c.b16 %v840, %v834
        %937 = vmatpush.bf16.msra.mxu0 %v883
        %938 = vmatpush.bf16.msra.mxu0 %v877
        %939 = vmatpush.bf16.msra.mxu0 %v871
        %940 = vmatpush.bf16.msra.mxu0 %v865
        %941 = vmatpush.bf16.msra.mxu0 %v859
        %942 = vmatpush.bf16.msra.mxu0 %v853
        %943 = vmatpush.bf16.msra.mxu0 %v847
        %944 = vmatpush.bf16.msra.mxu0 %v841
        %945 = vmatmul.bf16.gmra.mxu0 %v632
        %v946 = vpop.f32.mrf.mxu0
        %v947 = vadd.f32 %v685, %v946
        %v948 = vpop.f32.mrf.mxu0
        %949 = vdwg.mxu0
        %950 = vmatpush.bf16.msra.mxu0 %v884
        %951 = vmatpush.bf16.msra.mxu0 %v878
        %952 = vmatpush.bf16.msra.mxu0 %v872
        %953 = vmatpush.bf16.msra.mxu0 %v866
        %954 = vmatpush.bf16.msra.mxu0 %v860
        %955 = vmatpush.bf16.msra.mxu0 %v854
        %956 = vmatpush.bf16.msra.mxu0 %v848
        %957 = vmatpush.bf16.msra.mxu0 %v842
        %958 = vmatmul.bf16.gmra.mxu0 %v632
        %v959 = vpop.f32.mrf.mxu0
        %v960 = vadd.f32 %v686, %v959
        %v961 = vpop.f32.mrf.mxu0
        %962 = vdwg.mxu0
        %963 = vmatpush.bf16.msra.mxu0 %v885
        %964 = vmatpush.bf16.msra.mxu0 %v879
        %965 = vmatpush.bf16.msra.mxu0 %v873
        %966 = vmatpush.bf16.msra.mxu0 %v867
        %967 = vmatpush.bf16.msra.mxu0 %v861
        %968 = vmatpush.bf16.msra.mxu0 %v855
        %969 = vmatpush.bf16.msra.mxu0 %v849
        %970 = vmatpush.bf16.msra.mxu0 %v843
        %971 = vmatmul.bf16.gmra.mxu0 %v632
        %v972 = vpop.f32.mrf.mxu0
        %v973 = vadd.f32 %v687, %v972
        %v974 = vpop.f32.mrf.mxu0
        %975 = vdwg.mxu0
        %976 = vmatpush.bf16.msra.mxu0 %v886
        %977 = vmatpush.bf16.msra.mxu0 %v880
        %978 = vmatpush.bf16.msra.mxu0 %v874
        %979 = vmatpush.bf16.msra.mxu0 %v868
        %980 = vmatpush.bf16.msra.mxu0 %v862
        %981 = vmatpush.bf16.msra.mxu0 %v856
        %982 = vmatpush.bf16.msra.mxu0 %v850
        %983 = vmatpush.bf16.msra.mxu0 %v844
        %984 = vmatmul.bf16.gmra.mxu0 %v632
        %v985 = vpop.f32.mrf.mxu0
        %v986 = vadd.f32 %v688, %v985
        %v987 = vpop.f32.mrf.mxu0
        %988 = vdwg.mxu0
        %989 = vmatpush.bf16.msra.mxu0 %v887
        %990 = vmatpush.bf16.msra.mxu0 %v881
        %991 = vmatpush.bf16.msra.mxu0 %v875
        %992 = vmatpush.bf16.msra.mxu0 %v869
        %993 = vmatpush.bf16.msra.mxu0 %v863
        %994 = vmatpush.bf16.msra.mxu0 %v857
        %995 = vmatpush.bf16.msra.mxu0 %v851
        %996 = vmatpush.bf16.msra.mxu0 %v845
        %997 = vmatmul.bf16.gmra.mxu0 %v632
        %v998 = vpop.f32.mrf.mxu0
        %v999 = vadd.f32 %v689, %v998
        %v1000 = vpop.f32.mrf.mxu0
        %1001 = vdwg.mxu0
        %1002 = vmatpush.bf16.msra.mxu0 %v888
        %1003 = vmatpush.bf16.msra.mxu0 %v882
        %1004 = vmatpush.bf16.msra.mxu0 %v876
        %1005 = vmatpush.bf16.msra.mxu0 %v870
        %1006 = vmatpush.bf16.msra.mxu0 %v864
        %1007 = vmatpush.bf16.msra.mxu0 %v858
        %1008 = vmatpush.bf16.msra.mxu0 %v852
        %1009 = vmatpush.bf16.msra.mxu0 %v846
        %1010 = vmatmul.bf16.gmra.mxu0 %v632
        %v1011 = vpop.f32.mrf.mxu0
        %v1012 = vadd.f32 %v690, %v1011
        %v1013 = vpop.f32.mrf.mxu0
        %1014 = vdwg.mxu0
        %v1015 = vpack.c.bf16 %v947, %v947
        %v1016 = vpack.c.bf16 %v973, %v973
        %v1017 = vpack.c.bf16 %v999, %v999
        %1018 = vmatpush.bf16.xpose.msra.mxu0 0
        %1019 = vmatpush.bf16.xpose.msra.mxu0 0
        %1020 = vmatpush.bf16.xpose.msra.mxu0 0
        %1021 = vmatpush.bf16.xpose.msra.mxu0 0
        %1022 = vmatpush.bf16.xpose.msra.mxu0 0
        %1023 = vmatpush.bf16.xpose.msra.mxu0 0
        %1024 = vmatpush.bf16.xpose.msra.mxu0 0
        %1025 = vmatpush.bf16.xpose.msra.mxu0 %v1016
        %1026 = vmatmul.bf16.gmra.mxu0 %v1015
        %v1027 = vpop.f32.mrf.mxu0
        %v1028 = vadd.f32 0.0, %v1027
        %v1029 = vpop.f32.mrf.mxu0
        %1030 = vdwg.mxu0
        %v1031 = vmul.f32 %v1028, 0.125
        %v1033 = vperm.slane %v634, 0
        %v1035 = vadd.f32 %v1031, %v1033
        %vm1036 = vcmask 64512
        %v1037 = vsel %vm1036, %v1035, -inf
        %1038 = vmax.xlane.f32.xlu0 %v1037
        %v1039 = vpop.xlane.xlu0 %1038
        %v1040 = vsub.f32 %v1035, %v1039
        %v1041 = vmul.f32 %v1040, 1.442695
        %v1042 = vpow.pop %v1041
        %v1043 = vsel %vm1036, %v1042, 0.0
        %1044 = vadd.xlane.f32.xlu0 %v1043
        %v1045 = vpop.xlane.xlu0 %1044
        %v1046 = vrcp.pop %v1045
        %v1047 = vmul.f32 %v1042, %v1046
        %v1048 = vpack.c.bf16 %v1047, %v1047
        %v1050 = vsel %vm1036, %v1048, 0
        %vm1052 = vcmask 1043456
        %v1054 = vsel %vm1052, %v1017, 0
        %1056 = vmatpush.bf16.msra.mxu0 0
        %1057 = vmatpush.bf16.msra.mxu0 0
        %1058 = vmatpush.bf16.msra.mxu0 0
        %1059 = vmatpush.bf16.msra.mxu0 0
        %1060 = vmatpush.bf16.msra.mxu0 0
        %1061 = vmatpush.bf16.msra.mxu0 0
        %1062 = vmatpush.bf16.msra.mxu0 0
        %1063 = vmatpush.bf16.msra.mxu0 %v1054
        %1064 = vmatmul.bf16.gmra.mxu0 %v1050
        %v1065 = vpop.f32.mrf.mxu0
        %v1066 = vadd.f32 0.0, %v1065
        %v1067 = vpop.f32.mrf.mxu0
        %1068 = vdwg.mxu0
        %v1069 = vpack.c.bf16 %v960, %v960
        %v1070 = vpack.c.bf16 %v986, %v986
        %v1071 = vpack.c.bf16 %v1012, %v1012
        %1072 = vmatpush.bf16.xpose.msra.mxu0 0
        %1073 = vmatpush.bf16.xpose.msra.mxu0 0
        %1074 = vmatpush.bf16.xpose.msra.mxu0 0
        %1075 = vmatpush.bf16.xpose.msra.mxu0 0
        %1076 = vmatpush.bf16.xpose.msra.mxu0 0
        %1077 = vmatpush.bf16.xpose.msra.mxu0 0
        %1078 = vmatpush.bf16.xpose.msra.mxu0 0
        %1079 = vmatpush.bf16.xpose.msra.mxu0 %v1070
        %1080 = vmatmul.bf16.gmra.mxu0 %v1069
        %v1081 = vpop.f32.mrf.mxu0
        %v1082 = vadd.f32 0.0, %v1081
        %v1083 = vpop.f32.mrf.mxu0
        %1084 = vdwg.mxu0
        %v1085 = vmul.f32 %v1082, 0.125
        %v1086 = vadd.f32 %v1085, %v1033
        %v1087 = vsel %vm1036, %v1086, -inf
        %1088 = vmax.xlane.f32.xlu0 %v1087
        %v1089 = vpop.xlane.xlu0 %1088
        %v1090 = vsub.f32 %v1086, %v1089
        %v1091 = vmul.f32 %v1090, 1.442695
        %v1092 = vpow.pop %v1091
        %v1093 = vsel %vm1036, %v1092, 0.0
        %1094 = vadd.xlane.f32.xlu0 %v1093
        %v1095 = vpop.xlane.xlu0 %1094
        %v1096 = vrcp.pop %v1095
        %v1097 = vmul.f32 %v1092, %v1096
        %v1098 = vpack.c.bf16 %v1097, %v1097
        %v1100 = vsel %vm1036, %v1098, 0
        %v1103 = vsel %vm1052, %v1071, 0
        %1105 = vmatpush.bf16.msra.mxu0 0
        %1106 = vmatpush.bf16.msra.mxu0 0
        %1107 = vmatpush.bf16.msra.mxu0 0
        %1108 = vmatpush.bf16.msra.mxu0 0
        %1109 = vmatpush.bf16.msra.mxu0 0
        %1110 = vmatpush.bf16.msra.mxu0 0
        %1111 = vmatpush.bf16.msra.mxu0 0
        %1112 = vmatpush.bf16.msra.mxu0 %v1103
        %1113 = vmatmul.bf16.gmra.mxu0 %v1100
        %v1114 = vpop.f32.mrf.mxu0
        %v1115 = vadd.f32 0.0, %v1114
        %v1116 = vpop.f32.mrf.mxu0
        %1117 = vdwg.mxu0
        %v1118 = vpack.c.bf16 %v1066, %v1066
        %v1119 = vpack.c.bf16 %v1115, %v1115
        %v1120 = vld [vmem:[#allocation4] sm:$0xf]
        %v1121 = vld [vmem:[#allocation4 + $0x4] sm:$0xf]
        %v1122 = vld [vmem:[#allocation4 + $0x8] sm:$0xf]
        %v1123 = vld [vmem:[#allocation4 + $0xc] sm:$0xf]
        %v1124 = vld [vmem:[#allocation4 + $0x10] sm:$0xf]
        %v1125 = vld [vmem:[#allocation4 + $0x14] sm:$0xf]
        %v1126 = vld [vmem:[#allocation4 + $0x18] sm:$0xf]
        %v1127 = vld [vmem:[#allocation4 + $0x1c] sm:$0xf]
        %v1128 = vld [vmem:[#allocation4 + $0x20] sm:$0xf]
        %v1129 = vld [vmem:[#allocation4 + $0x24] sm:$0xf]
        %v1130 = vld [vmem:[#allocation4 + $0x28] sm:$0xf]
        %v1131 = vld [vmem:[#allocation4 + $0x2c] sm:$0xf]
        %v1132 = vld [vmem:[#allocation4 + $0x30] sm:$0xf]
        %v1133 = vld [vmem:[#allocation4 + $0x34] sm:$0xf]
        %v1134 = vld [vmem:[#allocation4 + $0x38] sm:$0xf]
        %v1135 = vld [vmem:[#allocation4 + $0x3c] sm:$0xf]
        %v1136 = vld [vmem:[#allocation4 + $0x40] sm:$0xf]
        %v1137 = vld [vmem:[#allocation4 + $0x44] sm:$0xf]
        %v1138 = vld [vmem:[#allocation4 + $0x48] sm:$0xf]
        %v1139 = vld [vmem:[#allocation4 + $0x4c] sm:$0xf]
        %v1140 = vld [vmem:[#allocation4 + $0x50] sm:$0xf]
        %v1141 = vld [vmem:[#allocation4 + $0x54] sm:$0xf]
        %v1142 = vld [vmem:[#allocation4 + $0x58] sm:$0xf]
        %v1143 = vld [vmem:[#allocation4 + $0x5c] sm:$0xf]
        %v1144 = vld [vmem:[#allocation4 + $0x60] sm:$0xf]
        %v1145 = vld [vmem:[#allocation4 + $0x64] sm:$0xf]
        %v1146 = vld [vmem:[#allocation4 + $0x68] sm:$0xf]
        %v1147 = vld [vmem:[#allocation4 + $0x6c] sm:$0xf]
        %v1148 = vld [vmem:[#allocation4 + $0x70] sm:$0xf]
        %v1149 = vld [vmem:[#allocation4 + $0x74] sm:$0xf]
        %v1150 = vld [vmem:[#allocation4 + $0x78] sm:$0xf]
        %v1151 = vld [vmem:[#allocation4 + $0x7c] sm:$0xf]
        %v1184 = vunpack.c.l.b16 %v1120
        %v1185 = vunpack.c.l.b16 %v1121
        %v1186 = vunpack.c.l.b16 %v1122
        %v1187 = vunpack.c.l.b16 %v1123
        %v1188 = vunpack.c.l.b16 %v1124
        %v1189 = vunpack.c.l.b16 %v1125
        %v1190 = vunpack.c.l.b16 %v1126
        %v1191 = vunpack.c.l.b16 %v1127
        %v1192 = vunpack.c.l.b16 %v1128
        %v1193 = vunpack.c.l.b16 %v1129
        %v1194 = vunpack.c.l.b16 %v1130
        %v1195 = vunpack.c.l.b16 %v1131
        %v1196 = vunpack.c.l.b16 %v1132
        %v1197 = vunpack.c.l.b16 %v1133
        %v1198 = vunpack.c.l.b16 %v1134
        %v1199 = vunpack.c.l.b16 %v1135
        %v1200 = vunpack.c.l.b16 %v1136
        %v1201 = vunpack.c.l.b16 %v1137
        %v1202 = vunpack.c.l.b16 %v1138
        %v1203 = vunpack.c.l.b16 %v1139
        %v1204 = vunpack.c.l.b16 %v1140
        %v1205 = vunpack.c.l.b16 %v1141
        %v1206 = vunpack.c.l.b16 %v1142
        %v1207 = vunpack.c.l.b16 %v1143
        %v1208 = vunpack.c.l.b16 %v1144
        %v1209 = vunpack.c.l.b16 %v1145
        %v1210 = vunpack.c.l.b16 %v1146
        %v1211 = vunpack.c.l.b16 %v1147
        %v1212 = vunpack.c.l.b16 %v1148
        %v1213 = vunpack.c.l.b16 %v1149
        %v1214 = vunpack.c.l.b16 %v1150
        %v1215 = vunpack.c.l.b16 %v1151
        %v1216 = vpack.c.b16 %v1185, %v1184
        %v1217 = vpack.c.b16 %v1187, %v1186
        %v1218 = vpack.c.b16 %v1189, %v1188
        %v1219 = vpack.c.b16 %v1191, %v1190
        %v1220 = vpack.c.b16 %v1193, %v1192
        %v1221 = vpack.c.b16 %v1195, %v1194
        %v1222 = vpack.c.b16 %v1197, %v1196
        %v1223 = vpack.c.b16 %v1199, %v1198
        %v1224 = vpack.c.b16 %v1201, %v1200
        %v1225 = vpack.c.b16 %v1203, %v1202
        %v1226 = vpack.c.b16 %v1205, %v1204
        %v1227 = vpack.c.b16 %v1207, %v1206
        %v1228 = vpack.c.b16 %v1209, %v1208
        %v1229 = vpack.c.b16 %v1211, %v1210
        %v1230 = vpack.c.b16 %v1213, %v1212
        %v1231 = vpack.c.b16 %v1215, %v1214
        %1248 = vmatpush.bf16.msra.mxu0 %v1223
        %1249 = vmatpush.bf16.msra.mxu0 %v1222
        %1250 = vmatpush.bf16.msra.mxu0 %v1221
        %1251 = vmatpush.bf16.msra.mxu0 %v1220
        %1252 = vmatpush.bf16.msra.mxu0 %v1219
        %1253 = vmatpush.bf16.msra.mxu0 %v1218
        %1254 = vmatpush.bf16.msra.mxu0 %v1217
        %1255 = vmatpush.bf16.msra.mxu0 %v1216
        %1256 = vmatmul.bf16.gmra.mxu0 %v1118
        %v1257 = vpop.f32.mrf.mxu0
        %v1258 = vadd.f32 0.0, %v1257
        %v1259 = vpop.f32.mrf.mxu0
        %1260 = vdwg.mxu0
        %1261 = vmatpush.bf16.msra.mxu0 %v1231
        %1262 = vmatpush.bf16.msra.mxu0 %v1230
        %1263 = vmatpush.bf16.msra.mxu0 %v1229
        %1264 = vmatpush.bf16.msra.mxu0 %v1228
        %1265 = vmatpush.bf16.msra.mxu0 %v1227
        %1266 = vmatpush.bf16.msra.mxu0 %v1226
        %1267 = vmatpush.bf16.msra.mxu0 %v1225
        %1268 = vmatpush.bf16.msra.mxu0 %v1224
        %1269 = vmatmul.bf16.gmra.mxu0 %v1119
        %v1270 = vpop.f32.mrf.mxu0
        %v1271 = vadd.f32 %v1258, %v1270
        %v1272 = vpop.f32.mrf.mxu0
        %1273 = vdwg.mxu0
        %v1274 = vadd.f32 %v633, %v1271
        %v1275 = vld [vmem:[%s5] sm:$0x1]
        %v1277 = vperm.slane %v1275, 0
        %v1279 = vadd.f32 %v1274, %v1277
        %v1280 = vld [vmem:[#allocation6] sm:$0x1]
        %v1281 = vld [vmem:[#allocation7] sm:$0x1]
        %1282 = vadd.xlane.f32.xlu0 %v1279
        %v1283 = vpop.xlane.xlu0 %1282
        %v1284 = vrcp.pop 128.0
        %v1285 = vmul.f32 128.0, %v1284
        %v1286 = vsub.f32 1.0, %v1285
        %v1287 = vmul.f32 %v1284, %v1286
        %v1288 = vadd.f32 %v1284, %v1287
        %vm1289 = vweird.f32 %v1284
        %v1290 = vsel %vm1289, %v1284, %v1288
        %v1291 = vmul.f32 %v1283, %v1290
        %v1292 = vsub.f32 %v1279, %v1291
        %v1293 = vmul.f32 %v1292, %v1292
        %1294 = vadd.xlane.f32.xlu0 %v1293
        %v1295 = vpop.xlane.xlu0 %1294
        %v1296 = vmul.f32 %v1295, %v1290
        %v1297 = vadd.f32 %v1296, 1e-12
        %v1298 = vrsqrt.pop %v1297
        %v1299 = vmul.f32 %v1298, %v1297
        %v1300 = vmul.f32 %v1299, %v1298
        %v1301 = vmul.f32 0.5, %v1300
        %v1302 = vsub.f32 1.5, %v1301
        %v1303 = vmul.f32 %v1298, %v1302
        %vm1304 = vweird.f32 %v1297
        %vm1305 = vweird.f32 %v1298
        %vm1306 = vmor %vm1304, %vm1305
        %v1307 = vsel %vm1306, %v1298, %v1303
        %v1308 = vmul.f32 %v1292, %v1307
        %v1310 = vperm.slane %v1280, 0
        %v1312 = vmul.f32 %v1308, %v1310
        %v1314 = vperm.slane %v1281, 0
        %v1316 = vadd.f32 %v1312, %v1314
        %v1317 = vpack.c.bf16 %v1316, %v1316
        %v1318 = vld [vmem:[#allocation9] sm:$0xff]
        %v1319 = vld [vmem:[#allocation9 + $0x8] sm:$0xff]
        %v1320 = vld [vmem:[#allocation9 + $0x10] sm:$0xff]
        %v1321 = vld [vmem:[#allocation9 + $0x18] sm:$0xff]
        %v1322 = vld [vmem:[#allocation9 + $0x20] sm:$0xff]
        %v1323 = vld [vmem:[#allocation9 + $0x28] sm:$0xff]
        %v1324 = vld [vmem:[#allocation9 + $0x30] sm:$0xff]
        %v1325 = vld [vmem:[#allocation9 + $0x38] sm:$0xff]
        %v1326 = vld [vmem:[#allocation9 + $0x40] sm:$0xff]
        %v1327 = vld [vmem:[#allocation9 + $0x48] sm:$0xff]
        %v1328 = vld [vmem:[#allocation9 + $0x50] sm:$0xff]
        %v1329 = vld [vmem:[#allocation9 + $0x58] sm:$0xff]
        %v1330 = vld [vmem:[#allocation9 + $0x60] sm:$0xff]
        %v1331 = vld [vmem:[#allocation9 + $0x68] sm:$0xff]
        %v1332 = vld [vmem:[#allocation9 + $0x70] sm:$0xff]
        %v1333 = vld [vmem:[#allocation9 + $0x78] sm:$0xff]
        %v1334 = vld [vmem:[#allocation9 + $0x80] sm:$0xff]
        %v1335 = vld [vmem:[#allocation9 + $0x88] sm:$0xff]
        %v1336 = vld [vmem:[#allocation9 + $0x90] sm:$0xff]
        %v1337 = vld [vmem:[#allocation9 + $0x98] sm:$0xff]
        %v1338 = vld [vmem:[#allocation9 + $0xa0] sm:$0xff]
        %v1339 = vld [vmem:[#allocation9 + $0xa8] sm:$0xff]
        %v1340 = vld [vmem:[#allocation9 + $0xb0] sm:$0xff]
        %v1341 = vld [vmem:[#allocation9 + $0xb8] sm:$0xff]
        %v1342 = vld [vmem:[#allocation9 + $0xc0] sm:$0xff]
        %v1343 = vld [vmem:[#allocation9 + $0xc8] sm:$0xff]
        %v1344 = vld [vmem:[#allocation9 + $0xd0] sm:$0xff]
        %v1345 = vld [vmem:[#allocation9 + $0xd8] sm:$0xff]
        %v1346 = vld [vmem:[#allocation9 + $0xe0] sm:$0xff]
        %v1347 = vld [vmem:[#allocation9 + $0xe8] sm:$0xff]
        %v1348 = vld [vmem:[#allocation9 + $0xf0] sm:$0xff]
        %v1349 = vld [vmem:[#allocation9 + $0xf8] sm:$0xff]
        %v1350 = vld [vmem:[#allocation10] sm:$0xf]
        %v1352 = vperm.slane %v1350, 0
        %v1353 = vperm.slane %v1350, 1
        %v1354 = vperm.slane %v1350, 2
        %v1355 = vperm.slane %v1350, 3
        %v1392 = vunpack.c.l.b16 %v1318
        %v1393 = vunpack.c.h.b16 %v1318
        %v1394 = vunpack.c.l.b16 %v1319
        %v1395 = vunpack.c.h.b16 %v1319
        %v1396 = vunpack.c.l.b16 %v1320
        %v1397 = vunpack.c.h.b16 %v1320
        %v1398 = vunpack.c.l.b16 %v1321
        %v1399 = vunpack.c.h.b16 %v1321
        %v1400 = vunpack.c.l.b16 %v1322
        %v1401 = vunpack.c.h.b16 %v1322
        %v1402 = vunpack.c.l.b16 %v1323
        %v1403 = vunpack.c.h.b16 %v1323
        %v1404 = vunpack.c.l.b16 %v1324
        %v1405 = vunpack.c.h.b16 %v1324
        %v1406 = vunpack.c.l.b16 %v1325
        %v1407 = vunpack.c.h.b16 %v1325
        %v1408 = vunpack.c.l.b16 %v1326
        %v1409 = vunpack.c.h.b16 %v1326
        %v1410 = vunpack.c.l.b16 %v1327
        %v1411 = vunpack.c.h.b16 %v1327
        %v1412 = vunpack.c.l.b16 %v1328
        %v1413 = vunpack.c.h.b16 %v1328
        %v1414 = vunpack.c.l.b16 %v1329
        %v1415 = vunpack.c.h.b16 %v1329
        %v1416 = vunpack.c.l.b16 %v1330
        %v1417 = vunpack.c.h.b16 %v1330
        %v1418 = vunpack.c.l.b16 %v1331
        %v1419 = vunpack.c.h.b16 %v1331
        %v1420 = vunpack.c.l.b16 %v1332
        %v1421 = vunpack.c.h.b16 %v1332
        %v1422 = vunpack.c.l.b16 %v1333
        %v1423 = vunpack.c.h.b16 %v1333
        %v1424 = vunpack.c.l.b16 %v1334
        %v1425 = vunpack.c.h.b16 %v1334
        %v1426 = vunpack.c.l.b16 %v1335
        %v1427 = vunpack.c.h.b16 %v1335
        %v1428 = vunpack.c.l.b16 %v1336
        %v1429 = vunpack.c.h.b16 %v1336
        %v1430 = vunpack.c.l.b16 %v1337
        %v1431 = vunpack.c.h.b16 %v1337
        %v1432 = vunpack.c.l.b16 %v1338
        %v1433 = vunpack.c.h.b16 %v1338
        %v1434 = vunpack.c.l.b16 %v1339
        %v1435 = vunpack.c.h.b16 %v1339
        %v1436 = vunpack.c.l.b16 %v1340
        %v1437 = vunpack.c.h.b16 %v1340
        %v1438 = vunpack.c.l.b16 %v1341
        %v1439 = vunpack.c.h.b16 %v1341
        %v1440 = vunpack.c.l.b16 %v1342
        %v1441 = vunpack.c.h.b16 %v1342
        %v1442 = vunpack.c.l.b16 %v1343
        %v1443 = vunpack.c.h.b16 %v1343
        %v1444 = vunpack.c.l.b16 %v1344
        %v1445 = vunpack.c.h.b16 %v1344
        %v1446 = vunpack.c.l.b16 %v1345
        %v1447 = vunpack.c.h.b16 %v1345
        %v1448 = vunpack.c.l.b16 %v1346
        %v1449 = vunpack.c.h.b16 %v1346
        %v1450 = vunpack.c.l.b16 %v1347
        %v1451 = vunpack.c.h.b16 %v1347
        %v1452 = vunpack.c.l.b16 %v1348
        %v1453 = vunpack.c.h.b16 %v1348
        %v1454 = vunpack.c.l.b16 %v1349
        %v1455 = vunpack.c.h.b16 %v1349
        %v1456 = vpack.c.b16 %v1396, %v1392
        %v1457 = vpack.c.b16 %v1397, %v1393
        %v1458 = vpack.c.b16 %v1398, %v1394
        %v1459 = vpack.c.b16 %v1399, %v1395
        %v1460 = vpack.c.b16 %v1404, %v1400
        %v1461 = vpack.c.b16 %v1405, %v1401
        %v1462 = vpack.c.b16 %v1406, %v1402
        %v1463 = vpack.c.b16 %v1407, %v1403
        %v1464 = vpack.c.b16 %v1412, %v1408
        %v1465 = vpack.c.b16 %v1413, %v1409
        %v1466 = vpack.c.b16 %v1414, %v1410
        %v1467 = vpack.c.b16 %v1415, %v1411
        %v1468 = vpack.c.b16 %v1420, %v1416
        %v1469 = vpack.c.b16 %v1421, %v1417
        %v1470 = vpack.c.b16 %v1422, %v1418
        %v1471 = vpack.c.b16 %v1423, %v1419
        %v1472 = vpack.c.b16 %v1428, %v1424
        %v1473 = vpack.c.b16 %v1429, %v1425
        %v1474 = vpack.c.b16 %v1430, %v1426
        %v1475 = vpack.c.b16 %v1431, %v1427
        %v1476 = vpack.c.b16 %v1436, %v1432
        %v1477 = vpack.c.b16 %v1437, %v1433
        %v1478 = vpack.c.b16 %v1438, %v1434
        %v1479 = vpack.c.b16 %v1439, %v1435
        %v1480 = vpack.c.b16 %v1444, %v1440
        %v1481 = vpack.c.b16 %v1445, %v1441
        %v1482 = vpack.c.b16 %v1446, %v1442
        %v1483 = vpack.c.b16 %v1447, %v1443
        %v1484 = vpack.c.b16 %v1452, %v1448
        %v1485 = vpack.c.b16 %v1453, %v1449
        %v1486 = vpack.c.b16 %v1454, %v1450
        %v1487 = vpack.c.b16 %v1455, %v1451
        %1520 = vmatpush.bf16.msra.mxu0 %v1484
        %1521 = vmatpush.bf16.msra.mxu0 %v1480
        %1522 = vmatpush.bf16.msra.mxu0 %v1476
        %1523 = vmatpush.bf16.msra.mxu0 %v1472
        %1524 = vmatpush.bf16.msra.mxu0 %v1468
        %1525 = vmatpush.bf16.msra.mxu0 %v1464
        %1526 = vmatpush.bf16.msra.mxu0 %v1460
        %1527 = vmatpush.bf16.msra.mxu0 %v1456
        %1528 = vmatmul.bf16.gmra.mxu0 %v1317
        %v1529 = vpop.f32.mrf.mxu0
        %v1530 = vadd.f32 %v1352, %v1529
        %v1531 = vpop.f32.mrf.mxu0
        %1532 = vdwg.mxu0
        %1533 = vmatpush.bf16.msra.mxu0 %v1485
        %1534 = vmatpush.bf16.msra.mxu0 %v1481
        %1535 = vmatpush.bf16.msra.mxu0 %v1477
        %1536 = vmatpush.bf16.msra.mxu0 %v1473
        %1537 = vmatpush.bf16.msra.mxu0 %v1469
        %1538 = vmatpush.bf16.msra.mxu0 %v1465
        %1539 = vmatpush.bf16.msra.mxu0 %v1461
        %1540 = vmatpush.bf16.msra.mxu0 %v1457
        %1541 = vmatmul.bf16.gmra.mxu0 %v1317
        %v1542 = vpop.f32.mrf.mxu0
        %v1543 = vadd.f32 %v1353, %v1542
        %v1544 = vpop.f32.mrf.mxu0
        %1545 = vdwg.mxu0
        %1546 = vmatpush.bf16.msra.mxu0 %v1486
        %1547 = vmatpush.bf16.msra.mxu0 %v1482
        %1548 = vmatpush.bf16.msra.mxu0 %v1478
        %1549 = vmatpush.bf16.msra.mxu0 %v1474
        %1550 = vmatpush.bf16.msra.mxu0 %v1470
        %1551 = vmatpush.bf16.msra.mxu0 %v1466
        %1552 = vmatpush.bf16.msra.mxu0 %v1462
        %1553 = vmatpush.bf16.msra.mxu0 %v1458
        %1554 = vmatmul.bf16.gmra.mxu0 %v1317
        %v1555 = vpop.f32.mrf.mxu0
        %v1556 = vadd.f32 %v1354, %v1555
        %v1557 = vpop.f32.mrf.mxu0
        %1558 = vdwg.mxu0
        %1559 = vmatpush.bf16.msra.mxu0 %v1487
        %1560 = vmatpush.bf16.msra.mxu0 %v1483
        %1561 = vmatpush.bf16.msra.mxu0 %v1479
        %1562 = vmatpush.bf16.msra.mxu0 %v1475
        %1563 = vmatpush.bf16.msra.mxu0 %v1471
        %1564 = vmatpush.bf16.msra.mxu0 %v1467
        %1565 = vmatpush.bf16.msra.mxu0 %v1463
        %1566 = vmatpush.bf16.msra.mxu0 %v1459
        %1567 = vmatmul.bf16.gmra.mxu0 %v1317
        %v1568 = vpop.f32.mrf.mxu0
        %v1569 = vadd.f32 %v1355, %v1568
        %v1570 = vpop.f32.mrf.mxu0
        %1571 = vdwg.mxu0
        %v1572 = vmul.f32 %v1530, 0.5
        %v1573 = vmul.f32 %v1543, 0.5
        %v1574 = vmul.f32 %v1556, 0.5
        %v1575 = vmul.f32 %v1569, 0.5
        %v1576 = vmul.f32 %v1530, 0.044715
        %v1577 = vmul.f32 %v1543, 0.044715
        %v1578 = vmul.f32 %v1556, 0.044715
        %v1579 = vmul.f32 %v1569, 0.044715
        %v1580 = vmul.f32 %v1576, %v1530
        %v1581 = vmul.f32 %v1577, %v1543
        %v1582 = vmul.f32 %v1578, %v1556
        %v1583 = vmul.f32 %v1579, %v1569
        %v1584 = vmul.f32 %v1580, %v1530
        %v1585 = vmul.f32 %v1581, %v1543
        %v1586 = vmul.f32 %v1582, %v1556
        %v1587 = vmul.f32 %v1583, %v1569
        %v1588 = vadd.f32 %v1530, %v1584
        %v1589 = vadd.f32 %v1543, %v1585
        %v1590 = vadd.f32 %v1556, %v1586
        %v1591 = vadd.f32 %v1569, %v1587
        %v1592 = vmul.f32 %v1588, 0.7978846
        %v1593 = vmul.f32 %v1589, 0.7978846
        %v1594 = vmul.f32 %v1590, 0.7978846
        %v1595 = vmul.f32 %v1591, 0.7978846
        %v1596 = vtanh.pop %v1592
        %v1597 = vtanh.pop %v1593
        %v1598 = vtanh.pop %v1594
        %v1599 = vtanh.pop %v1595
        %v1600 = vadd.f32 %v1596, 1.0
        %v1601 = vadd.f32 %v1597, 1.0
        %v1602 = vadd.f32 %v1598, 1.0
        %v1603 = vadd.f32 %v1599, 1.0
        %v1604 = vmul.f32 %v1572, %v1600
        %v1605 = vmul.f32 %v1573, %v1601
        %v1606 = vmul.f32 %v1574, %v1602
        %v1607 = vmul.f32 %v1575, %v1603
        %v1608 = vpack.c.bf16 %v1604, %v1604
        %v1609 = vpack.c.bf16 %v1605, %v1605
        %v1610 = vpack.c.bf16 %v1606, %v1606
        %v1611 = vpack.c.bf16 %v1607, %v1607
        %v1612 = vld [vmem:[#allocation12] sm:$0xf]
        %v1613 = vld [vmem:[#allocation12 + $0x4] sm:$0xf]
        %v1614 = vld [vmem:[#allocation12 + $0x8] sm:$0xf]
        %v1615 = vld [vmem:[#allocation12 + $0xc] sm:$0xf]
        %v1616 = vld [vmem:[#allocation12 + $0x10] sm:$0xf]
        %v1617 = vld [vmem:[#allocation12 + $0x14] sm:$0xf]
        %v1618 = vld [vmem:[#allocation12 + $0x18] sm:$0xf]
        %v1619 = vld [vmem:[#allocation12 + $0x1c] sm:$0xf]
        %v1620 = vld [vmem:[#allocation12 + $0x20] sm:$0xf]
        %v1621 = vld [vmem:[#allocation12 + $0x24] sm:$0xf]
        %v1622 = vld [vmem:[#allocation12 + $0x28] sm:$0xf]
        %v1623 = vld [vmem:[#allocation12 + $0x2c] sm:$0xf]
        %v1624 = vld [vmem:[#allocation12 + $0x30] sm:$0xf]
        %v1625 = vld [vmem:[#allocation12 + $0x34] sm:$0xf]
        %v1626 = vld [vmem:[#allocation12 + $0x38] sm:$0xf]
        %v1627 = vld [vmem:[#allocation12 + $0x3c] sm:$0xf]
        %v1628 = vld [vmem:[#allocation12 + $0x40] sm:$0xf]
        %v1629 = vld [vmem:[#allocation12 + $0x44] sm:$0xf]
        %v1630 = vld [vmem:[#allocation12 + $0x48] sm:$0xf]
        %v1631 = vld [vmem:[#allocation12 + $0x4c] sm:$0xf]
        %v1632 = vld [vmem:[#allocation12 + $0x50] sm:$0xf]
        %v1633 = vld [vmem:[#allocation12 + $0x54] sm:$0xf]
        %v1634 = vld [vmem:[#allocation12 + $0x58] sm:$0xf]
        %v1635 = vld [vmem:[#allocation12 + $0x5c] sm:$0xf]
        %v1636 = vld [vmem:[#allocation12 + $0x60] sm:$0xf]
        %v1637 = vld [vmem:[#allocation12 + $0x64] sm:$0xf]
        %v1638 = vld [vmem:[#allocation12 + $0x68] sm:$0xf]
        %v1639 = vld [vmem:[#allocation12 + $0x6c] sm:$0xf]
        %v1640 = vld [vmem:[#allocation12 + $0x70] sm:$0xf]
        %v1641 = vld [vmem:[#allocation12 + $0x74] sm:$0xf]
        %v1642 = vld [vmem:[#allocation12 + $0x78] sm:$0xf]
        %v1643 = vld [vmem:[#allocation12 + $0x7c] sm:$0xf]
        %v1644 = vld [vmem:[#allocation12 + $0x80] sm:$0xf]
        %v1645 = vld [vmem:[#allocation12 + $0x84] sm:$0xf]
        %v1646 = vld [vmem:[#allocation12 + $0x88] sm:$0xf]
        %v1647 = vld [vmem:[#allocation12 + $0x8c] sm:$0xf]
        %v1648 = vld [vmem:[#allocation12 + $0x90] sm:$0xf]
        %v1649 = vld [vmem:[#allocation12 + $0x94] sm:$0xf]
        %v1650 = vld [vmem:[#allocation12 + $0x98] sm:$0xf]
        %v1651 = vld [vmem:[#allocation12 + $0x9c] sm:$0xf]
        %v1652 = vld [vmem:[#allocation12 + $0xa0] sm:$0xf]
        %v1653 = vld [vmem:[#allocation12 + $0xa4] sm:$0xf]
        %v1654 = vld [vmem:[#allocation12 + $0xa8] sm:$0xf]
        %v1655 = vld [vmem:[#allocation12 + $0xac] sm:$0xf]
        %v1656 = vld [vmem:[#allocation12 + $0xb0] sm:$0xf]
        %v1657 = vld [vmem:[#allocation12 + $0xb4] sm:$0xf]
        %v1658 = vld [vmem:[#allocation12 + $0xb8] sm:$0xf]
        %v1659 = vld [vmem:[#allocation12 + $0xbc] sm:$0xf]
        %v1660 = vld [vmem:[#allocation12 + $0xc0] sm:$0xf]
        %v1661 = vld [vmem:[#allocation12 + $0xc4] sm:$0xf]
        %v1662 = vld [vmem:[#allocation12 + $0xc8] sm:$0xf]
        %v1663 = vld [vmem:[#allocation12 + $0xcc] sm:$0xf]
        %v1664 = vld [vmem:[#allocation12 + $0xd0] sm:$0xf]
        %v1665 = vld [vmem:[#allocation12 + $0xd4] sm:$0xf]
        %v1666 = vld [vmem:[#allocation12 + $0xd8] sm:$0xf]
        %v1667 = vld [vmem:[#allocation12 + $0xdc] sm:$0xf]
        %v1668 = vld [vmem:[#allocation12 + $0xe0] sm:$0xf]
        %v1669 = vld [vmem:[#allocation12 + $0xe4] sm:$0xf]
        %v1670 = vld [vmem:[#allocation12 + $0xe8] sm:$0xf]
        %v1671 = vld [vmem:[#allocation12 + $0xec] sm:$0xf]
        %v1672 = vld [vmem:[#allocation12 + $0xf0] sm:$0xf]
        %v1673 = vld [vmem:[#allocation12 + $0xf4] sm:$0xf]
        %v1674 = vld [vmem:[#allocation12 + $0xf8] sm:$0xf]
        %v1675 = vld [vmem:[#allocation12 + $0xfc] sm:$0xf]
        %v1740 = vunpack.c.l.b16 %v1612
        %v1741 = vunpack.c.l.b16 %v1613
        %v1742 = vunpack.c.l.b16 %v1614
        %v1743 = vunpack.c.l.b16 %v1615
        %v1744 = vunpack.c.l.b16 %v1616
        %v1745 = vunpack.c.l.b16 %v1617
        %v1746 = vunpack.c.l.b16 %v1618
        %v1747 = vunpack.c.l.b16 %v1619
        %v1748 = vunpack.c.l.b16 %v1620
        %v1749 = vunpack.c.l.b16 %v1621
        %v1750 = vunpack.c.l.b16 %v1622
        %v1751 = vunpack.c.l.b16 %v1623
        %v1752 = vunpack.c.l.b16 %v1624
        %v1753 = vunpack.c.l.b16 %v1625
        %v1754 = vunpack.c.l.b16 %v1626
        %v1755 = vunpack.c.l.b16 %v1627
        %v1756 = vunpack.c.l.b16 %v1628
        %v1757 = vunpack.c.l.b16 %v1629
        %v1758 = vunpack.c.l.b16 %v1630
        %v1759 = vunpack.c.l.b16 %v1631
        %v1760 = vunpack.c.l.b16 %v1632
        %v1761 = vunpack.c.l.b16 %v1633
        %v1762 = vunpack.c.l.b16 %v1634
        %v1763 = vunpack.c.l.b16 %v1635
        %v1764 = vunpack.c.l.b16 %v1636
        %v1765 = vunpack.c.l.b16 %v1637
        %v1766 = vunpack.c.l.b16 %v1638
        %v1767 = vunpack.c.l.b16 %v1639
        %v1768 = vunpack.c.l.b16 %v1640
        %v1769 = vunpack.c.l.b16 %v1641
        %v1770 = vunpack.c.l.b16 %v1642
        %v1771 = vunpack.c.l.b16 %v1643
        %v1772 = vunpack.c.l.b16 %v1644
        %v1773 = vunpack.c.l.b16 %v1645
        %v1774 = vunpack.c.l.b16 %v1646
        %v1775 = vunpack.c.l.b16 %v1647
        %v1776 = vunpack.c.l.b16 %v1648
        %v1777 = vunpack.c.l.b16 %v1649
        %v1778 = vunpack.c.l.b16 %v1650
        %v1779 = vunpack.c.l.b16 %v1651
        %v1780 = vunpack.c.l.b16 %v1652
        %v1781 = vunpack.c.l.b16 %v1653
        %v1782 = vunpack.c.l.b16 %v1654
        %v1783 = vunpack.c.l.b16 %v1655
        %v1784 = vunpack.c.l.b16 %v1656
        %v1785 = vunpack.c.l.b16 %v1657
        %v1786 = vunpack.c.l.b16 %v1658
        %v1787 = vunpack.c.l.b16 %v1659
        %v1788 = vunpack.c.l.b16 %v1660
        %v1789 = vunpack.c.l.b16 %v1661
        %v1790 = vunpack.c.l.b16 %v1662
        %v1791 = vunpack.c.l.b16 %v1663
        %v1792 = vunpack.c.l.b16 %v1664
        %v1793 = vunpack.c.l.b16 %v1665
        %v1794 = vunpack.c.l.b16 %v1666
        %v1795 = vunpack.c.l.b16 %v1667
        %v1796 = vunpack.c.l.b16 %v1668
        %v1797 = vunpack.c.l.b16 %v1669
        %v1798 = vunpack.c.l.b16 %v1670
        %v1799 = vunpack.c.l.b16 %v1671
        %v1800 = vunpack.c.l.b16 %v1672
        %v1801 = vunpack.c.l.b16 %v1673
        %v1802 = vunpack.c.l.b16 %v1674
        %v1803 = vunpack.c.l.b16 %v1675
        %v1804 = vpack.c.b16 %v1741, %v1740
        %v1805 = vpack.c.b16 %v1743, %v1742
        %v1806 = vpack.c.b16 %v1745, %v1744
        %v1807 = vpack.c.b16 %v1747, %v1746
        %v1808 = vpack.c.b16 %v1749, %v1748
        %v1809 = vpack.c.b16 %v1751, %v1750
        %v1810 = vpack.c.b16 %v1753, %v1752
        %v1811 = vpack.c.b16 %v1755, %v1754
        %v1812 = vpack.c.b16 %v1757, %v1756
        %v1813 = vpack.c.b16 %v1759, %v1758
        %v1814 = vpack.c.b16 %v1761, %v1760
        %v1815 = vpack.c.b16 %v1763, %v1762
        %v1816 = vpack.c.b16 %v1765, %v1764
        %v1817 = vpack.c.b16 %v1767, %v1766
        %v1818 = vpack.c.b16 %v1769, %v1768
        %v1819 = vpack.c.b16 %v1771, %v1770
        %v1820 = vpack.c.b16 %v1773, %v1772
        %v1821 = vpack.c.b16 %v1775, %v1774
        %v1822 = vpack.c.b16 %v1777, %v1776
        %v1823 = vpack.c.b16 %v1779, %v1778
        %v1824 = vpack.c.b16 %v1781, %v1780
        %v1825 = vpack.c.b16 %v1783, %v1782
        %v1826 = vpack.c.b16 %v1785, %v1784
        %v1827 = vpack.c.b16 %v1787, %v1786
        %v1828 = vpack.c.b16 %v1789, %v1788
        %v1829 = vpack.c.b16 %v1791, %v1790
        %v1830 = vpack.c.b16 %v1793, %v1792
        %v1831 = vpack.c.b16 %v1795, %v1794
        %v1832 = vpack.c.b16 %v1797, %v1796
        %v1833 = vpack.c.b16 %v1799, %v1798
        %v1834 = vpack.c.b16 %v1801, %v1800
        %v1835 = vpack.c.b16 %v1803, %v1802
        %1868 = vmatpush.bf16.msra.mxu0 %v1811
        %1869 = vmatpush.bf16.msra.mxu0 %v1810
        %1870 = vmatpush.bf16.msra.mxu0 %v1809
        %1871 = vmatpush.bf16.msra.mxu0 %v1808
        %1872 = vmatpush.bf16.msra.mxu0 %v1807
        %1873 = vmatpush.bf16.msra.mxu0 %v1806
        %1874 = vmatpush.bf16.msra.mxu0 %v1805
        %1875 = vmatpush.bf16.msra.mxu0 %v1804
        %1876 = vmatmul.bf16.gmra.mxu0 %v1608
        %v1877 = vpop.f32.mrf.mxu0
        %v1878 = vadd.f32 0.0, %v1877
        %v1879 = vpop.f32.mrf.mxu0
        %1880 = vdwg.mxu0
        %1881 = vmatpush.bf16.msra.mxu0 %v1819
        %1882 = vmatpush.bf16.msra.mxu0 %v1818
        %1883 = vmatpush.bf16.msra.mxu0 %v1817
        %1884 = vmatpush.bf16.msra.mxu0 %v1816
        %1885 = vmatpush.bf16.msra.mxu0 %v1815
        %1886 = vmatpush.bf16.msra.mxu0 %v1814
        %1887 = vmatpush.bf16.msra.mxu0 %v1813
        %1888 = vmatpush.bf16.msra.mxu0 %v1812
        %1889 = vmatmul.bf16.gmra.mxu0 %v1609
        %v1890 = vpop.f32.mrf.mxu0
        %v1891 = vadd.f32 %v1878, %v1890
        %v1892 = vpop.f32.mrf.mxu0
        %1893 = vdwg.mxu0
        %1894 = vmatpush.bf16.msra.mxu0 %v1827
        %1895 = vmatpush.bf16.msra.mxu0 %v1826
        %1896 = vmatpush.bf16.msra.mxu0 %v1825
        %1897 = vmatpush.bf16.msra.mxu0 %v1824
        %1898 = vmatpush.bf16.msra.mxu0 %v1823
        %1899 = vmatpush.bf16.msra.mxu0 %v1822
        %1900 = vmatpush.bf16.msra.mxu0 %v1821
        %1901 = vmatpush.bf16.msra.mxu0 %v1820
        %1902 = vmatmul.bf16.gmra.mxu0 %v1610
        %v1903 = vpop.f32.mrf.mxu0
        %v1904 = vadd.f32 %v1891, %v1903
        %v1905 = vpop.f32.mrf.mxu0
        %1906 = vdwg.mxu0
        %1907 = vmatpush.bf16.msra.mxu0 %v1835
        %1908 = vmatpush.bf16.msra.mxu0 %v1834
        %1909 = vmatpush.bf16.msra.mxu0 %v1833
        %1910 = vmatpush.bf16.msra.mxu0 %v1832
        %1911 = vmatpush.bf16.msra.mxu0 %v1831
        %1912 = vmatpush.bf16.msra.mxu0 %v1830
        %1913 = vmatpush.bf16.msra.mxu0 %v1829
        %1914 = vmatpush.bf16.msra.mxu0 %v1828
        %1915 = vmatmul.bf16.gmra.mxu0 %v1611
        %v1916 = vpop.f32.mrf.mxu0
        %v1917 = vadd.f32 %v1904, %v1916
        %v1918 = vpop.f32.mrf.mxu0
        %1919 = vdwg.mxu0
        %v1920 = vadd.f32 %v1316, %v1917
        %v1921 = vld [vmem:[#allocation13] sm:$0x1]
        %v1923 = vperm.slane %v1921, 0
        %v1925 = vadd.f32 %v1920, %v1923
        %v1926 = vld [vmem:[#allocation15] sm:$0x1]
        %v1927 = vld [vmem:[#allocation16] sm:$0x1]
        %1928 = vadd.xlane.f32.xlu0 %v1925
        %v1929 = vpop.xlane.xlu0 %1928
        %v1930 = vmul.f32 %v1929, %v1290
        %v1931 = vsub.f32 %v1925, %v1930
        %v1932 = vmul.f32 %v1931, %v1931
        %1933 = vadd.xlane.f32.xlu0 %v1932
        %v1934 = vpop.xlane.xlu0 %1933
        %v1935 = vmul.f32 %v1934, %v1290
        %v1936 = vadd.f32 %v1935, 1e-12
        %v1937 = vrsqrt.pop %v1936
        %v1938 = vmul.f32 %v1937, %v1936
        %v1939 = vmul.f32 %v1938, %v1937
        %v1940 = vmul.f32 0.5, %v1939
        %v1941 = vsub.f32 1.5, %v1940
        %v1942 = vmul.f32 %v1937, %v1941
        %vm1943 = vweird.f32 %v1936
        %vm1944 = vweird.f32 %v1937
        %vm1945 = vmor %vm1943, %vm1944
        %v1946 = vsel %vm1945, %v1937, %v1942
        %v1947 = vmul.f32 %v1931, %v1946
        %v1949 = vperm.slane %v1926, 0
        %v1951 = vmul.f32 %v1947, %v1949
        %v1953 = vperm.slane %v1927, 0
        %v1955 = vadd.f32 %v1951, %v1953
        %v1956 = vpack.c.bf16 %v1955, %v1955
        %1957 = vst [vmem:[%s630] sm:$0xf] %v1956
        %p1958 = scmp.lt.s32.totalorder %s31, 1
        %s1959 = scalar_select %p1958, %s31, 1
        %s1960 = smul.addr %s1959, 4
        %s1961 = scalar_lea.vmem %s14, %s1960
        // Predicated region
        $region117: #{bert_classifier_forward.4} parent=75 // pred_check
          %p1962 = pneg %p353
        $region118: #{bert_classifier_forward.4} parent=75 // pred_check_branch
          %1964 = sbr.rel (%p1962) target = $region120
        $region119: #{bert_classifier_forward.4} parent=75 // pred_region
          _
        $region120: #{bert_classifier_forward.4} parent=75 // pred_fallthru
          _
      $region76: #{bert_classifier_forward.4} parent=5 // pred_fallthru
        _
      %p1965 = scmp.le.s32.totalorder 2, %s26
      // Predicated region
      $region121: #{bert_classifier_forward.4} parent=5 // pred_check
        %p1966 = pneg %p1965
      $region122: #{bert_classifier_forward.4} parent=5 // pred_check_branch
        %1968 = sbr.rel (%p1966) target = $region124
      $region123: #{bert_classifier_forward.4} parent=5 // pred_region
        %s1969 = ssub.s32 %s26, 2
        // Predicated region
        $region125: #{bert_classifier_forward.4} parent=123 // pred_check
          %p1970 = pneg %p359
        $region126: #{bert_classifier_forward.4} parent=123 // pred_check_branch
          %1972 = sbr.rel (%p1970) target = $region128
        $region127: #{bert_classifier_forward.4} parent=123 // pred_region
          %p1973 = scmp.lt.s32.totalorder %s32, 1
          %s1974 = scalar_select %p1973, %s32, 1
          %s1975 = smul.addr %s1974, 4
          %s1976 = scalar_lea.vmem %s14, %s1975
        $region128: #{bert_classifier_forward.4} parent=123 // pred_fallthru
          _
      $region124: #{bert_classifier_forward.4} parent=5 // pred_fallthru
        _
    $region6: #{bert_classifier_forward.4} parent=1 // loop_footer
      %s30 = sadd.s32 1, %s26
    $region7: #{bert_classifier_forward.4} parent=1 // loop_footer_branch
      %25 = sbr.rel target = $region3
    $region8: #{bert_classifier_forward.4} parent=1 // loop_exit
      _
    %1977 = vsyncpa [#allocation3], 1
    %s1978 = scalar_lea.sflag [#allocation3], 1
    %1979 = vsyncpa %s1978, 1
    %1980 = vsyncpa [#allocation5], 1
    %1981 = vsyncpa [#allocation8], 1
    %1982 = vsyncpa [#allocation11], 1
    %1983 = vsyncpa [#allocation14], 1
    %1984 = vsyncpa [#allocation17], 1

</llo_original>
